<compile_context>
chip_gen: v5e
topology: v5e:2x2
jax: 0.10.0
libtpu: 0.0.40
codegen_flags: <defaults>
</compile_context>

<pallas_src>
import functools

import jax
import jax.numpy as jnp
import numpy as np
from jax import lax
from jax.experimental import pallas as pl
from jax.experimental.pallas import tpu as pltpu


def _mbconv_kernel(x_ref, mask_ref, w_exp_ref, bn1_s_ref, bn1_b_ref,
                   w_dw_ref, bn2_s_ref, bn2_b_ref,
                   w_red_ref, b_red_ref, w_sexp_ref, b_sexp_ref,
                   w_proj_ref, bn3_s_ref, bn3_b_ref,
                   o_ref, *, K, H, W, residual):
    """One grid step == one batch item, activations shaped (C, H*W)."""
    Cin = x_ref.shape[1]
    Cexp = bn1_s_ref.shape[0]
    Cout = o_ref.shape[1]
    P = H * W
    pad = K // 2

    x = x_ref[0]                                              # (Cin, P) f32

    # ---- 1x1 expansion as unrolled VPU outer-product FMAs (Cin tiny) ----
    h = jnp.zeros((Cexp, P), jnp.float32)
    for ci in range(Cin):
        w_col = w_exp_ref[ci * Cexp:(ci + 1) * Cexp, :]       # (Cexp, 1), aligned
        h = h + w_col * x[ci:ci + 1, :]
    h = h * bn1_s_ref[...] + bn1_b_ref[...]
    h = h * jax.nn.sigmoid(h)                                 # Swish

    # ---- depthwise KxK conv (stride 1, SAME) via roll + boundary masks ----
    masks = mask_ref[...]                                     # (K*K, P)
    dw = jnp.zeros((Cexp, P), jnp.float32)
    for kh in range(K):
        for kw in range(K):
            kk = kh * K + kw
            s = (kh - pad) * W + (kw - pad)                   # flat spatial shift
            w_tap = w_dw_ref[kk * Cexp:(kk + 1) * Cexp, :]    # (Cexp, 1), aligned
            if s == 0:
                contrib = h * w_tap
            else:
                tap = pltpu.roll(h, shift=(-s) % P, axis=1)   # XLU lane rotate
                contrib = (tap * masks[kk:kk + 1, :]) * w_tap
            dw = dw + contrib
    dw = dw * bn2_s_ref[...] + bn2_b_ref[...]
    dw = dw * jax.nn.sigmoid(dw)                              # Swish

    # ---- squeeze & excite (global mean over this item's full H*W) ----
    pooled = jnp.sum(dw, axis=1, keepdims=True) * (1.0 / P)   # (Cexp, 1)
    se = jnp.dot(w_red_ref[...], pooled,
                 preferred_element_type=jnp.float32) + b_red_ref[...]
    se = se * jax.nn.sigmoid(se)                              # Swish
    gate = jax.nn.sigmoid(
        jnp.dot(w_sexp_ref[...], se, preferred_element_type=jnp.float32)
        + b_sexp_ref[...])                                    # (Cexp, 1)
    h2 = dw * gate                                            # lane broadcast

    # ---- 1x1 projection as unrolled VPU FMAs + BN (+ residual) ----
    out = jnp.zeros((Cout, P), jnp.float32)
    for ce in range(Cexp):
        w_col = w_proj_ref[ce * Cout:(ce + 1) * Cout, :]      # (Cout, 1), aligned
        out = out + w_col * h2[ce:ce + 1, :]
    out = out * bn3_s_ref[...] + bn3_b_ref[...]
    if residual:
        out = out + x
    o_ref[0] = out.astype(o_ref.dtype)                        # lane-dense store


def mbconv_forward(x_nchw, params, *, kernel_size, stride, residual):
    assert stride == 1, "only stride=1 supported in this kernel"
    N, Cin, H, W = x_nchw.shape
    K = kernel_size
    pad = K // 2
    P = H * W
    Cexp = params["w_dw"].shape[-1]
    Cout = params["w_proj"].shape[-1]

    # NCHW -> (N, C, H*W): pure reshape, channels->sublanes, spatial->lanes.
    x2 = x_nchw.reshape(N, Cin, P).astype(jnp.float32)

    # Per-tap validity masks for SAME padding, precomputed host-side (no in-kernel
    # iota/div/mod and no padded scratch).
    mask_np = np.zeros((K * K, P), np.float32)
    hh = np.arange(H)[:, None]
    ww = np.arange(W)[None, :]
    for kh in range(K):
        for kw in range(K):
            dh, dv = kh - pad, kw - pad
            valid = ((hh + dh >= 0) & (hh + dh < H) &
                     (ww + dv >= 0) & (ww + dv < W))
            mask_np[kh * K + kw] = valid.astype(np.float32).reshape(-1)
    masks = jnp.asarray(mask_np)

    def col(a):                        # flatten to an aligned column vector
        return jnp.asarray(a, jnp.float32).reshape(-1, 1)

    args = (
        x2, masks,
        col(params["w_exp"]),                         # (Cin*Cexp, 1) rows ci*Cexp+ce
        col(params["bn1_s"]), col(params["bn1_b"]),   # (Cexp, 1)
        col(params["w_dw"]),                          # (K*K*Cexp, 1) rows kk*Cexp+ce
        col(params["bn2_s"]), col(params["bn2_b"]),   # (Cexp, 1)
        params["w_red"].T.astype(jnp.float32),        # (Csq, Cexp)
        col(params["b_red"]),                         # (Csq, 1)
        params["w_sexp"].T.astype(jnp.float32),       # (Cexp, Csq)
        col(params["b_sexp"]),                        # (Cexp, 1)
        col(params["w_proj"]),                        # (Cexp*Cout, 1) rows ce*Cout+co
        col(params["bn3_s"]), col(params["bn3_b"]),   # (Cout, 1)
    )

    def full_spec(a):                  # whole (tiny) array, same block every step
        return pl.BlockSpec(a.shape, lambda n: (0,) * a.ndim)

    in_specs = ([pl.BlockSpec((1, Cin, P), lambda n: (n, 0, 0))]
                + [full_spec(a) for a in args[1:]])
    out_specs = pl.BlockSpec((1, Cout, P), lambda n: (n, 0, 0))

    kernel = functools.partial(_mbconv_kernel, K=K, H=H, W=W, residual=residual)
    out = pl.pallas_call(
        kernel,
        out_shape=jax.ShapeDtypeStruct((N, Cout, P), jnp.float32),
        grid=(N,),
        in_specs=in_specs,
        out_specs=out_specs,
        compiler_params=pltpu.CompilerParams(
            dimension_semantics=("parallel",),        # shard batch across v7x TCs
            vmem_limit_bytes=48 * 1024 * 1024),
    )(*args)
    return out.reshape(N, Cout, H, W)                 # already NCHW


def make_params(key, in_channels, out_channels, kernel_size, expand_ratio,
                se_ratio, eps=1e-3):
    Cin, Cout, K = in_channels, out_channels, kernel_size
    Cexp = Cin * expand_ratio
    Csq = int(Cin * se_ratio)
    ks = jax.random.split(key, 16)

    def bn(kg, kb, km, kv, C):
        gamma = 1.0 + 0.1 * jax.random.normal(kg, (C,), jnp.float32)
        beta = 0.1 * jax.random.normal(kb, (C,), jnp.float32)
        mean = 0.1 * jax.random.normal(km, (C,), jnp.float32)
        var = jnp.abs(jax.random.normal(kv, (C,), jnp.float32)) + 0.5
        scale = gamma / jnp.sqrt(var + eps)
        bias = beta - mean * scale
        return scale.reshape(1, C), bias.reshape(1, C)

    bn1_s, bn1_b = bn(ks[0], ks[1], ks[2], ks[3], Cexp)
    bn2_s, bn2_b = bn(ks[4], ks[5], ks[6], ks[7], Cexp)
    bn3_s, bn3_b = bn(ks[8], ks[9], ks[10], ks[11], Cout)
    return dict(
        w_exp=0.1 * jax.random.normal(ks[12], (Cin, Cexp), jnp.float32),
        bn1_s=bn1_s, bn1_b=bn1_b,
        w_dw=0.1 * jax.random.normal(ks[13], (K, K, Cexp), jnp.float32),
        bn2_s=bn2_s, bn2_b=bn2_b,
        w_red=0.1 * jax.random.normal(ks[14], (Cexp, Csq), jnp.float32),
        b_red=0.01 * jnp.ones((1, Csq), jnp.float32),
        w_sexp=0.1 * jax.random.normal(ks[15], (Csq, Cexp), jnp.float32),
        b_sexp=0.01 * jnp.ones((1, Cexp), jnp.float32),
        w_proj=0.1 * jax.random.normal(jax.random.fold_in(key, 99),
                                       (Cexp, Cout), jnp.float32),
        bn3_s=bn3_s, bn3_b=bn3_b,
    )


def ref_forward(x_nchw, p, *, kernel_size, residual):
    """Pure-JAX reference (NHWC), independent of the Pallas kernel."""
    x = jnp.transpose(x_nchw, (0, 2, 3, 1)).astype(jnp.float32)
    K = kernel_size
    pad = K // 2
    Cexp = p["w_dw"].shape[-1]

    h = jnp.einsum("nhwc,cd->nhwd", x, p["w_exp"])
    h = h * p["bn1_s"][0] + p["bn1_b"][0]
    h = h * jax.nn.sigmoid(h)

    wdw = p["w_dw"].reshape(K, K, 1, Cexp)
    dw = lax.conv_general_dilated(
        h, wdw, (1, 1), [(pad, pad), (pad, pad)],
        dimension_numbers=("NHWC", "HWIO", "NHWC"),
        feature_group_count=Cexp)
    dw = dw * p["bn2_s"][0] + p["bn2_b"][0]
    dw = dw * jax.nn.sigmoid(dw)

    pooled = jnp.mean(dw, axis=(1, 2))
    se = pooled @ p["w_red"] + p["b_red"][0]
    se = se * jax.nn.sigmoid(se)
    se = se @ p["w_sexp"] + p["b_sexp"][0]
    gate = jax.nn.sigmoid(se)
    h2 = dw * gate[:, None, None, :]

    out = jnp.einsum("nhwc,cd->nhwd", h2, p["w_proj"])
    out = out * p["bn3_s"][0] + p["bn3_b"][0]
    if residual:
        out = out + x
    return jnp.transpose(out, (0, 3, 1, 2))


if __name__ == "__main__":
    # MBConvBlock(in_channels=8, out_channels=8, kernel_size=3, stride=1,
    #             expand_ratio=4, se_ratio=0.25, drop_path_rate=0.2), eval mode.
    N, Cin, H, W = 2, 8, 16, 16
    Cout, K, stride, expand_ratio, se_ratio = 8, 3, 1, 4, 0.25
    residual = (stride == 1 and Cin == Cout)

    key = jax.random.PRNGKey(0)
    kx, kp = jax.random.split(key)
    x = jax.random.normal(kx, (N, Cin, H, W), jnp.float32)
    params = make_params(kp, Cin, Cout, K, expand_ratio, se_ratio)

    out = mbconv_forward(x, params, kernel_size=K, stride=stride,
                         residual=residual)
    out = jax.block_until_ready(out)

    ref = jax.block_until_ready(
        ref_forward(x, params, kernel_size=K, residual=residual))
    np.testing.assert_allclose(np.asarray(out), np.asarray(ref),
                               rtol=2e-3, atol=2e-3)
    print("KERNEL_OK")
</pallas_src>

<mosaic_0001>
module attributes {stable_mosaic.version = 11 : i64} {
  func.func @_mbconv_kernel(%arg0: i32, %arg1: memref<1x8x256xf32, #tpu.memory_space<vmem>>, %arg2: memref<9x256xf32, #tpu.memory_space<vmem>>, %arg3: memref<256x1xf32, #tpu.memory_space<vmem>>, %arg4: memref<32x1xf32, #tpu.memory_space<vmem>>, %arg5: memref<32x1xf32, #tpu.memory_space<vmem>>, %arg6: memref<288x1xf32, #tpu.memory_space<vmem>>, %arg7: memref<32x1xf32, #tpu.memory_space<vmem>>, %arg8: memref<32x1xf32, #tpu.memory_space<vmem>>, %arg9: memref<2x32xf32, #tpu.memory_space<vmem>>, %arg10: memref<2x1xf32, #tpu.memory_space<vmem>>, %arg11: memref<32x2xf32, #tpu.memory_space<vmem>>, %arg12: memref<32x1xf32, #tpu.memory_space<vmem>>, %arg13: memref<256x1xf32, #tpu.memory_space<vmem>>, %arg14: memref<8x1xf32, #tpu.memory_space<vmem>>, %arg15: memref<8x1xf32, #tpu.memory_space<vmem>>, %arg16: memref<1x8x256xf32, #tpu.memory_space<vmem>>) attributes {dimension_semantics = [#tpu.dimension_semantics<parallel>], iteration_bounds = array<i64: 2>, scalar_prefetch = 0 : i64, scratch_operands = 0 : i64, tpu.core_type = #tpu.core_type<tc>, window_params = [{transform_indices = @transform_0, window_bounds = array<i64: 1, 8, 256>}, {pipeline_mode = #tpu.pipeline_mode<synchronous>, transform_indices = @transform_1, window_bounds = array<i64: 9, 256>}, {pipeline_mode = #tpu.pipeline_mode<synchronous>, transform_indices = @transform_2, window_bounds = array<i64: 256, 1>}, {pipeline_mode = #tpu.pipeline_mode<synchronous>, transform_indices = @transform_3, window_bounds = array<i64: 32, 1>}, {pipeline_mode = #tpu.pipeline_mode<synchronous>, transform_indices = @transform_4, window_bounds = array<i64: 32, 1>}, {pipeline_mode = #tpu.pipeline_mode<synchronous>, transform_indices = @transform_5, window_bounds = array<i64: 288, 1>}, {pipeline_mode = #tpu.pipeline_mode<synchronous>, transform_indices = @transform_6, window_bounds = array<i64: 32, 1>}, {pipeline_mode = #tpu.pipeline_mode<synchronous>, transform_indices = @transform_7, window_bounds = array<i64: 32, 1>}, {pipeline_mode = #tpu.pipeline_mode<synchronous>, transform_indices = @transform_8, window_bounds = array<i64: 2, 32>}, {pipeline_mode = #tpu.pipeline_mode<synchronous>, transform_indices = @transform_9, window_bounds = array<i64: 2, 1>}, {pipeline_mode = #tpu.pipeline_mode<synchronous>, transform_indices = @transform_10, window_bounds = array<i64: 32, 2>}, {pipeline_mode = #tpu.pipeline_mode<synchronous>, transform_indices = @transform_11, window_bounds = array<i64: 32, 1>}, {pipeline_mode = #tpu.pipeline_mode<synchronous>, transform_indices = @transform_12, window_bounds = array<i64: 256, 1>}, {pipeline_mode = #tpu.pipeline_mode<synchronous>, transform_indices = @transform_13, window_bounds = array<i64: 8, 1>}, {pipeline_mode = #tpu.pipeline_mode<synchronous>, transform_indices = @transform_14, window_bounds = array<i64: 8, 1>}, {transform_indices = @transform_15, window_bounds = array<i64: 1, 8, 256>}]} {
    %c0 = arith.constant 0 : index
    %c0_0 = arith.constant 0 : index
    %c0_1 = arith.constant 0 : index
    %0 = vector.load %arg1[%c0, %c0_0, %c0_1] : memref<1x8x256xf32, #tpu.memory_space<vmem>>, vector<1x8x256xf32>
    %1 = vector.shape_cast %0 : vector<1x8x256xf32> to vector<8x256xf32>
    %cst = arith.constant 0.000000e+00 : f32
    %2 = vector.broadcast %cst : f32 to vector<32x256xf32>
    %c0_2 = arith.constant 0 : index
    %c0_3 = arith.constant 0 : index
    %3 = vector.load %arg3[%c0_2, %c0_3] : memref<256x1xf32, #tpu.memory_space<vmem>>, vector<32x1xf32>
    %4 = vector.extract_strided_slice %1 {offsets = [0, 0], sizes = [1, 256], strides = [1, 1]} : vector<8x256xf32> to vector<1x256xf32>
    %5 = vector.broadcast %3 : vector<32x1xf32> to vector<32x256xf32>
    %6 = vector.broadcast %4 : vector<1x256xf32> to vector<32x256xf32>
    %7 = arith.mulf %5, %6 : vector<32x256xf32>
    %8 = arith.addf %2, %7 : vector<32x256xf32>
    %c32 = arith.constant 32 : index
    %c0_4 = arith.constant 0 : index
    %9 = vector.load %arg3[%c32, %c0_4] : memref<256x1xf32, #tpu.memory_space<vmem>>, vector<32x1xf32>
    %10 = vector.extract_strided_slice %1 {offsets = [1, 0], sizes = [1, 256], strides = [1, 1]} : vector<8x256xf32> to vector<1x256xf32>
    %11 = vector.broadcast %9 : vector<32x1xf32> to vector<32x256xf32>
    %12 = vector.broadcast %10 : vector<1x256xf32> to vector<32x256xf32>
    %13 = arith.mulf %11, %12 : vector<32x256xf32>
    %14 = arith.addf %8, %13 : vector<32x256xf32>
    %c64 = arith.constant 64 : index
    %c0_5 = arith.constant 0 : index
    %15 = vector.load %arg3[%c64, %c0_5] : memref<256x1xf32, #tpu.memory_space<vmem>>, vector<32x1xf32>
    %16 = vector.extract_strided_slice %1 {offsets = [2, 0], sizes = [1, 256], strides = [1, 1]} : vector<8x256xf32> to vector<1x256xf32>
    %17 = vector.broadcast %15 : vector<32x1xf32> to vector<32x256xf32>
    %18 = vector.broadcast %16 : vector<1x256xf32> to vector<32x256xf32>
    %19 = arith.mulf %17, %18 : vector<32x256xf32>
    %20 = arith.addf %14, %19 : vector<32x256xf32>
    %c96 = arith.constant 96 : index
    %c0_6 = arith.constant 0 : index
    %21 = vector.load %arg3[%c96, %c0_6] : memref<256x1xf32, #tpu.memory_space<vmem>>, vector<32x1xf32>
    %22 = vector.extract_strided_slice %1 {offsets = [3, 0], sizes = [1, 256], strides = [1, 1]} : vector<8x256xf32> to vector<1x256xf32>
    %23 = vector.broadcast %21 : vector<32x1xf32> to vector<32x256xf32>
    %24 = vector.broadcast %22 : vector<1x256xf32> to vector<32x256xf32>
    %25 = arith.mulf %23, %24 : vector<32x256xf32>
    %26 = arith.addf %20, %25 : vector<32x256xf32>
    %c128 = arith.constant 128 : index
    %c0_7 = arith.constant 0 : index
    %27 = vector.load %arg3[%c128, %c0_7] : memref<256x1xf32, #tpu.memory_space<vmem>>, vector<32x1xf32>
    %28 = vector.extract_strided_slice %1 {offsets = [4, 0], sizes = [1, 256], strides = [1, 1]} : vector<8x256xf32> to vector<1x256xf32>
    %29 = vector.broadcast %27 : vector<32x1xf32> to vector<32x256xf32>
    %30 = vector.broadcast %28 : vector<1x256xf32> to vector<32x256xf32>
    %31 = arith.mulf %29, %30 : vector<32x256xf32>
    %32 = arith.addf %26, %31 : vector<32x256xf32>
    %c160 = arith.constant 160 : index
    %c0_8 = arith.constant 0 : index
    %33 = vector.load %arg3[%c160, %c0_8] : memref<256x1xf32, #tpu.memory_space<vmem>>, vector<32x1xf32>
    %34 = vector.extract_strided_slice %1 {offsets = [5, 0], sizes = [1, 256], strides = [1, 1]} : vector<8x256xf32> to vector<1x256xf32>
    %35 = vector.broadcast %33 : vector<32x1xf32> to vector<32x256xf32>
    %36 = vector.broadcast %34 : vector<1x256xf32> to vector<32x256xf32>
    %37 = arith.mulf %35, %36 : vector<32x256xf32>
    %38 = arith.addf %32, %37 : vector<32x256xf32>
    %c192 = arith.constant 192 : index
    %c0_9 = arith.constant 0 : index
    %39 = vector.load %arg3[%c192, %c0_9] : memref<256x1xf32, #tpu.memory_space<vmem>>, vector<32x1xf32>
    %40 = vector.extract_strided_slice %1 {offsets = [6, 0], sizes = [1, 256], strides = [1, 1]} : vector<8x256xf32> to vector<1x256xf32>
    %41 = vector.broadcast %39 : vector<32x1xf32> to vector<32x256xf32>
    %42 = vector.broadcast %40 : vector<1x256xf32> to vector<32x256xf32>
    %43 = arith.mulf %41, %42 : vector<32x256xf32>
    %44 = arith.addf %38, %43 : vector<32x256xf32>
    %c224 = arith.constant 224 : index
    %c0_10 = arith.constant 0 : index
    %45 = vector.load %arg3[%c224, %c0_10] : memref<256x1xf32, #tpu.memory_space<vmem>>, vector<32x1xf32>
    %46 = vector.extract_strided_slice %1 {offsets = [7, 0], sizes = [1, 256], strides = [1, 1]} : vector<8x256xf32> to vector<1x256xf32>
    %47 = vector.broadcast %45 : vector<32x1xf32> to vector<32x256xf32>
    %48 = vector.broadcast %46 : vector<1x256xf32> to vector<32x256xf32>
    %49 = arith.mulf %47, %48 : vector<32x256xf32>
    %50 = arith.addf %44, %49 : vector<32x256xf32>
    %c0_11 = arith.constant 0 : index
    %c0_12 = arith.constant 0 : index
    %51 = vector.load %arg4[%c0_11, %c0_12] : memref<32x1xf32, #tpu.memory_space<vmem>>, vector<32x1xf32>
    %52 = vector.broadcast %51 : vector<32x1xf32> to vector<32x256xf32>
    %53 = arith.mulf %50, %52 : vector<32x256xf32>
    %c0_13 = arith.constant 0 : index
    %c0_14 = arith.constant 0 : index
    %54 = vector.load %arg5[%c0_13, %c0_14] : memref<32x1xf32, #tpu.memory_space<vmem>>, vector<32x1xf32>
    %55 = vector.broadcast %54 : vector<32x1xf32> to vector<32x256xf32>
    %56 = arith.addf %53, %55 : vector<32x256xf32>
    %57 = arith.negf %56 : vector<32x256xf32>
    %58 = math.exp %57 : vector<32x256xf32>
    %cst_15 = arith.constant 1.000000e+00 : f32
    %59 = vector.broadcast %cst_15 : f32 to vector<32x256xf32>
    %60 = arith.addf %59, %58 : vector<32x256xf32>
    %61 = arith.divf %59, %60 : vector<32x256xf32>
    %62 = arith.mulf %56, %61 : vector<32x256xf32>
    %c0_16 = arith.constant 0 : index
    %c0_17 = arith.constant 0 : index
    %63 = vector.load %arg2[%c0_16, %c0_17] : memref<9x256xf32, #tpu.memory_space<vmem>>, vector<9x256xf32>
    %cst_18 = arith.constant 0.000000e+00 : f32
    %64 = vector.broadcast %cst_18 : f32 to vector<32x256xf32>
    %c0_19 = arith.constant 0 : index
    %c0_20 = arith.constant 0 : index
    %65 = vector.load %arg6[%c0_19, %c0_20] : memref<288x1xf32, #tpu.memory_space<vmem>>, vector<32x1xf32>
    %c17_i32 = arith.constant 17 : i32
    %66 = tpu.dynamic_rotate %62 by %c17_i32 dim 1 : vector<32x256xf32>, i32 -> vector<32x256xf32>
    %67 = vector.extract_strided_slice %63 {offsets = [0, 0], sizes = [1, 256], strides = [1, 1]} : vector<9x256xf32> to vector<1x256xf32>
    %68 = vector.broadcast %67 : vector<1x256xf32> to vector<32x256xf32>
    %69 = arith.mulf %66, %68 : vector<32x256xf32>
    %70 = vector.broadcast %65 : vector<32x1xf32> to vector<32x256xf32>
    %71 = arith.mulf %69, %70 : vector<32x256xf32>
    %72 = arith.addf %64, %71 : vector<32x256xf32>
    %c32_21 = arith.constant 32 : index
    %c0_22 = arith.constant 0 : index
    %73 = vector.load %arg6[%c32_21, %c0_22] : memref<288x1xf32, #tpu.memory_space<vmem>>, vector<32x1xf32>
    %c16_i32 = arith.constant 16 : i32
    %74 = tpu.dynamic_rotate %62 by %c16_i32 dim 1 : vector<32x256xf32>, i32 -> vector<32x256xf32>
    %75 = vector.extract_strided_slice %63 {offsets = [1, 0], sizes = [1, 256], strides = [1, 1]} : vector<9x256xf32> to vector<1x256xf32>
    %76 = vector.broadcast %75 : vector<1x256xf32> to vector<32x256xf32>
    %77 = arith.mulf %74, %76 : vector<32x256xf32>
    %78 = vector.broadcast %73 : vector<32x1xf32> to vector<32x256xf32>
    %79 = arith.mulf %77, %78 : vector<32x256xf32>
    %80 = arith.addf %72, %79 : vector<32x256xf32>
    %c64_23 = arith.constant 64 : index
    %c0_24 = arith.constant 0 : index
    %81 = vector.load %arg6[%c64_23, %c0_24] : memref<288x1xf32, #tpu.memory_space<vmem>>, vector<32x1xf32>
    %c15_i32 = arith.constant 15 : i32
    %82 = tpu.dynamic_rotate %62 by %c15_i32 dim 1 : vector<32x256xf32>, i32 -> vector<32x256xf32>
    %83 = vector.extract_strided_slice %63 {offsets = [2, 0], sizes = [1, 256], strides = [1, 1]} : vector<9x256xf32> to vector<1x256xf32>
    %84 = vector.broadcast %83 : vector<1x256xf32> to vector<32x256xf32>
    %85 = arith.mulf %82, %84 : vector<32x256xf32>
    %86 = vector.broadcast %81 : vector<32x1xf32> to vector<32x256xf32>
    %87 = arith.mulf %85, %86 : vector<32x256xf32>
    %88 = arith.addf %80, %87 : vector<32x256xf32>
    %c96_25 = arith.constant 96 : index
    %c0_26 = arith.constant 0 : index
    %89 = vector.load %arg6[%c96_25, %c0_26] : memref<288x1xf32, #tpu.memory_space<vmem>>, vector<32x1xf32>
    %c1_i32 = arith.constant 1 : i32
    %90 = tpu.dynamic_rotate %62 by %c1_i32 dim 1 : vector<32x256xf32>, i32 -> vector<32x256xf32>
    %91 = vector.extract_strided_slice %63 {offsets = [3, 0], sizes = [1, 256], strides = [1, 1]} : vector<9x256xf32> to vector<1x256xf32>
    %92 = vector.broadcast %91 : vector<1x256xf32> to vector<32x256xf32>
    %93 = arith.mulf %90, %92 : vector<32x256xf32>
    %94 = vector.broadcast %89 : vector<32x1xf32> to vector<32x256xf32>
    %95 = arith.mulf %93, %94 : vector<32x256xf32>
    %96 = arith.addf %88, %95 : vector<32x256xf32>
    %c128_27 = arith.constant 128 : index
    %c0_28 = arith.constant 0 : index
    %97 = vector.load %arg6[%c128_27, %c0_28] : memref<288x1xf32, #tpu.memory_space<vmem>>, vector<32x1xf32>
    %98 = vector.broadcast %97 : vector<32x1xf32> to vector<32x256xf32>
    %99 = arith.mulf %62, %98 : vector<32x256xf32>
    %100 = arith.addf %96, %99 : vector<32x256xf32>
    %c160_29 = arith.constant 160 : index
    %c0_30 = arith.constant 0 : index
    %101 = vector.load %arg6[%c160_29, %c0_30] : memref<288x1xf32, #tpu.memory_space<vmem>>, vector<32x1xf32>
    %c255_i32 = arith.constant 255 : i32
    %102 = tpu.dynamic_rotate %62 by %c255_i32 dim 1 : vector<32x256xf32>, i32 -> vector<32x256xf32>
    %103 = vector.extract_strided_slice %63 {offsets = [5, 0], sizes = [1, 256], strides = [1, 1]} : vector<9x256xf32> to vector<1x256xf32>
    %104 = vector.broadcast %103 : vector<1x256xf32> to vector<32x256xf32>
    %105 = arith.mulf %102, %104 : vector<32x256xf32>
    %106 = vector.broadcast %101 : vector<32x1xf32> to vector<32x256xf32>
    %107 = arith.mulf %105, %106 : vector<32x256xf32>
    %108 = arith.addf %100, %107 : vector<32x256xf32>
    %c192_31 = arith.constant 192 : index
    %c0_32 = arith.constant 0 : index
    %109 = vector.load %arg6[%c192_31, %c0_32] : memref<288x1xf32, #tpu.memory_space<vmem>>, vector<32x1xf32>
    %c241_i32 = arith.constant 241 : i32
    %110 = tpu.dynamic_rotate %62 by %c241_i32 dim 1 : vector<32x256xf32>, i32 -> vector<32x256xf32>
    %111 = vector.extract_strided_slice %63 {offsets = [6, 0], sizes = [1, 256], strides = [1, 1]} : vector<9x256xf32> to vector<1x256xf32>
    %112 = vector.broadcast %111 : vector<1x256xf32> to vector<32x256xf32>
    %113 = arith.mulf %110, %112 : vector<32x256xf32>
    %114 = vector.broadcast %109 : vector<32x1xf32> to vector<32x256xf32>
    %115 = arith.mulf %113, %114 : vector<32x256xf32>
    %116 = arith.addf %108, %115 : vector<32x256xf32>
    %c224_33 = arith.constant 224 : index
    %c0_34 = arith.constant 0 : index
    %117 = vector.load %arg6[%c224_33, %c0_34] : memref<288x1xf32, #tpu.memory_space<vmem>>, vector<32x1xf32>
    %c240_i32 = arith.constant 240 : i32
    %118 = tpu.dynamic_rotate %62 by %c240_i32 dim 1 : vector<32x256xf32>, i32 -> vector<32x256xf32>
    %119 = vector.extract_strided_slice %63 {offsets = [7, 0], sizes = [1, 256], strides = [1, 1]} : vector<9x256xf32> to vector<1x256xf32>
    %120 = vector.broadcast %119 : vector<1x256xf32> to vector<32x256xf32>
    %121 = arith.mulf %118, %120 : vector<32x256xf32>
    %122 = vector.broadcast %117 : vector<32x1xf32> to vector<32x256xf32>
    %123 = arith.mulf %121, %122 : vector<32x256xf32>
    %124 = arith.addf %116, %123 : vector<32x256xf32>
    %c256 = arith.constant 256 : index
    %c0_35 = arith.constant 0 : index
    %125 = vector.load %arg6[%c256, %c0_35] : memref<288x1xf32, #tpu.memory_space<vmem>>, vector<32x1xf32>
    %c239_i32 = arith.constant 239 : i32
    %126 = tpu.dynamic_rotate %62 by %c239_i32 dim 1 : vector<32x256xf32>, i32 -> vector<32x256xf32>
    %127 = vector.extract_strided_slice %63 {offsets = [8, 0], sizes = [1, 256], strides = [1, 1]} : vector<9x256xf32> to vector<1x256xf32>
    %128 = vector.broadcast %127 : vector<1x256xf32> to vector<32x256xf32>
    %129 = arith.mulf %126, %128 : vector<32x256xf32>
    %130 = vector.broadcast %125 : vector<32x1xf32> to vector<32x256xf32>
    %131 = arith.mulf %129, %130 : vector<32x256xf32>
    %132 = arith.addf %124, %131 : vector<32x256xf32>
    %c0_36 = arith.constant 0 : index
    %c0_37 = arith.constant 0 : index
    %133 = vector.load %arg7[%c0_36, %c0_37] : memref<32x1xf32, #tpu.memory_space<vmem>>, vector<32x1xf32>
    %134 = vector.broadcast %133 : vector<32x1xf32> to vector<32x256xf32>
    %135 = arith.mulf %132, %134 : vector<32x256xf32>
    %c0_38 = arith.constant 0 : index
    %c0_39 = arith.constant 0 : index
    %136 = vector.load %arg8[%c0_38, %c0_39] : memref<32x1xf32, #tpu.memory_space<vmem>>, vector<32x1xf32>
    %137 = vector.broadcast %136 : vector<32x1xf32> to vector<32x256xf32>
    %138 = arith.addf %135, %137 : vector<32x256xf32>
    %139 = arith.negf %138 : vector<32x256xf32>
    %140 = math.exp %139 : vector<32x256xf32>
    %cst_40 = arith.constant 1.000000e+00 : f32
    %141 = vector.broadcast %cst_40 : f32 to vector<32x256xf32>
    %142 = arith.addf %141, %140 : vector<32x256xf32>
    %143 = arith.divf %141, %142 : vector<32x256xf32>
    %144 = arith.mulf %138, %143 : vector<32x256xf32>
    %cst_41 = arith.constant dense<0.000000e+00> : vector<32xf32>
    %145 = vector.multi_reduction <add>, %144, %cst_41 [1] : vector<32x256xf32> to vector<32xf32>
    %146 = vector.shape_cast %145 : vector<32xf32> to vector<32x1xf32>
    %cst_42 = arith.constant 3.906250e-03 : f32
    %147 = vector.broadcast %cst_42 : f32 to vector<32x1xf32>
    %148 = arith.mulf %146, %147 : vector<32x1xf32>
    %c0_43 = arith.constant 0 : index
    %c0_44 = arith.constant 0 : index
    %149 = vector.load %arg9[%c0_43, %c0_44] : memref<2x32xf32, #tpu.memory_space<vmem>>, vector<2x32xf32>
    %cst_45 = arith.constant dense<0.000000e+00> : vector<2x1xf32>
    %150 = tpu.matmul %149, %148, %cst_45 {dimension_numbers = #tpu.dot_dimension_numbers<[1], [0], [0], [1], [0, 0, 1, 1], [], []>} : vector<2x32xf32>, vector<32x1xf32>, vector<2x1xf32> -> vector<2x1xf32>
    %c0_46 = arith.constant 0 : index
    %c0_47 = arith.constant 0 : index
    %151 = vector.load %arg10[%c0_46, %c0_47] : memref<2x1xf32, #tpu.memory_space<vmem>>, vector<2x1xf32>
    %152 = arith.addf %150, %151 : vector<2x1xf32>
    %153 = arith.negf %152 : vector<2x1xf32>
    %154 = math.exp %153 : vector<2x1xf32>
    %cst_48 = arith.constant 1.000000e+00 : f32
    %155 = vector.broadcast %cst_48 : f32 to vector<2x1xf32>
    %156 = arith.addf %155, %154 : vector<2x1xf32>
    %157 = arith.divf %155, %156 : vector<2x1xf32>
    %158 = arith.mulf %152, %157 : vector<2x1xf32>
    %c0_49 = arith.constant 0 : index
    %c0_50 = arith.constant 0 : index
    %159 = vector.load %arg11[%c0_49, %c0_50] : memref<32x2xf32, #tpu.memory_space<vmem>>, vector<32x2xf32>
    %cst_51 = arith.constant dense<0.000000e+00> : vector<32x1xf32>
    %160 = tpu.matmul %159, %158, %cst_51 {dimension_numbers = #tpu.dot_dimension_numbers<[1], [0], [0], [1], [0, 0, 1, 1], [], []>} : vector<32x2xf32>, vector<2x1xf32>, vector<32x1xf32> -> vector<32x1xf32>
    %c0_52 = arith.constant 0 : index
    %c0_53 = arith.constant 0 : index
    %161 = vector.load %arg12[%c0_52, %c0_53] : memref<32x1xf32, #tpu.memory_space<vmem>>, vector<32x1xf32>
    %162 = arith.addf %160, %161 : vector<32x1xf32>
    %163 = arith.negf %162 : vector<32x1xf32>
    %164 = math.exp %163 : vector<32x1xf32>
    %cst_54 = arith.constant 1.000000e+00 : f32
    %165 = vector.broadcast %cst_54 : f32 to vector<32x1xf32>
    %166 = arith.addf %165, %164 : vector<32x1xf32>
    %167 = arith.divf %165, %166 : vector<32x1xf32>
    %168 = vector.broadcast %167 : vector<32x1xf32> to vector<32x256xf32>
    %169 = arith.mulf %144, %168 : vector<32x256xf32>
    %cst_55 = arith.constant 0.000000e+00 : f32
    %170 = vector.broadcast %cst_55 : f32 to vector<8x256xf32>
    %c0_56 = arith.constant 0 : index
    %c0_57 = arith.constant 0 : index
    %171 = vector.load %arg13[%c0_56, %c0_57] : memref<256x1xf32, #tpu.memory_space<vmem>>, vector<8x1xf32>
    %172 = vector.extract_strided_slice %169 {offsets = [0, 0], sizes = [1, 256], strides = [1, 1]} : vector<32x256xf32> to vector<1x256xf32>
    %173 = vector.broadcast %171 : vector<8x1xf32> to vector<8x256xf32>
    %174 = vector.broadcast %172 : vector<1x256xf32> to vector<8x256xf32>
    %175 = arith.mulf %173, %174 : vector<8x256xf32>
    %176 = arith.addf %170, %175 : vector<8x256xf32>
    %c8 = arith.constant 8 : index
    %c0_58 = arith.constant 0 : index
    %177 = vector.load %arg13[%c8, %c0_58] : memref<256x1xf32, #tpu.memory_space<vmem>>, vector<8x1xf32>
    %178 = vector.extract_strided_slice %169 {offsets = [1, 0], sizes = [1, 256], strides = [1, 1]} : vector<32x256xf32> to vector<1x256xf32>
    %179 = vector.broadcast %177 : vector<8x1xf32> to vector<8x256xf32>
    %180 = vector.broadcast %178 : vector<1x256xf32> to vector<8x256xf32>
    %181 = arith.mulf %179, %180 : vector<8x256xf32>
    %182 = arith.addf %176, %181 : vector<8x256xf32>
    %c16 = arith.constant 16 : index
    %c0_59 = arith.constant 0 : index
    %183 = vector.load %arg13[%c16, %c0_59] : memref<256x1xf32, #tpu.memory_space<vmem>>, vector<8x1xf32>
    %184 = vector.extract_strided_slice %169 {offsets = [2, 0], sizes = [1, 256], strides = [1, 1]} : vector<32x256xf32> to vector<1x256xf32>
    %185 = vector.broadcast %183 : vector<8x1xf32> to vector<8x256xf32>
    %186 = vector.broadcast %184 : vector<1x256xf32> to vector<8x256xf32>
    %187 = arith.mulf %185, %186 : vector<8x256xf32>
    %188 = arith.addf %182, %187 : vector<8x256xf32>
    %c24 = arith.constant 24 : index
    %c0_60 = arith.constant 0 : index
    %189 = vector.load %arg13[%c24, %c0_60] : memref<256x1xf32, #tpu.memory_space<vmem>>, vector<8x1xf32>
    %190 = vector.extract_strided_slice %169 {offsets = [3, 0], sizes = [1, 256], strides = [1, 1]} : vector<32x256xf32> to vector<1x256xf32>
    %191 = vector.broadcast %189 : vector<8x1xf32> to vector<8x256xf32>
    %192 = vector.broadcast %190 : vector<1x256xf32> to vector<8x256xf32>
    %193 = arith.mulf %191, %192 : vector<8x256xf32>
    %194 = arith.addf %188, %193 : vector<8x256xf32>
    %c32_61 = arith.constant 32 : index
    %c0_62 = arith.constant 0 : index
    %195 = vector.load %arg13[%c32_61, %c0_62] : memref<256x1xf32, #tpu.memory_space<vmem>>, vector<8x1xf32>
    %196 = vector.extract_strided_slice %169 {offsets = [4, 0], sizes = [1, 256], strides = [1, 1]} : vector<32x256xf32> to vector<1x256xf32>
    %197 = vector.broadcast %195 : vector<8x1xf32> to vector<8x256xf32>
    %198 = vector.broadcast %196 : vector<1x256xf32> to vector<8x256xf32>
    %199 = arith.mulf %197, %198 : vector<8x256xf32>
    %200 = arith.addf %194, %199 : vector<8x256xf32>
    %c40 = arith.constant 40 : index
    %c0_63 = arith.constant 0 : index
    %201 = vector.load %arg13[%c40, %c0_63] : memref<256x1xf32, #tpu.memory_space<vmem>>, vector<8x1xf32>
    %202 = vector.extract_strided_slice %169 {offsets = [5, 0], sizes = [1, 256], strides = [1, 1]} : vector<32x256xf32> to vector<1x256xf32>
    %203 = vector.broadcast %201 : vector<8x1xf32> to vector<8x256xf32>
    %204 = vector.broadcast %202 : vector<1x256xf32> to vector<8x256xf32>
    %205 = arith.mulf %203, %204 : vector<8x256xf32>
    %206 = arith.addf %200, %205 : vector<8x256xf32>
    %c48 = arith.constant 48 : index
    %c0_64 = arith.constant 0 : index
    %207 = vector.load %arg13[%c48, %c0_64] : memref<256x1xf32, #tpu.memory_space<vmem>>, vector<8x1xf32>
    %208 = vector.extract_strided_slice %169 {offsets = [6, 0], sizes = [1, 256], strides = [1, 1]} : vector<32x256xf32> to vector<1x256xf32>
    %209 = vector.broadcast %207 : vector<8x1xf32> to vector<8x256xf32>
    %210 = vector.broadcast %208 : vector<1x256xf32> to vector<8x256xf32>
    %211 = arith.mulf %209, %210 : vector<8x256xf32>
    %212 = arith.addf %206, %211 : vector<8x256xf32>
    %c56 = arith.constant 56 : index
    %c0_65 = arith.constant 0 : index
    %213 = vector.load %arg13[%c56, %c0_65] : memref<256x1xf32, #tpu.memory_space<vmem>>, vector<8x1xf32>
    %214 = vector.extract_strided_slice %169 {offsets = [7, 0], sizes = [1, 256], strides = [1, 1]} : vector<32x256xf32> to vector<1x256xf32>
    %215 = vector.broadcast %213 : vector<8x1xf32> to vector<8x256xf32>
    %216 = vector.broadcast %214 : vector<1x256xf32> to vector<8x256xf32>
    %217 = arith.mulf %215, %216 : vector<8x256xf32>
    %218 = arith.addf %212, %217 : vector<8x256xf32>
    %c64_66 = arith.constant 64 : index
    %c0_67 = arith.constant 0 : index
    %219 = vector.load %arg13[%c64_66, %c0_67] : memref<256x1xf32, #tpu.memory_space<vmem>>, vector<8x1xf32>
    %220 = vector.extract_strided_slice %169 {offsets = [8, 0], sizes = [1, 256], strides = [1, 1]} : vector<32x256xf32> to vector<1x256xf32>
    %221 = vector.broadcast %219 : vector<8x1xf32> to vector<8x256xf32>
    %222 = vector.broadcast %220 : vector<1x256xf32> to vector<8x256xf32>
    %223 = arith.mulf %221, %222 : vector<8x256xf32>
    %224 = arith.addf %218, %223 : vector<8x256xf32>
    %c72 = arith.constant 72 : index
    %c0_68 = arith.constant 0 : index
    %225 = vector.load %arg13[%c72, %c0_68] : memref<256x1xf32, #tpu.memory_space<vmem>>, vector<8x1xf32>
    %226 = vector.extract_strided_slice %169 {offsets = [9, 0], sizes = [1, 256], strides = [1, 1]} : vector<32x256xf32> to vector<1x256xf32>
    %227 = vector.broadcast %225 : vector<8x1xf32> to vector<8x256xf32>
    %228 = vector.broadcast %226 : vector<1x256xf32> to vector<8x256xf32>
    %229 = arith.mulf %227, %228 : vector<8x256xf32>
    %230 = arith.addf %224, %229 : vector<8x256xf32>
    %c80 = arith.constant 80 : index
    %c0_69 = arith.constant 0 : index
    %231 = vector.load %arg13[%c80, %c0_69] : memref<256x1xf32, #tpu.memory_space<vmem>>, vector<8x1xf32>
    %232 = vector.extract_strided_slice %169 {offsets = [10, 0], sizes = [1, 256], strides = [1, 1]} : vector<32x256xf32> to vector<1x256xf32>
    %233 = vector.broadcast %231 : vector<8x1xf32> to vector<8x256xf32>
    %234 = vector.broadcast %232 : vector<1x256xf32> to vector<8x256xf32>
    %235 = arith.mulf %233, %234 : vector<8x256xf32>
    %236 = arith.addf %230, %235 : vector<8x256xf32>
    %c88 = arith.constant 88 : index
    %c0_70 = arith.constant 0 : index
    %237 = vector.load %arg13[%c88, %c0_70] : memref<256x1xf32, #tpu.memory_space<vmem>>, vector<8x1xf32>
    %238 = vector.extract_strided_slice %169 {offsets = [11, 0], sizes = [1, 256], strides = [1, 1]} : vector<32x256xf32> to vector<1x256xf32>
    %239 = vector.broadcast %237 : vector<8x1xf32> to vector<8x256xf32>
    %240 = vector.broadcast %238 : vector<1x256xf32> to vector<8x256xf32>
    %241 = arith.mulf %239, %240 : vector<8x256xf32>
    %242 = arith.addf %236, %241 : vector<8x256xf32>
    %c96_71 = arith.constant 96 : index
    %c0_72 = arith.constant 0 : index
    %243 = vector.load %arg13[%c96_71, %c0_72] : memref<256x1xf32, #tpu.memory_space<vmem>>, vector<8x1xf32>
    %244 = vector.extract_strided_slice %169 {offsets = [12, 0], sizes = [1, 256], strides = [1, 1]} : vector<32x256xf32> to vector<1x256xf32>
    %245 = vector.broadcast %243 : vector<8x1xf32> to vector<8x256xf32>
    %246 = vector.broadcast %244 : vector<1x256xf32> to vector<8x256xf32>
    %247 = arith.mulf %245, %246 : vector<8x256xf32>
    %248 = arith.addf %242, %247 : vector<8x256xf32>
    %c104 = arith.constant 104 : index
    %c0_73 = arith.constant 0 : index
    %249 = vector.load %arg13[%c104, %c0_73] : memref<256x1xf32, #tpu.memory_space<vmem>>, vector<8x1xf32>
    %250 = vector.extract_strided_slice %169 {offsets = [13, 0], sizes = [1, 256], strides = [1, 1]} : vector<32x256xf32> to vector<1x256xf32>
    %251 = vector.broadcast %249 : vector<8x1xf32> to vector<8x256xf32>
    %252 = vector.broadcast %250 : vector<1x256xf32> to vector<8x256xf32>
    %253 = arith.mulf %251, %252 : vector<8x256xf32>
    %254 = arith.addf %248, %253 : vector<8x256xf32>
    %c112 = arith.constant 112 : index
    %c0_74 = arith.constant 0 : index
    %255 = vector.load %arg13[%c112, %c0_74] : memref<256x1xf32, #tpu.memory_space<vmem>>, vector<8x1xf32>
    %256 = vector.extract_strided_slice %169 {offsets = [14, 0], sizes = [1, 256], strides = [1, 1]} : vector<32x256xf32> to vector<1x256xf32>
    %257 = vector.broadcast %255 : vector<8x1xf32> to vector<8x256xf32>
    %258 = vector.broadcast %256 : vector<1x256xf32> to vector<8x256xf32>
    %259 = arith.mulf %257, %258 : vector<8x256xf32>
    %260 = arith.addf %254, %259 : vector<8x256xf32>
    %c120 = arith.constant 120 : index
    %c0_75 = arith.constant 0 : index
    %261 = vector.load %arg13[%c120, %c0_75] : memref<256x1xf32, #tpu.memory_space<vmem>>, vector<8x1xf32>
    %262 = vector.extract_strided_slice %169 {offsets = [15, 0], sizes = [1, 256], strides = [1, 1]} : vector<32x256xf32> to vector<1x256xf32>
    %263 = vector.broadcast %261 : vector<8x1xf32> to vector<8x256xf32>
    %264 = vector.broadcast %262 : vector<1x256xf32> to vector<8x256xf32>
    %265 = arith.mulf %263, %264 : vector<8x256xf32>
    %266 = arith.addf %260, %265 : vector<8x256xf32>
    %c128_76 = arith.constant 128 : index
    %c0_77 = arith.constant 0 : index
    %267 = vector.load %arg13[%c128_76, %c0_77] : memref<256x1xf32, #tpu.memory_space<vmem>>, vector<8x1xf32>
    %268 = vector.extract_strided_slice %169 {offsets = [16, 0], sizes = [1, 256], strides = [1, 1]} : vector<32x256xf32> to vector<1x256xf32>
    %269 = vector.broadcast %267 : vector<8x1xf32> to vector<8x256xf32>
    %270 = vector.broadcast %268 : vector<1x256xf32> to vector<8x256xf32>
    %271 = arith.mulf %269, %270 : vector<8x256xf32>
    %272 = arith.addf %266, %271 : vector<8x256xf32>
    %c136 = arith.constant 136 : index
    %c0_78 = arith.constant 0 : index
    %273 = vector.load %arg13[%c136, %c0_78] : memref<256x1xf32, #tpu.memory_space<vmem>>, vector<8x1xf32>
    %274 = vector.extract_strided_slice %169 {offsets = [17, 0], sizes = [1, 256], strides = [1, 1]} : vector<32x256xf32> to vector<1x256xf32>
    %275 = vector.broadcast %273 : vector<8x1xf32> to vector<8x256xf32>
    %276 = vector.broadcast %274 : vector<1x256xf32> to vector<8x256xf32>
    %277 = arith.mulf %275, %276 : vector<8x256xf32>
    %278 = arith.addf %272, %277 : vector<8x256xf32>
    %c144 = arith.constant 144 : index
    %c0_79 = arith.constant 0 : index
    %279 = vector.load %arg13[%c144, %c0_79] : memref<256x1xf32, #tpu.memory_space<vmem>>, vector<8x1xf32>
    %280 = vector.extract_strided_slice %169 {offsets = [18, 0], sizes = [1, 256], strides = [1, 1]} : vector<32x256xf32> to vector<1x256xf32>
    %281 = vector.broadcast %279 : vector<8x1xf32> to vector<8x256xf32>
    %282 = vector.broadcast %280 : vector<1x256xf32> to vector<8x256xf32>
    %283 = arith.mulf %281, %282 : vector<8x256xf32>
    %284 = arith.addf %278, %283 : vector<8x256xf32>
    %c152 = arith.constant 152 : index
    %c0_80 = arith.constant 0 : index
    %285 = vector.load %arg13[%c152, %c0_80] : memref<256x1xf32, #tpu.memory_space<vmem>>, vector<8x1xf32>
    %286 = vector.extract_strided_slice %169 {offsets = [19, 0], sizes = [1, 256], strides = [1, 1]} : vector<32x256xf32> to vector<1x256xf32>
    %287 = vector.broadcast %285 : vector<8x1xf32> to vector<8x256xf32>
    %288 = vector.broadcast %286 : vector<1x256xf32> to vector<8x256xf32>
    %289 = arith.mulf %287, %288 : vector<8x256xf32>
    %290 = arith.addf %284, %289 : vector<8x256xf32>
    %c160_81 = arith.constant 160 : index
    %c0_82 = arith.constant 0 : index
    %291 = vector.load %arg13[%c160_81, %c0_82] : memref<256x1xf32, #tpu.memory_space<vmem>>, vector<8x1xf32>
    %292 = vector.extract_strided_slice %169 {offsets = [20, 0], sizes = [1, 256], strides = [1, 1]} : vector<32x256xf32> to vector<1x256xf32>
    %293 = vector.broadcast %291 : vector<8x1xf32> to vector<8x256xf32>
    %294 = vector.broadcast %292 : vector<1x256xf32> to vector<8x256xf32>
    %295 = arith.mulf %293, %294 : vector<8x256xf32>
    %296 = arith.addf %290, %295 : vector<8x256xf32>
    %c168 = arith.constant 168 : index
    %c0_83 = arith.constant 0 : index
    %297 = vector.load %arg13[%c168, %c0_83] : memref<256x1xf32, #tpu.memory_space<vmem>>, vector<8x1xf32>
    %298 = vector.extract_strided_slice %169 {offsets = [21, 0], sizes = [1, 256], strides = [1, 1]} : vector<32x256xf32> to vector<1x256xf32>
    %299 = vector.broadcast %297 : vector<8x1xf32> to vector<8x256xf32>
    %300 = vector.broadcast %298 : vector<1x256xf32> to vector<8x256xf32>
    %301 = arith.mulf %299, %300 : vector<8x256xf32>
    %302 = arith.addf %296, %301 : vector<8x256xf32>
    %c176 = arith.constant 176 : index
    %c0_84 = arith.constant 0 : index
    %303 = vector.load %arg13[%c176, %c0_84] : memref<256x1xf32, #tpu.memory_space<vmem>>, vector<8x1xf32>
    %304 = vector.extract_strided_slice %169 {offsets = [22, 0], sizes = [1, 256], strides = [1, 1]} : vector<32x256xf32> to vector<1x256xf32>
    %305 = vector.broadcast %303 : vector<8x1xf32> to vector<8x256xf32>
    %306 = vector.broadcast %304 : vector<1x256xf32> to vector<8x256xf32>
    %307 = arith.mulf %305, %306 : vector<8x256xf32>
    %308 = arith.addf %302, %307 : vector<8x256xf32>
    %c184 = arith.constant 184 : index
    %c0_85 = arith.constant 0 : index
    %309 = vector.load %arg13[%c184, %c0_85] : memref<256x1xf32, #tpu.memory_space<vmem>>, vector<8x1xf32>
    %310 = vector.extract_strided_slice %169 {offsets = [23, 0], sizes = [1, 256], strides = [1, 1]} : vector<32x256xf32> to vector<1x256xf32>
    %311 = vector.broadcast %309 : vector<8x1xf32> to vector<8x256xf32>
    %312 = vector.broadcast %310 : vector<1x256xf32> to vector<8x256xf32>
    %313 = arith.mulf %311, %312 : vector<8x256xf32>
    %314 = arith.addf %308, %313 : vector<8x256xf32>
    %c192_86 = arith.constant 192 : index
    %c0_87 = arith.constant 0 : index
    %315 = vector.load %arg13[%c192_86, %c0_87] : memref<256x1xf32, #tpu.memory_space<vmem>>, vector<8x1xf32>
    %316 = vector.extract_strided_slice %169 {offsets = [24, 0], sizes = [1, 256], strides = [1, 1]} : vector<32x256xf32> to vector<1x256xf32>
    %317 = vector.broadcast %315 : vector<8x1xf32> to vector<8x256xf32>
    %318 = vector.broadcast %316 : vector<1x256xf32> to vector<8x256xf32>
    %319 = arith.mulf %317, %318 : vector<8x256xf32>
    %320 = arith.addf %314, %319 : vector<8x256xf32>
    %c200 = arith.constant 200 : index
    %c0_88 = arith.constant 0 : index
    %321 = vector.load %arg13[%c200, %c0_88] : memref<256x1xf32, #tpu.memory_space<vmem>>, vector<8x1xf32>
    %322 = vector.extract_strided_slice %169 {offsets = [25, 0], sizes = [1, 256], strides = [1, 1]} : vector<32x256xf32> to vector<1x256xf32>
    %323 = vector.broadcast %321 : vector<8x1xf32> to vector<8x256xf32>
    %324 = vector.broadcast %322 : vector<1x256xf32> to vector<8x256xf32>
    %325 = arith.mulf %323, %324 : vector<8x256xf32>
    %326 = arith.addf %320, %325 : vector<8x256xf32>
    %c208 = arith.constant 208 : index
    %c0_89 = arith.constant 0 : index
    %327 = vector.load %arg13[%c208, %c0_89] : memref<256x1xf32, #tpu.memory_space<vmem>>, vector<8x1xf32>
    %328 = vector.extract_strided_slice %169 {offsets = [26, 0], sizes = [1, 256], strides = [1, 1]} : vector<32x256xf32> to vector<1x256xf32>
    %329 = vector.broadcast %327 : vector<8x1xf32> to vector<8x256xf32>
    %330 = vector.broadcast %328 : vector<1x256xf32> to vector<8x256xf32>
    %331 = arith.mulf %329, %330 : vector<8x256xf32>
    %332 = arith.addf %326, %331 : vector<8x256xf32>
    %c216 = arith.constant 216 : index
    %c0_90 = arith.constant 0 : index
    %333 = vector.load %arg13[%c216, %c0_90] : memref<256x1xf32, #tpu.memory_space<vmem>>, vector<8x1xf32>
    %334 = vector.extract_strided_slice %169 {offsets = [27, 0], sizes = [1, 256], strides = [1, 1]} : vector<32x256xf32> to vector<1x256xf32>
    %335 = vector.broadcast %333 : vector<8x1xf32> to vector<8x256xf32>
    %336 = vector.broadcast %334 : vector<1x256xf32> to vector<8x256xf32>
    %337 = arith.mulf %335, %336 : vector<8x256xf32>
    %338 = arith.addf %332, %337 : vector<8x256xf32>
    %c224_91 = arith.constant 224 : index
    %c0_92 = arith.constant 0 : index
    %339 = vector.load %arg13[%c224_91, %c0_92] : memref<256x1xf32, #tpu.memory_space<vmem>>, vector<8x1xf32>
    %340 = vector.extract_strided_slice %169 {offsets = [28, 0], sizes = [1, 256], strides = [1, 1]} : vector<32x256xf32> to vector<1x256xf32>
    %341 = vector.broadcast %339 : vector<8x1xf32> to vector<8x256xf32>
    %342 = vector.broadcast %340 : vector<1x256xf32> to vector<8x256xf32>
    %343 = arith.mulf %341, %342 : vector<8x256xf32>
    %344 = arith.addf %338, %343 : vector<8x256xf32>
    %c232 = arith.constant 232 : index
    %c0_93 = arith.constant 0 : index
    %345 = vector.load %arg13[%c232, %c0_93] : memref<256x1xf32, #tpu.memory_space<vmem>>, vector<8x1xf32>
    %346 = vector.extract_strided_slice %169 {offsets = [29, 0], sizes = [1, 256], strides = [1, 1]} : vector<32x256xf32> to vector<1x256xf32>
    %347 = vector.broadcast %345 : vector<8x1xf32> to vector<8x256xf32>
    %348 = vector.broadcast %346 : vector<1x256xf32> to vector<8x256xf32>
    %349 = arith.mulf %347, %348 : vector<8x256xf32>
    %350 = arith.addf %344, %349 : vector<8x256xf32>
    %c240 = arith.constant 240 : index
    %c0_94 = arith.constant 0 : index
    %351 = vector.load %arg13[%c240, %c0_94] : memref<256x1xf32, #tpu.memory_space<vmem>>, vector<8x1xf32>
    %352 = vector.extract_strided_slice %169 {offsets = [30, 0], sizes = [1, 256], strides = [1, 1]} : vector<32x256xf32> to vector<1x256xf32>
    %353 = vector.broadcast %351 : vector<8x1xf32> to vector<8x256xf32>
    %354 = vector.broadcast %352 : vector<1x256xf32> to vector<8x256xf32>
    %355 = arith.mulf %353, %354 : vector<8x256xf32>
    %356 = arith.addf %350, %355 : vector<8x256xf32>
    %c248 = arith.constant 248 : index
    %c0_95 = arith.constant 0 : index
    %357 = vector.load %arg13[%c248, %c0_95] : memref<256x1xf32, #tpu.memory_space<vmem>>, vector<8x1xf32>
    %358 = vector.extract_strided_slice %169 {offsets = [31, 0], sizes = [1, 256], strides = [1, 1]} : vector<32x256xf32> to vector<1x256xf32>
    %359 = vector.broadcast %357 : vector<8x1xf32> to vector<8x256xf32>
    %360 = vector.broadcast %358 : vector<1x256xf32> to vector<8x256xf32>
    %361 = arith.mulf %359, %360 : vector<8x256xf32>
    %362 = arith.addf %356, %361 : vector<8x256xf32>
    %c0_96 = arith.constant 0 : index
    %c0_97 = arith.constant 0 : index
    %363 = vector.load %arg14[%c0_96, %c0_97] : memref<8x1xf32, #tpu.memory_space<vmem>>, vector<8x1xf32>
    %364 = vector.broadcast %363 : vector<8x1xf32> to vector<8x256xf32>
    %365 = arith.mulf %362, %364 : vector<8x256xf32>
    %c0_98 = arith.constant 0 : index
    %c0_99 = arith.constant 0 : index
    %366 = vector.load %arg15[%c0_98, %c0_99] : memref<8x1xf32, #tpu.memory_space<vmem>>, vector<8x1xf32>
    %367 = vector.broadcast %366 : vector<8x1xf32> to vector<8x256xf32>
    %368 = arith.addf %365, %367 : vector<8x256xf32>
    %369 = arith.addf %368, %1 : vector<8x256xf32>
    %c0_100 = arith.constant 0 : index
    %c0_101 = arith.constant 0 : index
    %c0_102 = arith.constant 0 : index
    %370 = vector.load %arg16[%c0_100, %c0_101, %c0_102] : memref<1x8x256xf32, #tpu.memory_space<vmem>>, vector<1x8x256xf32>
    %371 = vector.shape_cast %370 : vector<1x8x256xf32> to vector<8x256xf32>
    %372 = vector.shape_cast %369 : vector<8x256xf32> to vector<1x8x256xf32>
    tpu.vector_store %arg16[%c0_100, %c0_101, %c0_102], %372 {strides = array<i32>} : memref<1x8x256xf32, #tpu.memory_space<vmem>>, vector<1x8x256xf32>,
    return
  }
  func.func @transform_0(%arg0: i32) -> (i32, i32, i32) {
    %c0_i32 = arith.constant 0 : i32
    %c0_i32_0 = arith.constant 0 : i32
    %c0_i32_1 = arith.constant 0 : i32
    return %arg0, %c0_i32, %c0_i32_0 : i32, i32, i32
  }
  func.func @transform_1(%arg0: i32) -> (i32, i32) {
    %c0_i32 = arith.constant 0 : i32
    %c0_i32_0 = arith.constant 0 : i32
    %c0_i32_1 = arith.constant 0 : i32
    return %c0_i32, %c0_i32_0 : i32, i32
  }
  func.func @transform_2(%arg0: i32) -> (i32, i32) {
    %c0_i32 = arith.constant 0 : i32
    %c0_i32_0 = arith.constant 0 : i32
    %c0_i32_1 = arith.constant 0 : i32
    return %c0_i32, %c0_i32_0 : i32, i32
  }
  func.func @transform_3(%arg0: i32) -> (i32, i32) {
    %c0_i32 = arith.constant 0 : i32
    %c0_i32_0 = arith.constant 0 : i32
    %c0_i32_1 = arith.constant 0 : i32
    return %c0_i32, %c0_i32_0 : i32, i32
  }
  func.func @transform_4(%arg0: i32) -> (i32, i32) {
    %c0_i32 = arith.constant 0 : i32
    %c0_i32_0 = arith.constant 0 : i32
    %c0_i32_1 = arith.constant 0 : i32
    return %c0_i32, %c0_i32_0 : i32, i32
  }
  func.func @transform_5(%arg0: i32) -> (i32, i32) {
    %c0_i32 = arith.constant 0 : i32
    %c0_i32_0 = arith.constant 0 : i32
    %c0_i32_1 = arith.constant 0 : i32
    return %c0_i32, %c0_i32_0 : i32, i32
  }
  func.func @transform_6(%arg0: i32) -> (i32, i32) {
    %c0_i32 = arith.constant 0 : i32
    %c0_i32_0 = arith.constant 0 : i32
    %c0_i32_1 = arith.constant 0 : i32
    return %c0_i32, %c0_i32_0 : i32, i32
  }
  func.func @transform_7(%arg0: i32) -> (i32, i32) {
    %c0_i32 = arith.constant 0 : i32
    %c0_i32_0 = arith.constant 0 : i32
    %c0_i32_1 = arith.constant 0 : i32
    return %c0_i32, %c0_i32_0 : i32, i32
  }
  func.func @transform_8(%arg0: i32) -> (i32, i32) {
    %c0_i32 = arith.constant 0 : i32
    %c0_i32_0 = arith.constant 0 : i32
    %c0_i32_1 = arith.constant 0 : i32
    return %c0_i32, %c0_i32_0 : i32, i32
  }
  func.func @transform_9(%arg0: i32) -> (i32, i32) {
    %c0_i32 = arith.constant 0 : i32
    %c0_i32_0 = arith.constant 0 : i32
    %c0_i32_1 = arith.constant 0 : i32
    return %c0_i32, %c0_i32_0 : i32, i32
  }
  func.func @transform_10(%arg0: i32) -> (i32, i32) {
    %c0_i32 = arith.constant 0 : i32
    %c0_i32_0 = arith.constant 0 : i32
    %c0_i32_1 = arith.constant 0 : i32
    return %c0_i32, %c0_i32_0 : i32, i32
  }
  func.func @transform_11(%arg0: i32) -> (i32, i32) {
    %c0_i32 = arith.constant 0 : i32
    %c0_i32_0 = arith.constant 0 : i32
    %c0_i32_1 = arith.constant 0 : i32
    return %c0_i32, %c0_i32_0 : i32, i32
  }
  func.func @transform_12(%arg0: i32) -> (i32, i32) {
    %c0_i32 = arith.constant 0 : i32
    %c0_i32_0 = arith.constant 0 : i32
    %c0_i32_1 = arith.constant 0 : i32
    return %c0_i32, %c0_i32_0 : i32, i32
  }
  func.func @transform_13(%arg0: i32) -> (i32, i32) {
    %c0_i32 = arith.constant 0 : i32
    %c0_i32_0 = arith.constant 0 : i32
    %c0_i32_1 = arith.constant 0 : i32
    return %c0_i32, %c0_i32_0 : i32, i32
  }
  func.func @transform_14(%arg0: i32) -> (i32, i32) {
    %c0_i32 = arith.constant 0 : i32
    %c0_i32_0 = arith.constant 0 : i32
    %c0_i32_1 = arith.constant 0 : i32
    return %c0_i32, %c0_i32_0 : i32, i32
  }
  func.func @transform_15(%arg0: i32) -> (i32, i32, i32) {
    %c0_i32 = arith.constant 0 : i32
    %c0_i32_0 = arith.constant 0 : i32
    %c0_i32_1 = arith.constant 0 : i32
    return %arg0, %c0_i32, %c0_i32_0 : i32, i32, i32
  }
}

</mosaic_0001>

<llo_original>
// kernel: tpu_custom_call.1
$region0: #{tpu_custom_call.1}
  #allocation0 [shape = 'u32[]', space=smem, size = 0x4, offset = 0x4, fixed_abs, tag = 'smem constant byte address 0x4 - core index']
  #allocation1 [shape = 'u32[72,128]{1,0:T(1,128)}', space=vmem, size = 0x9000, scoped, tag = 'internal scratch']
  %s0 = inlined_call_operand.vmem [shape: f32[2,8,256], index: 0, kind: input, shape index: {}]
  %s1 = inlined_call_operand.vmem [shape: f32[9,256], index: 1, kind: input, shape index: {}]
  %s2 = inlined_call_operand.vmem [shape: f32[256,1], index: 2, kind: input, shape index: {}]
  %s3 = inlined_call_operand.vmem [shape: f32[32,1], index: 3, kind: input, shape index: {}]
  %s4 = inlined_call_operand.vmem [shape: f32[32,1], index: 4, kind: input, shape index: {}]
  %s5 = inlined_call_operand.vmem [shape: f32[288,1], index: 5, kind: input, shape index: {}]
  %s6 = inlined_call_operand.vmem [shape: f32[32,1], index: 6, kind: input, shape index: {}]
  %s7 = inlined_call_operand.vmem [shape: f32[32,1], index: 7, kind: input, shape index: {}]
  %s8 = inlined_call_operand.vmem [shape: f32[2,32], index: 8, kind: input, shape index: {}]
  %s9 = inlined_call_operand.vmem [shape: f32[2,1], index: 9, kind: input, shape index: {}]
  %s10 = inlined_call_operand.vmem [shape: f32[32,2], index: 10, kind: input, shape index: {}]
  %s11 = inlined_call_operand.vmem [shape: f32[32,1], index: 11, kind: input, shape index: {}]
  %s12 = inlined_call_operand.vmem [shape: f32[256,1], index: 12, kind: input, shape index: {}]
  %s13 = inlined_call_operand.vmem [shape: f32[8,1], index: 13, kind: input, shape index: {}]
  %s14 = inlined_call_operand.vmem [shape: f32[8,1], index: 14, kind: input, shape index: {}]
  %s15 = inlined_call_operand.hbm [shape: f32[2,8,256], index: 15, kind: output, shape index: {}]
  %s16 = sld [smem:[#allocation0]]
  $region93: #{tpu_custom_call.1} parent=0
    _
  %s18 = ssub.s32 1, %s16
  %s19 = scalar_select 0, %s18, %s16
  $region1: #{tpu_custom_call.1} parent=0
    #allocation2 [shape = 'u8[16384]{0}', space=vmem, size = 0x4000, scoped, tag = 'output window, operand 0']
    #allocation3 [shape = 's32[2]{0}', space=sflag, size = 0x8, scoped, tag = 'scoped memory for tpu_custom_call.1']
    %20 = vsyncpa [#allocation3], 0
    %s21 = scalar_lea.sflag [#allocation3], 1
    %22 = vsyncpa %s21, 0
    loop: start=0, step=1, limit=4
    $region2: #{tpu_custom_call.1} parent=1 // loop_pre_header
      _
    $region3: #{tpu_custom_call.1} parent=1 // loop_header
      %s24 = sphi 0, %s28
      %p25 = scmp.ge.s32.totalorder %s24, 4
      %s34 = sphi 0, %s36
      %s37 = sphi 0, %s34
      %s38 = sphi 0, %s37
      %s54 = sphi 0, %s38
      %s58 = sphi 0, %s58
      %s60 = sphi 0, %s58
      %s61 = sphi 0, %s60
      %s75 = sphi 0, %s61
      %s79 = sphi 0, %s79
      %s81 = sphi 0, %s79
      %s82 = sphi 0, %s81
      %s96 = sphi 0, %s82
      %s100 = sphi 0, %s100
      %s102 = sphi 0, %s100
      %s103 = sphi 0, %s102
      %s117 = sphi 0, %s103
      %s121 = sphi 0, %s121
      %s123 = sphi 0, %s121
      %s124 = sphi 0, %s123
      %s138 = sphi 0, %s124
      %s142 = sphi 0, %s142
      %s144 = sphi 0, %s142
      %s145 = sphi 0, %s144
      %s159 = sphi 0, %s145
      %s163 = sphi 0, %s163
      %s165 = sphi 0, %s163
      %s166 = sphi 0, %s165
      %s180 = sphi 0, %s166
      %s184 = sphi 0, %s184
      %s186 = sphi 0, %s184
      %s187 = sphi 0, %s186
      %s201 = sphi 0, %s187
      %s205 = sphi 0, %s205
      %s207 = sphi 0, %s205
      %s208 = sphi 0, %s207
      %s222 = sphi 0, %s208
      %s226 = sphi 0, %s226
      %s228 = sphi 0, %s226
      %s229 = sphi 0, %s228
      %s243 = sphi 0, %s229
      %s247 = sphi 0, %s247
      %s249 = sphi 0, %s247
      %s250 = sphi 0, %s249
      %s264 = sphi 0, %s250
      %s268 = sphi 0, %s268
      %s270 = sphi 0, %s268
      %s271 = sphi 0, %s270
      %s285 = sphi 0, %s271
      %s289 = sphi 0, %s289
      %s291 = sphi 0, %s289
      %s292 = sphi 0, %s291
      %s306 = sphi 0, %s292
      %s310 = sphi 0, %s310
      %s312 = sphi 0, %s310
      %s313 = sphi 0, %s312
      %s327 = sphi 0, %s313
      %s331 = sphi 0, %s331
      %s333 = sphi 0, %s331
      %s334 = sphi 0, %s333
      %s348 = sphi 0, %s334
      %s354 = sphi 0, %s356
      %s357 = sphi 0, %s354
      %s358 = sphi 0, %s357
      %s374 = sphi 0, %s358
    $region4: #{tpu_custom_call.1} parent=1 // loop_header_branch
      %27 = sbr.rel (%p25) target = $region8
    $region5: #{tpu_custom_call.1} parent=1 // loop_body
      %s29 = ssub.s32 %s24, 1
      %s30 = ssub.s32 %s24, 2
      %s31 = sadd.s32 %s24, 1
      %s32 = ssub.s32 %s24, %s31
      %p33 = scmp.eq.s32.totalorder %s32, 0
      %s35 = sadd.s32 %s34, 1
      %s36 = scalar_select %p33, %s34, %s35
      %p39 = pneg %p33
      %p40 = scmp.eq.s32.totalorder %s24, 1
      %p41 = por %p39, %p40
      %p42 = scmp.ne.s32.totalorder %s34, %s37
      %p43 = scmp.eq.s32.totalorder %s24, 0
      %p44 = por %p42, %p43
      %p45 = scmp.ne.s32.totalorder %s34, %s37
      %p46 = scmp.eq.s32.totalorder %s29, 1
      %p47 = por %p45, %p46
      %p48 = scmp.ne.s32.totalorder %s37, %s38
      %p49 = scmp.eq.s32.totalorder %s29, 0
      %p50 = por %p48, %p49
      %p51 = scmp.ne.s32.totalorder %s37, %s38
      %p52 = scmp.eq.s32.totalorder %s30, 1
      %p53 = por %p51, %p52
      %p55 = scmp.ne.s32.totalorder %s38, %s54
      %p56 = scmp.eq.s32.totalorder %s30, 0
      %p57 = por %p55, %p56
      %s59 = sadd.s32 %s58, 1
      %p62 = scmp.eq.s32.totalorder %s24, 1
      %p63 = scmp.ne.s32.totalorder %s58, %s60
      %p64 = scmp.eq.s32.totalorder %s24, 0
      %p65 = por %p63, %p64
      %p66 = scmp.ne.s32.totalorder %s58, %s60
      %p67 = scmp.eq.s32.totalorder %s29, 1
      %p68 = por %p66, %p67
      %p69 = scmp.ne.s32.totalorder %s60, %s61
      %p70 = scmp.eq.s32.totalorder %s29, 0
      %p71 = por %p69, %p70
      %p72 = scmp.ne.s32.totalorder %s60, %s61
      %p73 = scmp.eq.s32.totalorder %s30, 1
      %p74 = por %p72, %p73
      %p76 = scmp.ne.s32.totalorder %s61, %s75
      %p77 = scmp.eq.s32.totalorder %s30, 0
      %p78 = por %p76, %p77
      %s80 = sadd.s32 %s79, 1
      %p83 = scmp.eq.s32.totalorder %s24, 1
      %p84 = scmp.ne.s32.totalorder %s79, %s81
      %p85 = scmp.eq.s32.totalorder %s24, 0
      %p86 = por %p84, %p85
      %p87 = scmp.ne.s32.totalorder %s79, %s81
      %p88 = scmp.eq.s32.totalorder %s29, 1
      %p89 = por %p87, %p88
      %p90 = scmp.ne.s32.totalorder %s81, %s82
      %p91 = scmp.eq.s32.totalorder %s29, 0
      %p92 = por %p90, %p91
      %p93 = scmp.ne.s32.totalorder %s81, %s82
      %p94 = scmp.eq.s32.totalorder %s30, 1
      %p95 = por %p93, %p94
      %p97 = scmp.ne.s32.totalorder %s82, %s96
      %p98 = scmp.eq.s32.totalorder %s30, 0
      %p99 = por %p97, %p98
      %s101 = sadd.s32 %s100, 1
      %p104 = scmp.eq.s32.totalorder %s24, 1
      %p105 = scmp.ne.s32.totalorder %s100, %s102
      %p106 = scmp.eq.s32.totalorder %s24, 0
      %p107 = por %p105, %p106
      %p108 = scmp.ne.s32.totalorder %s100, %s102
      %p109 = scmp.eq.s32.totalorder %s29, 1
      %p110 = por %p108, %p109
      %p111 = scmp.ne.s32.totalorder %s102, %s103
      %p112 = scmp.eq.s32.totalorder %s29, 0
      %p113 = por %p111, %p112
      %p114 = scmp.ne.s32.totalorder %s102, %s103
      %p115 = scmp.eq.s32.totalorder %s30, 1
      %p116 = por %p114, %p115
      %p118 = scmp.ne.s32.totalorder %s103, %s117
      %p119 = scmp.eq.s32.totalorder %s30, 0
      %p120 = por %p118, %p119
      %s122 = sadd.s32 %s121, 1
      %p125 = scmp.eq.s32.totalorder %s24, 1
      %p126 = scmp.ne.s32.totalorder %s121, %s123
      %p127 = scmp.eq.s32.totalorder %s24, 0
      %p128 = por %p126, %p127
      %p129 = scmp.ne.s32.totalorder %s121, %s123
      %p130 = scmp.eq.s32.totalorder %s29, 1
      %p131 = por %p129, %p130
      %p132 = scmp.ne.s32.totalorder %s123, %s124
      %p133 = scmp.eq.s32.totalorder %s29, 0
      %p134 = por %p132, %p133
      %p135 = scmp.ne.s32.totalorder %s123, %s124
      %p136 = scmp.eq.s32.totalorder %s30, 1
      %p137 = por %p135, %p136
      %p139 = scmp.ne.s32.totalorder %s124, %s138
      %p140 = scmp.eq.s32.totalorder %s30, 0
      %p141 = por %p139, %p140
      %s143 = sadd.s32 %s142, 1
      %p146 = scmp.eq.s32.totalorder %s24, 1
      %p147 = scmp.ne.s32.totalorder %s142, %s144
      %p148 = scmp.eq.s32.totalorder %s24, 0
      %p149 = por %p147, %p148
      %p150 = scmp.ne.s32.totalorder %s142, %s144
      %p151 = scmp.eq.s32.totalorder %s29, 1
      %p152 = por %p150, %p151
      %p153 = scmp.ne.s32.totalorder %s144, %s145
      %p154 = scmp.eq.s32.totalorder %s29, 0
      %p155 = por %p153, %p154
      %p156 = scmp.ne.s32.totalorder %s144, %s145
      %p157 = scmp.eq.s32.totalorder %s30, 1
      %p158 = por %p156, %p157
      %p160 = scmp.ne.s32.totalorder %s145, %s159
      %p161 = scmp.eq.s32.totalorder %s30, 0
      %p162 = por %p160, %p161
      %s164 = sadd.s32 %s163, 1
      %p167 = scmp.eq.s32.totalorder %s24, 1
      %p168 = scmp.ne.s32.totalorder %s163, %s165
      %p169 = scmp.eq.s32.totalorder %s24, 0
      %p170 = por %p168, %p169
      %p171 = scmp.ne.s32.totalorder %s163, %s165
      %p172 = scmp.eq.s32.totalorder %s29, 1
      %p173 = por %p171, %p172
      %p174 = scmp.ne.s32.totalorder %s165, %s166
      %p175 = scmp.eq.s32.totalorder %s29, 0
      %p176 = por %p174, %p175
      %p177 = scmp.ne.s32.totalorder %s165, %s166
      %p178 = scmp.eq.s32.totalorder %s30, 1
      %p179 = por %p177, %p178
      %p181 = scmp.ne.s32.totalorder %s166, %s180
      %p182 = scmp.eq.s32.totalorder %s30, 0
      %p183 = por %p181, %p182
      %s185 = sadd.s32 %s184, 1
      %p188 = scmp.eq.s32.totalorder %s24, 1
      %p189 = scmp.ne.s32.totalorder %s184, %s186
      %p190 = scmp.eq.s32.totalorder %s24, 0
      %p191 = por %p189, %p190
      %p192 = scmp.ne.s32.totalorder %s184, %s186
      %p193 = scmp.eq.s32.totalorder %s29, 1
      %p194 = por %p192, %p193
      %p195 = scmp.ne.s32.totalorder %s186, %s187
      %p196 = scmp.eq.s32.totalorder %s29, 0
      %p197 = por %p195, %p196
      %p198 = scmp.ne.s32.totalorder %s186, %s187
      %p199 = scmp.eq.s32.totalorder %s30, 1
      %p200 = por %p198, %p199
      %p202 = scmp.ne.s32.totalorder %s187, %s201
      %p203 = scmp.eq.s32.totalorder %s30, 0
      %p204 = por %p202, %p203
      %s206 = sadd.s32 %s205, 1
      %p209 = scmp.eq.s32.totalorder %s24, 1
      %p210 = scmp.ne.s32.totalorder %s205, %s207
      %p211 = scmp.eq.s32.totalorder %s24, 0
      %p212 = por %p210, %p211
      %p213 = scmp.ne.s32.totalorder %s205, %s207
      %p214 = scmp.eq.s32.totalorder %s29, 1
      %p215 = por %p213, %p214
      %p216 = scmp.ne.s32.totalorder %s207, %s208
      %p217 = scmp.eq.s32.totalorder %s29, 0
      %p218 = por %p216, %p217
      %p219 = scmp.ne.s32.totalorder %s207, %s208
      %p220 = scmp.eq.s32.totalorder %s30, 1
      %p221 = por %p219, %p220
      %p223 = scmp.ne.s32.totalorder %s208, %s222
      %p224 = scmp.eq.s32.totalorder %s30, 0
      %p225 = por %p223, %p224
      %s227 = sadd.s32 %s226, 1
      %p230 = scmp.eq.s32.totalorder %s24, 1
      %p231 = scmp.ne.s32.totalorder %s226, %s228
      %p232 = scmp.eq.s32.totalorder %s24, 0
      %p233 = por %p231, %p232
      %p234 = scmp.ne.s32.totalorder %s226, %s228
      %p235 = scmp.eq.s32.totalorder %s29, 1
      %p236 = por %p234, %p235
      %p237 = scmp.ne.s32.totalorder %s228, %s229
      %p238 = scmp.eq.s32.totalorder %s29, 0
      %p239 = por %p237, %p238
      %p240 = scmp.ne.s32.totalorder %s228, %s229
      %p241 = scmp.eq.s32.totalorder %s30, 1
      %p242 = por %p240, %p241
      %p244 = scmp.ne.s32.totalorder %s229, %s243
      %p245 = scmp.eq.s32.totalorder %s30, 0
      %p246 = por %p244, %p245
      %s248 = sadd.s32 %s247, 1
      %p251 = scmp.eq.s32.totalorder %s24, 1
      %p252 = scmp.ne.s32.totalorder %s247, %s249
      %p253 = scmp.eq.s32.totalorder %s24, 0
      %p254 = por %p252, %p253
      %p255 = scmp.ne.s32.totalorder %s247, %s249
      %p256 = scmp.eq.s32.totalorder %s29, 1
      %p257 = por %p255, %p256
      %p258 = scmp.ne.s32.totalorder %s249, %s250
      %p259 = scmp.eq.s32.totalorder %s29, 0
      %p260 = por %p258, %p259
      %p261 = scmp.ne.s32.totalorder %s249, %s250
      %p262 = scmp.eq.s32.totalorder %s30, 1
      %p263 = por %p261, %p262
      %p265 = scmp.ne.s32.totalorder %s250, %s264
      %p266 = scmp.eq.s32.totalorder %s30, 0
      %p267 = por %p265, %p266
      %s269 = sadd.s32 %s268, 1
      %p272 = scmp.eq.s32.totalorder %s24, 1
      %p273 = scmp.ne.s32.totalorder %s268, %s270
      %p274 = scmp.eq.s32.totalorder %s24, 0
      %p275 = por %p273, %p274
      %p276 = scmp.ne.s32.totalorder %s268, %s270
      %p277 = scmp.eq.s32.totalorder %s29, 1
      %p278 = por %p276, %p277
      %p279 = scmp.ne.s32.totalorder %s270, %s271
      %p280 = scmp.eq.s32.totalorder %s29, 0
      %p281 = por %p279, %p280
      %p282 = scmp.ne.s32.totalorder %s270, %s271
      %p283 = scmp.eq.s32.totalorder %s30, 1
      %p284 = por %p282, %p283
      %p286 = scmp.ne.s32.totalorder %s271, %s285
      %p287 = scmp.eq.s32.totalorder %s30, 0
      %p288 = por %p286, %p287
      %s290 = sadd.s32 %s289, 1
      %p293 = scmp.eq.s32.totalorder %s24, 1
      %p294 = scmp.ne.s32.totalorder %s289, %s291
      %p295 = scmp.eq.s32.totalorder %s24, 0
      %p296 = por %p294, %p295
      %p297 = scmp.ne.s32.totalorder %s289, %s291
      %p298 = scmp.eq.s32.totalorder %s29, 1
      %p299 = por %p297, %p298
      %p300 = scmp.ne.s32.totalorder %s291, %s292
      %p301 = scmp.eq.s32.totalorder %s29, 0
      %p302 = por %p300, %p301
      %p303 = scmp.ne.s32.totalorder %s291, %s292
      %p304 = scmp.eq.s32.totalorder %s30, 1
      %p305 = por %p303, %p304
      %p307 = scmp.ne.s32.totalorder %s292, %s306
      %p308 = scmp.eq.s32.totalorder %s30, 0
      %p309 = por %p307, %p308
      %s311 = sadd.s32 %s310, 1
      %p314 = scmp.eq.s32.totalorder %s24, 1
      %p315 = scmp.ne.s32.totalorder %s310, %s312
      %p316 = scmp.eq.s32.totalorder %s24, 0
      %p317 = por %p315, %p316
      %p318 = scmp.ne.s32.totalorder %s310, %s312
      %p319 = scmp.eq.s32.totalorder %s29, 1
      %p320 = por %p318, %p319
      %p321 = scmp.ne.s32.totalorder %s312, %s313
      %p322 = scmp.eq.s32.totalorder %s29, 0
      %p323 = por %p321, %p322
      %p324 = scmp.ne.s32.totalorder %s312, %s313
      %p325 = scmp.eq.s32.totalorder %s30, 1
      %p326 = por %p324, %p325
      %p328 = scmp.ne.s32.totalorder %s313, %s327
      %p329 = scmp.eq.s32.totalorder %s30, 0
      %p330 = por %p328, %p329
      %s332 = sadd.s32 %s331, 1
      %p335 = scmp.eq.s32.totalorder %s24, 1
      %p336 = scmp.ne.s32.totalorder %s331, %s333
      %p337 = scmp.eq.s32.totalorder %s24, 0
      %p338 = por %p336, %p337
      %p339 = scmp.ne.s32.totalorder %s331, %s333
      %p340 = scmp.eq.s32.totalorder %s29, 1
      %p341 = por %p339, %p340
      %p342 = scmp.ne.s32.totalorder %s333, %s334
      %p343 = scmp.eq.s32.totalorder %s29, 0
      %p344 = por %p342, %p343
      %p345 = scmp.ne.s32.totalorder %s333, %s334
      %p346 = scmp.eq.s32.totalorder %s30, 1
      %p347 = por %p345, %p346
      %p349 = scmp.ne.s32.totalorder %s334, %s348
      %p350 = scmp.eq.s32.totalorder %s30, 0
      %p351 = por %p349, %p350
      %s352 = ssub.s32 %s24, %s31
      %p353 = scmp.eq.s32.totalorder %s352, 0
      %s355 = sadd.s32 %s354, 1
      %s356 = scalar_select %p353, %s354, %s355
      %p359 = pneg %p353
      %p360 = scmp.eq.s32.totalorder %s24, 1
      %p361 = por %p359, %p360
      %p362 = scmp.ne.s32.totalorder %s354, %s357
      %p363 = scmp.eq.s32.totalorder %s24, 0
      %p364 = por %p362, %p363
      %p365 = scmp.ne.s32.totalorder %s354, %s357
      %p366 = scmp.eq.s32.totalorder %s29, 1
      %p367 = por %p365, %p366
      %p368 = scmp.ne.s32.totalorder %s357, %s358
      %p369 = scmp.eq.s32.totalorder %s29, 0
      %p370 = por %p368, %p369
      %p371 = scmp.ne.s32.totalorder %s357, %s358
      %p372 = scmp.eq.s32.totalorder %s30, 1
      %p373 = por %p371, %p372
      %p375 = scmp.ne.s32.totalorder %s358, %s374
      %p376 = scmp.eq.s32.totalorder %s30, 0
      %p377 = por %p375, %p376
      %p378 = scmp.le.s32.totalorder 1, %s24
      %p379 = scmp.lt.s32.totalorder %s24, 3
      %p380 = pnand %p378, %p379
      %p381 = pneg %p380
      // Predicated region
      $region9: #{tpu_custom_call.1} parent=5 // pred_check
        _
      $region10: #{tpu_custom_call.1} parent=5 // pred_check_branch
        %383 = sbr.rel (%p380) target = $region12
      $region11: #{tpu_custom_call.1} parent=5 // pred_region
        %s384 = ssub.s32 %s24, 1
        // Predicated region
        $region13: #{tpu_custom_call.1} parent=11 // pred_check
          %p385 = pneg %p71
        $region14: #{tpu_custom_call.1} parent=11 // pred_check_branch
          %387 = sbr.rel (%p385) target = $region16
        $region15: #{tpu_custom_call.1} parent=11 // pred_region
          _
        $region16: #{tpu_custom_call.1} parent=11 // pred_fallthru
          _
        // Predicated region
        $region17: #{tpu_custom_call.1} parent=11 // pred_check
          %p388 = pneg %p92
        $region18: #{tpu_custom_call.1} parent=11 // pred_check_branch
          %390 = sbr.rel (%p388) target = $region20
        $region19: #{tpu_custom_call.1} parent=11 // pred_region
          _
        $region20: #{tpu_custom_call.1} parent=11 // pred_fallthru
          _
        // Predicated region
        $region21: #{tpu_custom_call.1} parent=11 // pred_check
          %p391 = pneg %p113
        $region22: #{tpu_custom_call.1} parent=11 // pred_check_branch
          %393 = sbr.rel (%p391) target = $region24
        $region23: #{tpu_custom_call.1} parent=11 // pred_region
          _
        $region24: #{tpu_custom_call.1} parent=11 // pred_fallthru
          _
        // Predicated region
        $region25: #{tpu_custom_call.1} parent=11 // pred_check
          %p394 = pneg %p134
        $region26: #{tpu_custom_call.1} parent=11 // pred_check_branch
          %396 = sbr.rel (%p394) target = $region28
        $region27: #{tpu_custom_call.1} parent=11 // pred_region
          _
        $region28: #{tpu_custom_call.1} parent=11 // pred_fallthru
          _
        // Predicated region
        $region29: #{tpu_custom_call.1} parent=11 // pred_check
          %p397 = pneg %p155
        $region30: #{tpu_custom_call.1} parent=11 // pred_check_branch
          %399 = sbr.rel (%p397) target = $region32
        $region31: #{tpu_custom_call.1} parent=11 // pred_region
          _
        $region32: #{tpu_custom_call.1} parent=11 // pred_fallthru
          _
        // Predicated region
        $region33: #{tpu_custom_call.1} parent=11 // pred_check
          %p400 = pneg %p176
        $region34: #{tpu_custom_call.1} parent=11 // pred_check_branch
          %402 = sbr.rel (%p400) target = $region36
        $region35: #{tpu_custom_call.1} parent=11 // pred_region
          _
        $region36: #{tpu_custom_call.1} parent=11 // pred_fallthru
          _
        // Predicated region
        $region37: #{tpu_custom_call.1} parent=11 // pred_check
          %p403 = pneg %p197
        $region38: #{tpu_custom_call.1} parent=11 // pred_check_branch
          %405 = sbr.rel (%p403) target = $region40
        $region39: #{tpu_custom_call.1} parent=11 // pred_region
          _
        $region40: #{tpu_custom_call.1} parent=11 // pred_fallthru
          _
        // Predicated region
        $region41: #{tpu_custom_call.1} parent=11 // pred_check
          %p406 = pneg %p218
        $region42: #{tpu_custom_call.1} parent=11 // pred_check_branch
          %408 = sbr.rel (%p406) target = $region44
        $region43: #{tpu_custom_call.1} parent=11 // pred_region
          _
        $region44: #{tpu_custom_call.1} parent=11 // pred_fallthru
          _
        // Predicated region
        $region45: #{tpu_custom_call.1} parent=11 // pred_check
          %p409 = pneg %p239
        $region46: #{tpu_custom_call.1} parent=11 // pred_check_branch
          %411 = sbr.rel (%p409) target = $region48
        $region47: #{tpu_custom_call.1} parent=11 // pred_region
          _
        $region48: #{tpu_custom_call.1} parent=11 // pred_fallthru
          _
        // Predicated region
        $region49: #{tpu_custom_call.1} parent=11 // pred_check
          %p412 = pneg %p260
        $region50: #{tpu_custom_call.1} parent=11 // pred_check_branch
          %414 = sbr.rel (%p412) target = $region52
        $region51: #{tpu_custom_call.1} parent=11 // pred_region
          _
        $region52: #{tpu_custom_call.1} parent=11 // pred_fallthru
          _
        // Predicated region
        $region53: #{tpu_custom_call.1} parent=11 // pred_check
          %p415 = pneg %p281
        $region54: #{tpu_custom_call.1} parent=11 // pred_check_branch
          %417 = sbr.rel (%p415) target = $region56
        $region55: #{tpu_custom_call.1} parent=11 // pred_region
          _
        $region56: #{tpu_custom_call.1} parent=11 // pred_fallthru
          _
        // Predicated region
        $region57: #{tpu_custom_call.1} parent=11 // pred_check
          %p418 = pneg %p302
        $region58: #{tpu_custom_call.1} parent=11 // pred_check_branch
          %420 = sbr.rel (%p418) target = $region60
        $region59: #{tpu_custom_call.1} parent=11 // pred_region
          _
        $region60: #{tpu_custom_call.1} parent=11 // pred_fallthru
          _
        // Predicated region
        $region61: #{tpu_custom_call.1} parent=11 // pred_check
          %p421 = pneg %p323
        $region62: #{tpu_custom_call.1} parent=11 // pred_check_branch
          %423 = sbr.rel (%p421) target = $region64
        $region63: #{tpu_custom_call.1} parent=11 // pred_region
          _
        $region64: #{tpu_custom_call.1} parent=11 // pred_fallthru
          _
        // Predicated region
        $region65: #{tpu_custom_call.1} parent=11 // pred_check
          %p424 = pneg %p344
        $region66: #{tpu_custom_call.1} parent=11 // pred_check_branch
          %426 = sbr.rel (%p424) target = $region68
        $region67: #{tpu_custom_call.1} parent=11 // pred_region
          _
        $region68: #{tpu_custom_call.1} parent=11 // pred_fallthru
          _
      $region12: #{tpu_custom_call.1} parent=5 // pred_fallthru
        _
      %p427 = scmp.lt.s32.totalorder %s24, 2
      // Predicated region
      $region69: #{tpu_custom_call.1} parent=5 // pred_check
        %p428 = pneg %p427
      $region70: #{tpu_custom_call.1} parent=5 // pred_check_branch
        %430 = sbr.rel (%p428) target = $region72
      $region71: #{tpu_custom_call.1} parent=5 // pred_region
        // Predicated region
        $region73: #{tpu_custom_call.1} parent=71 // pred_check
          %p431 = pneg %p44
        $region74: #{tpu_custom_call.1} parent=71 // pred_check_branch
          %433 = sbr.rel (%p431) target = $region76
        $region75: #{tpu_custom_call.1} parent=71 // pred_region
          %p434 = scmp.lt.s32.totalorder %s24, 1
          %s435 = scalar_select %p434, %s24, 1
          %s436 = smul.addr %s435, 2
          %s437 = smul.addr %s436, 8
          %s438 = scalar_lea.vmem %s0, %s437
        $region76: #{tpu_custom_call.1} parent=71 // pred_fallthru
          _
      $region72: #{tpu_custom_call.1} parent=5 // pred_fallthru
        _
      %p439 = scmp.le.s32.totalorder 1, %s24
      %p440 = scmp.lt.s32.totalorder %s24, 3
      %p441 = pnand %p439, %p440
      %p442 = pneg %p441
      // Predicated region
      $region77: #{tpu_custom_call.1} parent=5 // pred_check
        _
      $region78: #{tpu_custom_call.1} parent=5 // pred_check_branch
        %444 = sbr.rel (%p441) target = $region80
      $region79: #{tpu_custom_call.1} parent=5 // pred_region
        %s445 = ssub.s32 %s24, 1
        %p446 = scmp.lt.s32.totalorder %s29, 1
        %s447 = scalar_select %p446, %s29, 1
        %s448 = smul.addr %s447, 2
        %s449 = smul.addr %s448, 8
        %s450 = scalar_lea.vmem %s0, %s449
        %p451 = pneg %p50
        %p452 = pneg %p47
        %p453 = pneg %p71
        %p454 = pneg %p68
        %p455 = pneg %p92
        %p456 = pneg %p89
        %p457 = pneg %p113
        %p458 = pneg %p110
        %p459 = pneg %p134
        %p460 = pneg %p131
        %p461 = pneg %p155
        %p462 = pneg %p152
        %p463 = pneg %p176
        %p464 = pneg %p173
        %p465 = pneg %p197
        %p466 = pneg %p194
        %p467 = pneg %p218
        %p468 = pneg %p215
        %p469 = pneg %p239
        %p470 = pneg %p236
        %p471 = pneg %p260
        %p472 = pneg %p257
        %p473 = pneg %p281
        %p474 = pneg %p278
        %p475 = pneg %p302
        %p476 = pneg %p299
        %p477 = pneg %p323
        %p478 = pneg %p320
        %p479 = pneg %p344
        %p480 = pneg %p341
        %p481 = pneg %p370
        %p482 = pneg %p367
        %s483 = sand.u32 %s357, 1
        %s484 = scalar_lea.sflag [#allocation3], %s483
        %s485 = sand.u32 %s357, 1
        %s486 = smul.addr %s485, 16
        %s487 = scalar_lea.vmem [#allocation2], %s486
        %p488 = scmp.lt.s32.totalorder %s29, 1
        %s489 = scalar_select %p488, %s29, 1
        %s490 = smul.addr %s489, 2
        %s491 = smul.addr %s490, 8
        %s492 = scalar_lea.vmem %s0, %s491
        %v493 = vld [vmem:[%s492] sm:$0xff]
        %v494 = vld [vmem:[%s492 + $0x8] sm:$0xff]
        %v495 = vld [vmem:[%s2] sm:$0xff]
        %v496 = vld [vmem:[%s2 + $0x8] sm:$0xff]
        %v497 = vld [vmem:[%s2 + $0x10] sm:$0xff]
        %v498 = vld [vmem:[%s2 + $0x18] sm:$0xff]
        %500 = vset.pattern.permute.xlu0 0
        %501 = vperm.xlu0 %500, %v495
        %v502 = vpop.permute.xlu0 %501
        %505 = vset.pattern.permute.xlu0 0
        %506 = vperm.xlu0 %505, %v496
        %v507 = vpop.permute.xlu0 %506
        %510 = vset.pattern.permute.xlu0 0
        %511 = vperm.xlu0 %510, %v497
        %v512 = vpop.permute.xlu0 %511
        %515 = vset.pattern.permute.xlu0 0
        %516 = vperm.xlu0 %515, %v498
        %v517 = vpop.permute.xlu0 %516
        %v519 = vperm.slane %v493, 0
        %v520 = vperm.slane %v494, 0
        %v521 = vmul.f32 %v502, %v519
        %v522 = vmul.f32 %v502, %v520
        %v523 = vmul.f32 %v507, %v519
        %v524 = vmul.f32 %v507, %v520
        %v525 = vmul.f32 %v512, %v519
        %v526 = vmul.f32 %v512, %v520
        %v527 = vmul.f32 %v517, %v519
        %v528 = vmul.f32 %v517, %v520
        %v529 = vadd.f32 %v521, 0.0
        %v530 = vadd.f32 %v522, 0.0
        %v531 = vadd.f32 %v523, 0.0
        %v532 = vadd.f32 %v524, 0.0
        %v533 = vadd.f32 %v525, 0.0
        %v534 = vadd.f32 %v526, 0.0
        %v535 = vadd.f32 %v527, 0.0
        %v536 = vadd.f32 %v528, 0.0
        %v537 = vld [vmem:[%s2 + $0x20] sm:$0xff]
        %v538 = vld [vmem:[%s2 + $0x28] sm:$0xff]
        %v539 = vld [vmem:[%s2 + $0x30] sm:$0xff]
        %v540 = vld [vmem:[%s2 + $0x38] sm:$0xff]
        %542 = vset.pattern.permute.xlu0 0
        %543 = vperm.xlu0 %542, %v537
        %v544 = vpop.permute.xlu0 %543
        %547 = vset.pattern.permute.xlu0 0
        %548 = vperm.xlu0 %547, %v538
        %v549 = vpop.permute.xlu0 %548
        %552 = vset.pattern.permute.xlu0 0
        %553 = vperm.xlu0 %552, %v539
        %v554 = vpop.permute.xlu0 %553
        %557 = vset.pattern.permute.xlu0 0
        %558 = vperm.xlu0 %557, %v540
        %v559 = vpop.permute.xlu0 %558
        %v561 = vperm.slane %v493, 1
        %v562 = vperm.slane %v494, 1
        %v563 = vmul.f32 %v544, %v561
        %v564 = vmul.f32 %v544, %v562
        %v565 = vmul.f32 %v549, %v561
        %v566 = vmul.f32 %v549, %v562
        %v567 = vmul.f32 %v554, %v561
        %v568 = vmul.f32 %v554, %v562
        %v569 = vmul.f32 %v559, %v561
        %v570 = vmul.f32 %v559, %v562
        %v571 = vadd.f32 %v529, %v563
        %v572 = vadd.f32 %v530, %v564
        %v573 = vadd.f32 %v531, %v565
        %v574 = vadd.f32 %v532, %v566
        %v575 = vadd.f32 %v533, %v567
        %v576 = vadd.f32 %v534, %v568
        %v577 = vadd.f32 %v535, %v569
        %v578 = vadd.f32 %v536, %v570
        %v579 = vld [vmem:[%s2 + $0x40] sm:$0xff]
        %v580 = vld [vmem:[%s2 + $0x48] sm:$0xff]
        %v581 = vld [vmem:[%s2 + $0x50] sm:$0xff]
        %v582 = vld [vmem:[%s2 + $0x58] sm:$0xff]
        %584 = vset.pattern.permute.xlu0 0
        %585 = vperm.xlu0 %584, %v579
        %v586 = vpop.permute.xlu0 %585
        %589 = vset.pattern.permute.xlu0 0
        %590 = vperm.xlu0 %589, %v580
        %v591 = vpop.permute.xlu0 %590
        %594 = vset.pattern.permute.xlu0 0
        %595 = vperm.xlu0 %594, %v581
        %v596 = vpop.permute.xlu0 %595
        %599 = vset.pattern.permute.xlu0 0
        %600 = vperm.xlu0 %599, %v582
        %v601 = vpop.permute.xlu0 %600
        %v603 = vperm.slane %v493, 2
        %v604 = vperm.slane %v494, 2
        %v605 = vmul.f32 %v586, %v603
        %v606 = vmul.f32 %v586, %v604
        %v607 = vmul.f32 %v591, %v603
        %v608 = vmul.f32 %v591, %v604
        %v609 = vmul.f32 %v596, %v603
        %v610 = vmul.f32 %v596, %v604
        %v611 = vmul.f32 %v601, %v603
        %v612 = vmul.f32 %v601, %v604
        %v613 = vadd.f32 %v571, %v605
        %v614 = vadd.f32 %v572, %v606
        %v615 = vadd.f32 %v573, %v607
        %v616 = vadd.f32 %v574, %v608
        %v617 = vadd.f32 %v575, %v609
        %v618 = vadd.f32 %v576, %v610
        %v619 = vadd.f32 %v577, %v611
        %v620 = vadd.f32 %v578, %v612
        %v621 = vld [vmem:[%s2 + $0x60] sm:$0xff]
        %v622 = vld [vmem:[%s2 + $0x68] sm:$0xff]
        %v623 = vld [vmem:[%s2 + $0x70] sm:$0xff]
        %v624 = vld [vmem:[%s2 + $0x78] sm:$0xff]
        %626 = vset.pattern.permute.xlu0 0
        %627 = vperm.xlu0 %626, %v621
        %v628 = vpop.permute.xlu0 %627
        %631 = vset.pattern.permute.xlu0 0
        %632 = vperm.xlu0 %631, %v622
        %v633 = vpop.permute.xlu0 %632
        %636 = vset.pattern.permute.xlu0 0
        %637 = vperm.xlu0 %636, %v623
        %v638 = vpop.permute.xlu0 %637
        %641 = vset.pattern.permute.xlu0 0
        %642 = vperm.xlu0 %641, %v624
        %v643 = vpop.permute.xlu0 %642
        %v645 = vperm.slane %v493, 3
        %v646 = vperm.slane %v494, 3
        %v647 = vmul.f32 %v628, %v645
        %v648 = vmul.f32 %v628, %v646
        %v649 = vmul.f32 %v633, %v645
        %v650 = vmul.f32 %v633, %v646
        %v651 = vmul.f32 %v638, %v645
        %v652 = vmul.f32 %v638, %v646
        %v653 = vmul.f32 %v643, %v645
        %v654 = vmul.f32 %v643, %v646
        %v655 = vadd.f32 %v613, %v647
        %v656 = vadd.f32 %v614, %v648
        %v657 = vadd.f32 %v615, %v649
        %v658 = vadd.f32 %v616, %v650
        %v659 = vadd.f32 %v617, %v651
        %v660 = vadd.f32 %v618, %v652
        %v661 = vadd.f32 %v619, %v653
        %v662 = vadd.f32 %v620, %v654
        %v663 = vld [vmem:[%s2 + $0x80] sm:$0xff]
        %v664 = vld [vmem:[%s2 + $0x88] sm:$0xff]
        %v665 = vld [vmem:[%s2 + $0x90] sm:$0xff]
        %v666 = vld [vmem:[%s2 + $0x98] sm:$0xff]
        %668 = vset.pattern.permute.xlu0 0
        %669 = vperm.xlu0 %668, %v663
        %v670 = vpop.permute.xlu0 %669
        %673 = vset.pattern.permute.xlu0 0
        %674 = vperm.xlu0 %673, %v664
        %v675 = vpop.permute.xlu0 %674
        %678 = vset.pattern.permute.xlu0 0
        %679 = vperm.xlu0 %678, %v665
        %v680 = vpop.permute.xlu0 %679
        %683 = vset.pattern.permute.xlu0 0
        %684 = vperm.xlu0 %683, %v666
        %v685 = vpop.permute.xlu0 %684
        %v687 = vperm.slane %v493, 4
        %v688 = vperm.slane %v494, 4
        %v689 = vmul.f32 %v670, %v687
        %v690 = vmul.f32 %v670, %v688
        %v691 = vmul.f32 %v675, %v687
        %v692 = vmul.f32 %v675, %v688
        %v693 = vmul.f32 %v680, %v687
        %v694 = vmul.f32 %v680, %v688
        %v695 = vmul.f32 %v685, %v687
        %v696 = vmul.f32 %v685, %v688
        %v697 = vadd.f32 %v655, %v689
        %v698 = vadd.f32 %v656, %v690
        %v699 = vadd.f32 %v657, %v691
        %v700 = vadd.f32 %v658, %v692
        %v701 = vadd.f32 %v659, %v693
        %v702 = vadd.f32 %v660, %v694
        %v703 = vadd.f32 %v661, %v695
        %v704 = vadd.f32 %v662, %v696
        %v705 = vld [vmem:[%s2 + $0xa0] sm:$0xff]
        %v706 = vld [vmem:[%s2 + $0xa8] sm:$0xff]
        %v707 = vld [vmem:[%s2 + $0xb0] sm:$0xff]
        %v708 = vld [vmem:[%s2 + $0xb8] sm:$0xff]
        %710 = vset.pattern.permute.xlu0 0
        %711 = vperm.xlu0 %710, %v705
        %v712 = vpop.permute.xlu0 %711
        %715 = vset.pattern.permute.xlu0 0
        %716 = vperm.xlu0 %715, %v706
        %v717 = vpop.permute.xlu0 %716
        %720 = vset.pattern.permute.xlu0 0
        %721 = vperm.xlu0 %720, %v707
        %v722 = vpop.permute.xlu0 %721
        %725 = vset.pattern.permute.xlu0 0
        %726 = vperm.xlu0 %725, %v708
        %v727 = vpop.permute.xlu0 %726
        %v729 = vperm.slane %v493, 5
        %v730 = vperm.slane %v494, 5
        %v731 = vmul.f32 %v712, %v729
        %v732 = vmul.f32 %v712, %v730
        %v733 = vmul.f32 %v717, %v729
        %v734 = vmul.f32 %v717, %v730
        %v735 = vmul.f32 %v722, %v729
        %v736 = vmul.f32 %v722, %v730
        %v737 = vmul.f32 %v727, %v729
        %v738 = vmul.f32 %v727, %v730
        %v739 = vadd.f32 %v697, %v731
        %v740 = vadd.f32 %v698, %v732
        %v741 = vadd.f32 %v699, %v733
        %v742 = vadd.f32 %v700, %v734
        %v743 = vadd.f32 %v701, %v735
        %v744 = vadd.f32 %v702, %v736
        %v745 = vadd.f32 %v703, %v737
        %v746 = vadd.f32 %v704, %v738
        %v747 = vld [vmem:[%s2 + $0xc0] sm:$0xff]
        %v748 = vld [vmem:[%s2 + $0xc8] sm:$0xff]
        %v749 = vld [vmem:[%s2 + $0xd0] sm:$0xff]
        %v750 = vld [vmem:[%s2 + $0xd8] sm:$0xff]
        %752 = vset.pattern.permute.xlu0 0
        %753 = vperm.xlu0 %752, %v747
        %v754 = vpop.permute.xlu0 %753
        %757 = vset.pattern.permute.xlu0 0
        %758 = vperm.xlu0 %757, %v748
        %v759 = vpop.permute.xlu0 %758
        %762 = vset.pattern.permute.xlu0 0
        %763 = vperm.xlu0 %762, %v749
        %v764 = vpop.permute.xlu0 %763
        %767 = vset.pattern.permute.xlu0 0
        %768 = vperm.xlu0 %767, %v750
        %v769 = vpop.permute.xlu0 %768
        %v771 = vperm.slane %v493, 6
        %v772 = vperm.slane %v494, 6
        %v773 = vmul.f32 %v754, %v771
        %v774 = vmul.f32 %v754, %v772
        %v775 = vmul.f32 %v759, %v771
        %v776 = vmul.f32 %v759, %v772
        %v777 = vmul.f32 %v764, %v771
        %v778 = vmul.f32 %v764, %v772
        %v779 = vmul.f32 %v769, %v771
        %v780 = vmul.f32 %v769, %v772
        %v781 = vadd.f32 %v739, %v773
        %v782 = vadd.f32 %v740, %v774
        %v783 = vadd.f32 %v741, %v775
        %v784 = vadd.f32 %v742, %v776
        %v785 = vadd.f32 %v743, %v777
        %v786 = vadd.f32 %v744, %v778
        %v787 = vadd.f32 %v745, %v779
        %v788 = vadd.f32 %v746, %v780
        %v789 = vld [vmem:[%s2 + $0xe0] sm:$0xff]
        %v790 = vld [vmem:[%s2 + $0xe8] sm:$0xff]
        %v791 = vld [vmem:[%s2 + $0xf0] sm:$0xff]
        %v792 = vld [vmem:[%s2 + $0xf8] sm:$0xff]
        %794 = vset.pattern.permute.xlu0 0
        %795 = vperm.xlu0 %794, %v789
        %v796 = vpop.permute.xlu0 %795
        %799 = vset.pattern.permute.xlu0 0
        %800 = vperm.xlu0 %799, %v790
        %v801 = vpop.permute.xlu0 %800
        %804 = vset.pattern.permute.xlu0 0
        %805 = vperm.xlu0 %804, %v791
        %v806 = vpop.permute.xlu0 %805
        %809 = vset.pattern.permute.xlu0 0
        %810 = vperm.xlu0 %809, %v792
        %v811 = vpop.permute.xlu0 %810
        %v813 = vperm.slane %v493, 7
        %v814 = vperm.slane %v494, 7
        %v815 = vmul.f32 %v796, %v813
        %v816 = vmul.f32 %v796, %v814
        %v817 = vmul.f32 %v801, %v813
        %v818 = vmul.f32 %v801, %v814
        %v819 = vmul.f32 %v806, %v813
        %v820 = vmul.f32 %v806, %v814
        %v821 = vmul.f32 %v811, %v813
        %v822 = vmul.f32 %v811, %v814
        %v823 = vadd.f32 %v781, %v815
        %v824 = vadd.f32 %v782, %v816
        %v825 = vadd.f32 %v783, %v817
        %v826 = vadd.f32 %v784, %v818
        %v827 = vadd.f32 %v785, %v819
        %v828 = vadd.f32 %v786, %v820
        %v829 = vadd.f32 %v787, %v821
        %v830 = vadd.f32 %v788, %v822
        %v831 = vld [vmem:[%s3] sm:$0xff]
        %v832 = vld [vmem:[%s3 + $0x8] sm:$0xff]
        %v833 = vld [vmem:[%s3 + $0x10] sm:$0xff]
        %v834 = vld [vmem:[%s3 + $0x18] sm:$0xff]
        %836 = vset.pattern.permute.xlu0 0
        %837 = vperm.xlu0 %836, %v831
        %v838 = vpop.permute.xlu0 %837
        %841 = vset.pattern.permute.xlu0 0
        %842 = vperm.xlu0 %841, %v832
        %v843 = vpop.permute.xlu0 %842
        %846 = vset.pattern.permute.xlu0 0
        %847 = vperm.xlu0 %846, %v833
        %v848 = vpop.permute.xlu0 %847
        %851 = vset.pattern.permute.xlu0 0
        %852 = vperm.xlu0 %851, %v834
        %v853 = vpop.permute.xlu0 %852
        %v855 = vmul.f32 %v823, %v838
        %v856 = vmul.f32 %v824, %v838
        %v857 = vmul.f32 %v825, %v843
        %v858 = vmul.f32 %v826, %v843
        %v859 = vmul.f32 %v827, %v848
        %v860 = vmul.f32 %v828, %v848
        %v861 = vmul.f32 %v829, %v853
        %v862 = vmul.f32 %v830, %v853
        %v863 = vld [vmem:[%s4] sm:$0xff]
        %v864 = vld [vmem:[%s4 + $0x8] sm:$0xff]
        %v865 = vld [vmem:[%s4 + $0x10] sm:$0xff]
        %v866 = vld [vmem:[%s4 + $0x18] sm:$0xff]
        %868 = vset.pattern.permute.xlu0 0
        %869 = vperm.xlu0 %868, %v863
        %v870 = vpop.permute.xlu0 %869
        %873 = vset.pattern.permute.xlu0 0
        %874 = vperm.xlu0 %873, %v864
        %v875 = vpop.permute.xlu0 %874
        %878 = vset.pattern.permute.xlu0 0
        %879 = vperm.xlu0 %878, %v865
        %v880 = vpop.permute.xlu0 %879
        %883 = vset.pattern.permute.xlu0 0
        %884 = vperm.xlu0 %883, %v866
        %v885 = vpop.permute.xlu0 %884
        %v887 = vadd.f32 %v855, %v870
        %v888 = vadd.f32 %v856, %v870
        %v889 = vadd.f32 %v857, %v875
        %v890 = vadd.f32 %v858, %v875
        %v891 = vadd.f32 %v859, %v880
        %v892 = vadd.f32 %v860, %v880
        %v893 = vadd.f32 %v861, %v885
        %v894 = vadd.f32 %v862, %v885
        %v895 = vxor.u32 %v887, 2147483648
        %v896 = vxor.u32 %v888, 2147483648
        %v897 = vxor.u32 %v889, 2147483648
        %v898 = vxor.u32 %v890, 2147483648
        %v899 = vxor.u32 %v891, 2147483648
        %v900 = vxor.u32 %v892, 2147483648
        %v901 = vxor.u32 %v893, 2147483648
        %v902 = vxor.u32 %v894, 2147483648
        %v903 = vmul.f32 %v895, 1.442695
        %v904 = vpow.pop %v903
        %v905 = vmul.f32 %v896, 1.442695
        %v906 = vpow.pop %v905
        %v907 = vmul.f32 %v897, 1.442695
        %v908 = vpow.pop %v907
        %v909 = vmul.f32 %v898, 1.442695
        %v910 = vpow.pop %v909
        %v911 = vmul.f32 %v899, 1.442695
        %v912 = vpow.pop %v911
        %v913 = vmul.f32 %v900, 1.442695
        %v914 = vpow.pop %v913
        %v915 = vmul.f32 %v901, 1.442695
        %v916 = vpow.pop %v915
        %v917 = vmul.f32 %v902, 1.442695
        %v918 = vpow.pop %v917
        %v919 = vadd.f32 %v904, 1.0
        %v920 = vadd.f32 %v906, 1.0
        %v921 = vadd.f32 %v908, 1.0
        %v922 = vadd.f32 %v910, 1.0
        %v923 = vadd.f32 %v912, 1.0
        %v924 = vadd.f32 %v914, 1.0
        %v925 = vadd.f32 %v916, 1.0
        %v926 = vadd.f32 %v918, 1.0
        %v927 = vrcp.pop %v919
        %v928 = vmul.f32 %v919, %v927
        %v929 = vsub.f32 1.0, %v928
        %v930 = vmul.f32 %v927, %v929
        %v931 = vadd.f32 %v927, %v930
        %vm932 = vweird.f32 %v919
        %vm933 = vweird.f32 %v927
        %vm934 = vmor %vm932, %vm933
        %v935 = vsel %vm934, %v927, %v931
        %v936 = vand.u32 2147483647, %v919
        %vm937 = vcmp.eq.f32.partialorder %v936, 8.507059e+37
        %v938 = vand.u32 %v919, 2147483648
        %v939 = vor.u32 1.1754944e-38, %v938
        %v940 = vsel %vm937, %v939, %v935
        %v941 = vmul.f32 1.0, %v940
        %v942 = vrcp.pop %v920
        %v943 = vmul.f32 %v920, %v942
        %v944 = vsub.f32 1.0, %v943
        %v945 = vmul.f32 %v942, %v944
        %v946 = vadd.f32 %v942, %v945
        %vm947 = vweird.f32 %v920
        %vm948 = vweird.f32 %v942
        %vm949 = vmor %vm947, %vm948
        %v950 = vsel %vm949, %v942, %v946
        %v951 = vand.u32 2147483647, %v920
        %vm952 = vcmp.eq.f32.partialorder %v951, 8.507059e+37
        %v953 = vand.u32 %v920, 2147483648
        %v954 = vor.u32 1.1754944e-38, %v953
        %v955 = vsel %vm952, %v954, %v950
        %v956 = vmul.f32 1.0, %v955
        %v957 = vrcp.pop %v921
        %v958 = vmul.f32 %v921, %v957
        %v959 = vsub.f32 1.0, %v958
        %v960 = vmul.f32 %v957, %v959
        %v961 = vadd.f32 %v957, %v960
        %vm962 = vweird.f32 %v921
        %vm963 = vweird.f32 %v957
        %vm964 = vmor %vm962, %vm963
        %v965 = vsel %vm964, %v957, %v961
        %v966 = vand.u32 2147483647, %v921
        %vm967 = vcmp.eq.f32.partialorder %v966, 8.507059e+37
        %v968 = vand.u32 %v921, 2147483648
        %v969 = vor.u32 1.1754944e-38, %v968
        %v970 = vsel %vm967, %v969, %v965
        %v971 = vmul.f32 1.0, %v970
        %v972 = vrcp.pop %v922
        %v973 = vmul.f32 %v922, %v972
        %v974 = vsub.f32 1.0, %v973
        %v975 = vmul.f32 %v972, %v974
        %v976 = vadd.f32 %v972, %v975
        %vm977 = vweird.f32 %v922
        %vm978 = vweird.f32 %v972
        %vm979 = vmor %vm977, %vm978
        %v980 = vsel %vm979, %v972, %v976
        %v981 = vand.u32 2147483647, %v922
        %vm982 = vcmp.eq.f32.partialorder %v981, 8.507059e+37
        %v983 = vand.u32 %v922, 2147483648
        %v984 = vor.u32 1.1754944e-38, %v983
        %v985 = vsel %vm982, %v984, %v980
        %v986 = vmul.f32 1.0, %v985
        %v987 = vrcp.pop %v923
        %v988 = vmul.f32 %v923, %v987
        %v989 = vsub.f32 1.0, %v988
        %v990 = vmul.f32 %v987, %v989
        %v991 = vadd.f32 %v987, %v990
        %vm992 = vweird.f32 %v923
        %vm993 = vweird.f32 %v987
        %vm994 = vmor %vm992, %vm993
        %v995 = vsel %vm994, %v987, %v991
        %v996 = vand.u32 2147483647, %v923
        %vm997 = vcmp.eq.f32.partialorder %v996, 8.507059e+37
        %v998 = vand.u32 %v923, 2147483648
        %v999 = vor.u32 1.1754944e-38, %v998
        %v1000 = vsel %vm997, %v999, %v995
        %v1001 = vmul.f32 1.0, %v1000
        %v1002 = vrcp.pop %v924
        %v1003 = vmul.f32 %v924, %v1002
        %v1004 = vsub.f32 1.0, %v1003
        %v1005 = vmul.f32 %v1002, %v1004
        %v1006 = vadd.f32 %v1002, %v1005
        %vm1007 = vweird.f32 %v924
        %vm1008 = vweird.f32 %v1002
        %vm1009 = vmor %vm1007, %vm1008
        %v1010 = vsel %vm1009, %v1002, %v1006
        %v1011 = vand.u32 2147483647, %v924
        %vm1012 = vcmp.eq.f32.partialorder %v1011, 8.507059e+37
        %v1013 = vand.u32 %v924, 2147483648
        %v1014 = vor.u32 1.1754944e-38, %v1013
        %v1015 = vsel %vm1012, %v1014, %v1010
        %v1016 = vmul.f32 1.0, %v1015
        %v1017 = vrcp.pop %v925
        %v1018 = vmul.f32 %v925, %v1017
        %v1019 = vsub.f32 1.0, %v1018
        %v1020 = vmul.f32 %v1017, %v1019
        %v1021 = vadd.f32 %v1017, %v1020
        %vm1022 = vweird.f32 %v925
        %vm1023 = vweird.f32 %v1017
        %vm1024 = vmor %vm1022, %vm1023
        %v1025 = vsel %vm1024, %v1017, %v1021
        %v1026 = vand.u32 2147483647, %v925
        %vm1027 = vcmp.eq.f32.partialorder %v1026, 8.507059e+37
        %v1028 = vand.u32 %v925, 2147483648
        %v1029 = vor.u32 1.1754944e-38, %v1028
        %v1030 = vsel %vm1027, %v1029, %v1025
        %v1031 = vmul.f32 1.0, %v1030
        %v1032 = vrcp.pop %v926
        %v1033 = vmul.f32 %v926, %v1032
        %v1034 = vsub.f32 1.0, %v1033
        %v1035 = vmul.f32 %v1032, %v1034
        %v1036 = vadd.f32 %v1032, %v1035
        %vm1037 = vweird.f32 %v926
        %vm1038 = vweird.f32 %v1032
        %vm1039 = vmor %vm1037, %vm1038
        %v1040 = vsel %vm1039, %v1032, %v1036
        %v1041 = vand.u32 2147483647, %v926
        %vm1042 = vcmp.eq.f32.partialorder %v1041, 8.507059e+37
        %v1043 = vand.u32 %v926, 2147483648
        %v1044 = vor.u32 1.1754944e-38, %v1043
        %v1045 = vsel %vm1042, %v1044, %v1040
        %v1046 = vmul.f32 1.0, %v1045
        %v1047 = vmul.f32 %v887, %v941
        %v1048 = vmul.f32 %v888, %v956
        %v1049 = vmul.f32 %v889, %v971
        %v1050 = vmul.f32 %v890, %v986
        %v1051 = vmul.f32 %v891, %v1001
        %v1052 = vmul.f32 %v892, %v1016
        %v1053 = vmul.f32 %v893, %v1031
        %v1054 = vmul.f32 %v894, %v1046
        %v1055 = vld [vmem:[%s1] sm:$0xff]
        %v1056 = vld [vmem:[%s1 + $0x8] sm:$0xff]
        %v1057 = vld [vmem:[%s1 + $0x10] sm:$0x1]
        %v1058 = vld [vmem:[%s1 + $0x18] sm:$0x1]
        %v1059 = vld [vmem:[%s5] sm:$0xff]
        %v1060 = vld [vmem:[%s5 + $0x8] sm:$0xff]
        %v1061 = vld [vmem:[%s5 + $0x10] sm:$0xff]
        %v1062 = vld [vmem:[%s5 + $0x18] sm:$0xff]
        %1063 = vrot.lane.b32.xlu0 %v1047, 17
        %v1064 = vpop.permute.xlu0 %1063
        %1065 = vrot.lane.b32.xlu0 %v1049, 17
        %v1066 = vpop.permute.xlu0 %1065
        %1067 = vrot.lane.b32.xlu0 %v1051, 17
        %v1068 = vpop.permute.xlu0 %1067
        %1069 = vrot.lane.b32.xlu0 %v1053, 17
        %v1070 = vpop.permute.xlu0 %1069
        %1071 = vrot.lane.b32.xlu0 %v1048, 17
        %v1072 = vpop.permute.xlu0 %1071
        %1073 = vrot.lane.b32.xlu0 %v1050, 17
        %v1074 = vpop.permute.xlu0 %1073
        %1075 = vrot.lane.b32.xlu0 %v1052, 17
        %v1076 = vpop.permute.xlu0 %1075
        %1077 = vrot.lane.b32.xlu0 %v1054, 17
        %v1078 = vpop.permute.xlu0 %1077
        %v1079 = vlaneseq
        %v1080 = vand.u32 %v1079, 127
        %vm1081 = vcmp.lt.s32.totalorder %v1080, 17
        %v1082 = vsel %vm1081, %v1064, %v1072
        %v1083 = vsel %vm1081, %v1066, %v1074
        %v1084 = vsel %vm1081, %v1068, %v1076
        %v1085 = vsel %vm1081, %v1070, %v1078
        %v1086 = vsel %vm1081, %v1072, %v1064
        %v1087 = vsel %vm1081, %v1074, %v1066
        %v1088 = vsel %vm1081, %v1076, %v1068
        %v1089 = vsel %vm1081, %v1078, %v1070
        %v1090 = vperm.slane %v1055, 0
        %v1091 = vperm.slane %v1056, 0
        %v1092 = vmul.f32 %v1086, %v1090
        %v1093 = vmul.f32 %v1082, %v1091
        %v1094 = vmul.f32 %v1087, %v1090
        %v1095 = vmul.f32 %v1083, %v1091
        %v1096 = vmul.f32 %v1088, %v1090
        %v1097 = vmul.f32 %v1084, %v1091
        %v1098 = vmul.f32 %v1089, %v1090
        %v1099 = vmul.f32 %v1085, %v1091
        %1101 = vset.pattern.permute.xlu0 0
        %1102 = vperm.xlu0 %1101, %v1059
        %v1103 = vpop.permute.xlu0 %1102
        %1106 = vset.pattern.permute.xlu0 0
        %1107 = vperm.xlu0 %1106, %v1060
        %v1108 = vpop.permute.xlu0 %1107
        %1111 = vset.pattern.permute.xlu0 0
        %1112 = vperm.xlu0 %1111, %v1061
        %v1113 = vpop.permute.xlu0 %1112
        %1116 = vset.pattern.permute.xlu0 0
        %1117 = vperm.xlu0 %1116, %v1062
        %v1118 = vpop.permute.xlu0 %1117
        %v1120 = vmul.f32 %v1092, %v1103
        %v1121 = vmul.f32 %v1093, %v1103
        %v1122 = vmul.f32 %v1094, %v1108
        %v1123 = vmul.f32 %v1095, %v1108
        %v1124 = vmul.f32 %v1096, %v1113
        %v1125 = vmul.f32 %v1097, %v1113
        %v1126 = vmul.f32 %v1098, %v1118
        %v1127 = vmul.f32 %v1099, %v1118
        %v1128 = vadd.f32 %v1120, 0.0
        %v1129 = vadd.f32 %v1121, 0.0
        %v1130 = vadd.f32 %v1122, 0.0
        %v1131 = vadd.f32 %v1123, 0.0
        %v1132 = vadd.f32 %v1124, 0.0
        %v1133 = vadd.f32 %v1125, 0.0
        %v1134 = vadd.f32 %v1126, 0.0
        %v1135 = vadd.f32 %v1127, 0.0
        %v1136 = vld [vmem:[%s5 + $0x20] sm:$0xff]
        %v1137 = vld [vmem:[%s5 + $0x28] sm:$0xff]
        %v1138 = vld [vmem:[%s5 + $0x30] sm:$0xff]
        %v1139 = vld [vmem:[%s5 + $0x38] sm:$0xff]
        %1140 = vrot.lane.b32.xlu0 %v1047, 16
        %v1141 = vpop.permute.xlu0 %1140
        %1142 = vrot.lane.b32.xlu0 %v1049, 16
        %v1143 = vpop.permute.xlu0 %1142
        %1144 = vrot.lane.b32.xlu0 %v1051, 16
        %v1145 = vpop.permute.xlu0 %1144
        %1146 = vrot.lane.b32.xlu0 %v1053, 16
        %v1147 = vpop.permute.xlu0 %1146
        %1148 = vrot.lane.b32.xlu0 %v1048, 16
        %v1149 = vpop.permute.xlu0 %1148
        %1150 = vrot.lane.b32.xlu0 %v1050, 16
        %v1151 = vpop.permute.xlu0 %1150
        %1152 = vrot.lane.b32.xlu0 %v1052, 16
        %v1153 = vpop.permute.xlu0 %1152
        %1154 = vrot.lane.b32.xlu0 %v1054, 16
        %v1155 = vpop.permute.xlu0 %1154
        %vm1156 = vcmp.lt.s32.totalorder %v1080, 16
        %v1157 = vsel %vm1156, %v1141, %v1149
        %v1158 = vsel %vm1156, %v1143, %v1151
        %v1159 = vsel %vm1156, %v1145, %v1153
        %v1160 = vsel %vm1156, %v1147, %v1155
        %v1161 = vsel %vm1156, %v1149, %v1141
        %v1162 = vsel %vm1156, %v1151, %v1143
        %v1163 = vsel %vm1156, %v1153, %v1145
        %v1164 = vsel %vm1156, %v1155, %v1147
        %v1165 = vperm.slane %v1055, 1
        %v1166 = vperm.slane %v1056, 1
        %v1167 = vmul.f32 %v1161, %v1165
        %v1168 = vmul.f32 %v1157, %v1166
        %v1169 = vmul.f32 %v1162, %v1165
        %v1170 = vmul.f32 %v1158, %v1166
        %v1171 = vmul.f32 %v1163, %v1165
        %v1172 = vmul.f32 %v1159, %v1166
        %v1173 = vmul.f32 %v1164, %v1165
        %v1174 = vmul.f32 %v1160, %v1166
        %1176 = vset.pattern.permute.xlu0 0
        %1177 = vperm.xlu0 %1176, %v1136
        %v1178 = vpop.permute.xlu0 %1177
        %1181 = vset.pattern.permute.xlu0 0
        %1182 = vperm.xlu0 %1181, %v1137
        %v1183 = vpop.permute.xlu0 %1182
        %1186 = vset.pattern.permute.xlu0 0
        %1187 = vperm.xlu0 %1186, %v1138
        %v1188 = vpop.permute.xlu0 %1187
        %1191 = vset.pattern.permute.xlu0 0
        %1192 = vperm.xlu0 %1191, %v1139
        %v1193 = vpop.permute.xlu0 %1192
        %v1195 = vmul.f32 %v1167, %v1178
        %v1196 = vmul.f32 %v1168, %v1178
        %v1197 = vmul.f32 %v1169, %v1183
        %v1198 = vmul.f32 %v1170, %v1183
        %v1199 = vmul.f32 %v1171, %v1188
        %v1200 = vmul.f32 %v1172, %v1188
        %v1201 = vmul.f32 %v1173, %v1193
        %v1202 = vmul.f32 %v1174, %v1193
        %v1203 = vadd.f32 %v1128, %v1195
        %v1204 = vadd.f32 %v1129, %v1196
        %v1205 = vadd.f32 %v1130, %v1197
        %v1206 = vadd.f32 %v1131, %v1198
        %v1207 = vadd.f32 %v1132, %v1199
        %v1208 = vadd.f32 %v1133, %v1200
        %v1209 = vadd.f32 %v1134, %v1201
        %v1210 = vadd.f32 %v1135, %v1202
        %v1211 = vld [vmem:[%s5 + $0x40] sm:$0xff]
        %v1212 = vld [vmem:[%s5 + $0x48] sm:$0xff]
        %v1213 = vld [vmem:[%s5 + $0x50] sm:$0xff]
        %v1214 = vld [vmem:[%s5 + $0x58] sm:$0xff]
        %1215 = vrot.lane.b32.xlu0 %v1047, 15
        %v1216 = vpop.permute.xlu0 %1215
        %1217 = vrot.lane.b32.xlu0 %v1049, 15
        %v1218 = vpop.permute.xlu0 %1217
        %1219 = vrot.lane.b32.xlu0 %v1051, 15
        %v1220 = vpop.permute.xlu0 %1219
        %1221 = vrot.lane.b32.xlu0 %v1053, 15
        %v1222 = vpop.permute.xlu0 %1221
        %1223 = vrot.lane.b32.xlu0 %v1048, 15
        %v1224 = vpop.permute.xlu0 %1223
        %1225 = vrot.lane.b32.xlu0 %v1050, 15
        %v1226 = vpop.permute.xlu0 %1225
        %1227 = vrot.lane.b32.xlu0 %v1052, 15
        %v1228 = vpop.permute.xlu0 %1227
        %1229 = vrot.lane.b32.xlu0 %v1054, 15
        %v1230 = vpop.permute.xlu0 %1229
        %vm1231 = vcmp.lt.s32.totalorder %v1080, 15
        %v1232 = vsel %vm1231, %v1216, %v1224
        %v1233 = vsel %vm1231, %v1218, %v1226
        %v1234 = vsel %vm1231, %v1220, %v1228
        %v1235 = vsel %vm1231, %v1222, %v1230
        %v1236 = vsel %vm1231, %v1224, %v1216
        %v1237 = vsel %vm1231, %v1226, %v1218
        %v1238 = vsel %vm1231, %v1228, %v1220
        %v1239 = vsel %vm1231, %v1230, %v1222
        %v1240 = vperm.slane %v1055, 2
        %v1241 = vperm.slane %v1056, 2
        %v1242 = vmul.f32 %v1236, %v1240
        %v1243 = vmul.f32 %v1232, %v1241
        %v1244 = vmul.f32 %v1237, %v1240
        %v1245 = vmul.f32 %v1233, %v1241
        %v1246 = vmul.f32 %v1238, %v1240
        %v1247 = vmul.f32 %v1234, %v1241
        %v1248 = vmul.f32 %v1239, %v1240
        %v1249 = vmul.f32 %v1235, %v1241
        %1251 = vset.pattern.permute.xlu0 0
        %1252 = vperm.xlu0 %1251, %v1211
        %v1253 = vpop.permute.xlu0 %1252
        %1256 = vset.pattern.permute.xlu0 0
        %1257 = vperm.xlu0 %1256, %v1212
        %v1258 = vpop.permute.xlu0 %1257
        %1261 = vset.pattern.permute.xlu0 0
        %1262 = vperm.xlu0 %1261, %v1213
        %v1263 = vpop.permute.xlu0 %1262
        %1266 = vset.pattern.permute.xlu0 0
        %1267 = vperm.xlu0 %1266, %v1214
        %v1268 = vpop.permute.xlu0 %1267
        %v1270 = vmul.f32 %v1242, %v1253
        %v1271 = vmul.f32 %v1243, %v1253
        %v1272 = vmul.f32 %v1244, %v1258
        %v1273 = vmul.f32 %v1245, %v1258
        %v1274 = vmul.f32 %v1246, %v1263
        %v1275 = vmul.f32 %v1247, %v1263
        %v1276 = vmul.f32 %v1248, %v1268
        %v1277 = vmul.f32 %v1249, %v1268
        %v1278 = vadd.f32 %v1203, %v1270
        %v1279 = vadd.f32 %v1204, %v1271
        %v1280 = vadd.f32 %v1205, %v1272
        %v1281 = vadd.f32 %v1206, %v1273
        %v1282 = vadd.f32 %v1207, %v1274
        %v1283 = vadd.f32 %v1208, %v1275
        %v1284 = vadd.f32 %v1209, %v1276
        %v1285 = vadd.f32 %v1210, %v1277
        %v1286 = vld [vmem:[%s5 + $0x60] sm:$0xff]
        %v1287 = vld [vmem:[%s5 + $0x68] sm:$0xff]
        %v1288 = vld [vmem:[%s5 + $0x70] sm:$0xff]
        %v1289 = vld [vmem:[%s5 + $0x78] sm:$0xff]
        %1290 = vrot.lane.b32.xlu0 %v1047, 1
        %v1291 = vpop.permute.xlu0 %1290
        %1292 = vrot.lane.b32.xlu0 %v1049, 1
        %v1293 = vpop.permute.xlu0 %1292
        %1294 = vrot.lane.b32.xlu0 %v1051, 1
        %v1295 = vpop.permute.xlu0 %1294
        %1296 = vrot.lane.b32.xlu0 %v1053, 1
        %v1297 = vpop.permute.xlu0 %1296
        %1298 = vrot.lane.b32.xlu0 %v1048, 1
        %v1299 = vpop.permute.xlu0 %1298
        %1300 = vrot.lane.b32.xlu0 %v1050, 1
        %v1301 = vpop.permute.xlu0 %1300
        %1302 = vrot.lane.b32.xlu0 %v1052, 1
        %v1303 = vpop.permute.xlu0 %1302
        %1304 = vrot.lane.b32.xlu0 %v1054, 1
        %v1305 = vpop.permute.xlu0 %1304
        %vm1306 = vcmp.lt.s32.totalorder %v1080, 1
        %v1307 = vsel %vm1306, %v1291, %v1299
        %v1308 = vsel %vm1306, %v1293, %v1301
        %v1309 = vsel %vm1306, %v1295, %v1303
        %v1310 = vsel %vm1306, %v1297, %v1305
        %v1311 = vsel %vm1306, %v1299, %v1291
        %v1312 = vsel %vm1306, %v1301, %v1293
        %v1313 = vsel %vm1306, %v1303, %v1295
        %v1314 = vsel %vm1306, %v1305, %v1297
        %v1315 = vperm.slane %v1055, 3
        %v1316 = vperm.slane %v1056, 3
        %v1317 = vmul.f32 %v1311, %v1315
        %v1318 = vmul.f32 %v1307, %v1316
        %v1319 = vmul.f32 %v1312, %v1315
        %v1320 = vmul.f32 %v1308, %v1316
        %v1321 = vmul.f32 %v1313, %v1315
        %v1322 = vmul.f32 %v1309, %v1316
        %v1323 = vmul.f32 %v1314, %v1315
        %v1324 = vmul.f32 %v1310, %v1316
        %1326 = vset.pattern.permute.xlu0 0
        %1327 = vperm.xlu0 %1326, %v1286
        %v1328 = vpop.permute.xlu0 %1327
        %1331 = vset.pattern.permute.xlu0 0
        %1332 = vperm.xlu0 %1331, %v1287
        %v1333 = vpop.permute.xlu0 %1332
        %1336 = vset.pattern.permute.xlu0 0
        %1337 = vperm.xlu0 %1336, %v1288
        %v1338 = vpop.permute.xlu0 %1337
        %1341 = vset.pattern.permute.xlu0 0
        %1342 = vperm.xlu0 %1341, %v1289
        %v1343 = vpop.permute.xlu0 %1342
        %v1345 = vmul.f32 %v1317, %v1328
        %v1346 = vmul.f32 %v1318, %v1328
        %v1347 = vmul.f32 %v1319, %v1333
        %v1348 = vmul.f32 %v1320, %v1333
        %v1349 = vmul.f32 %v1321, %v1338
        %v1350 = vmul.f32 %v1322, %v1338
        %v1351 = vmul.f32 %v1323, %v1343
        %v1352 = vmul.f32 %v1324, %v1343
        %v1353 = vadd.f32 %v1278, %v1345
        %v1354 = vadd.f32 %v1279, %v1346
        %v1355 = vadd.f32 %v1280, %v1347
        %v1356 = vadd.f32 %v1281, %v1348
        %v1357 = vadd.f32 %v1282, %v1349
        %v1358 = vadd.f32 %v1283, %v1350
        %v1359 = vadd.f32 %v1284, %v1351
        %v1360 = vadd.f32 %v1285, %v1352
        %v1361 = vld [vmem:[%s5 + $0x80] sm:$0xff]
        %v1362 = vld [vmem:[%s5 + $0x88] sm:$0xff]
        %v1363 = vld [vmem:[%s5 + $0x90] sm:$0xff]
        %v1364 = vld [vmem:[%s5 + $0x98] sm:$0xff]
        %1366 = vset.pattern.permute.xlu0 0
        %1367 = vperm.xlu0 %1366, %v1361
        %v1368 = vpop.permute.xlu0 %1367
        %1371 = vset.pattern.permute.xlu0 0
        %1372 = vperm.xlu0 %1371, %v1362
        %v1373 = vpop.permute.xlu0 %1372
        %1376 = vset.pattern.permute.xlu0 0
        %1377 = vperm.xlu0 %1376, %v1363
        %v1378 = vpop.permute.xlu0 %1377
        %1381 = vset.pattern.permute.xlu0 0
        %1382 = vperm.xlu0 %1381, %v1364
        %v1383 = vpop.permute.xlu0 %1382
        %v1385 = vmul.f32 %v1047, %v1368
        %v1386 = vmul.f32 %v1048, %v1368
        %v1387 = vmul.f32 %v1049, %v1373
        %v1388 = vmul.f32 %v1050, %v1373
        %v1389 = vmul.f32 %v1051, %v1378
        %v1390 = vmul.f32 %v1052, %v1378
        %v1391 = vmul.f32 %v1053, %v1383
        %v1392 = vmul.f32 %v1054, %v1383
        %v1393 = vadd.f32 %v1353, %v1385
        %v1394 = vadd.f32 %v1354, %v1386
        %v1395 = vadd.f32 %v1355, %v1387
        %v1396 = vadd.f32 %v1356, %v1388
        %v1397 = vadd.f32 %v1357, %v1389
        %v1398 = vadd.f32 %v1358, %v1390
        %v1399 = vadd.f32 %v1359, %v1391
        %v1400 = vadd.f32 %v1360, %v1392
        %v1401 = vld [vmem:[%s5 + $0xa0] sm:$0xff]
        %v1402 = vld [vmem:[%s5 + $0xa8] sm:$0xff]
        %v1403 = vld [vmem:[%s5 + $0xb0] sm:$0xff]
        %v1404 = vld [vmem:[%s5 + $0xb8] sm:$0xff]
        %1405 = vrot.lane.b32.xlu0 %v1047, 127
        %v1406 = vpop.permute.xlu0 %1405
        %1407 = vrot.lane.b32.xlu0 %v1049, 127
        %v1408 = vpop.permute.xlu0 %1407
        %1409 = vrot.lane.b32.xlu0 %v1051, 127
        %v1410 = vpop.permute.xlu0 %1409
        %1411 = vrot.lane.b32.xlu0 %v1053, 127
        %v1412 = vpop.permute.xlu0 %1411
        %1413 = vrot.lane.b32.xlu0 %v1048, 127
        %v1414 = vpop.permute.xlu0 %1413
        %1415 = vrot.lane.b32.xlu0 %v1050, 127
        %v1416 = vpop.permute.xlu0 %1415
        %1417 = vrot.lane.b32.xlu0 %v1052, 127
        %v1418 = vpop.permute.xlu0 %1417
        %1419 = vrot.lane.b32.xlu0 %v1054, 127
        %v1420 = vpop.permute.xlu0 %1419
        %vm1421 = vcmp.lt.s32.totalorder %v1080, 127
        %v1422 = vsel %vm1421, %v1406, %v1414
        %v1423 = vsel %vm1421, %v1408, %v1416
        %v1424 = vsel %vm1421, %v1410, %v1418
        %v1425 = vsel %vm1421, %v1412, %v1420
        %v1426 = vsel %vm1421, %v1414, %v1406
        %v1427 = vsel %vm1421, %v1416, %v1408
        %v1428 = vsel %vm1421, %v1418, %v1410
        %v1429 = vsel %vm1421, %v1420, %v1412
        %v1430 = vperm.slane %v1055, 5
        %v1431 = vperm.slane %v1056, 5
        %v1432 = vmul.f32 %v1422, %v1430
        %v1433 = vmul.f32 %v1426, %v1431
        %v1434 = vmul.f32 %v1423, %v1430
        %v1435 = vmul.f32 %v1427, %v1431
        %v1436 = vmul.f32 %v1424, %v1430
        %v1437 = vmul.f32 %v1428, %v1431
        %v1438 = vmul.f32 %v1425, %v1430
        %v1439 = vmul.f32 %v1429, %v1431
        %1441 = vset.pattern.permute.xlu0 0
        %1442 = vperm.xlu0 %1441, %v1401
        %v1443 = vpop.permute.xlu0 %1442
        %1446 = vset.pattern.permute.xlu0 0
        %1447 = vperm.xlu0 %1446, %v1402
        %v1448 = vpop.permute.xlu0 %1447
        %1451 = vset.pattern.permute.xlu0 0
        %1452 = vperm.xlu0 %1451, %v1403
        %v1453 = vpop.permute.xlu0 %1452
        %1456 = vset.pattern.permute.xlu0 0
        %1457 = vperm.xlu0 %1456, %v1404
        %v1458 = vpop.permute.xlu0 %1457
        %v1460 = vmul.f32 %v1432, %v1443
        %v1461 = vmul.f32 %v1433, %v1443
        %v1462 = vmul.f32 %v1434, %v1448
        %v1463 = vmul.f32 %v1435, %v1448
        %v1464 = vmul.f32 %v1436, %v1453
        %v1465 = vmul.f32 %v1437, %v1453
        %v1466 = vmul.f32 %v1438, %v1458
        %v1467 = vmul.f32 %v1439, %v1458
        %v1468 = vadd.f32 %v1393, %v1460
        %v1469 = vadd.f32 %v1394, %v1461
        %v1470 = vadd.f32 %v1395, %v1462
        %v1471 = vadd.f32 %v1396, %v1463
        %v1472 = vadd.f32 %v1397, %v1464
        %v1473 = vadd.f32 %v1398, %v1465
        %v1474 = vadd.f32 %v1399, %v1466
        %v1475 = vadd.f32 %v1400, %v1467
        %v1476 = vld [vmem:[%s5 + $0xc0] sm:$0xff]
        %v1477 = vld [vmem:[%s5 + $0xc8] sm:$0xff]
        %v1478 = vld [vmem:[%s5 + $0xd0] sm:$0xff]
        %v1479 = vld [vmem:[%s5 + $0xd8] sm:$0xff]
        %1480 = vrot.lane.b32.xlu0 %v1047, 113
        %v1481 = vpop.permute.xlu0 %1480
        %1482 = vrot.lane.b32.xlu0 %v1049, 113
        %v1483 = vpop.permute.xlu0 %1482
        %1484 = vrot.lane.b32.xlu0 %v1051, 113
        %v1485 = vpop.permute.xlu0 %1484
        %1486 = vrot.lane.b32.xlu0 %v1053, 113
        %v1487 = vpop.permute.xlu0 %1486
        %1488 = vrot.lane.b32.xlu0 %v1048, 113
        %v1489 = vpop.permute.xlu0 %1488
        %1490 = vrot.lane.b32.xlu0 %v1050, 113
        %v1491 = vpop.permute.xlu0 %1490
        %1492 = vrot.lane.b32.xlu0 %v1052, 113
        %v1493 = vpop.permute.xlu0 %1492
        %1494 = vrot.lane.b32.xlu0 %v1054, 113
        %v1495 = vpop.permute.xlu0 %1494
        %vm1496 = vcmp.lt.s32.totalorder %v1080, 113
        %v1497 = vsel %vm1496, %v1481, %v1489
        %v1498 = vsel %vm1496, %v1483, %v1491
        %v1499 = vsel %vm1496, %v1485, %v1493
        %v1500 = vsel %vm1496, %v1487, %v1495
        %v1501 = vsel %vm1496, %v1489, %v1481
        %v1502 = vsel %vm1496, %v1491, %v1483
        %v1503 = vsel %vm1496, %v1493, %v1485
        %v1504 = vsel %vm1496, %v1495, %v1487
        %v1505 = vperm.slane %v1055, 6
        %v1506 = vperm.slane %v1056, 6
        %v1507 = vmul.f32 %v1497, %v1505
        %v1508 = vmul.f32 %v1501, %v1506
        %v1509 = vmul.f32 %v1498, %v1505
        %v1510 = vmul.f32 %v1502, %v1506
        %v1511 = vmul.f32 %v1499, %v1505
        %v1512 = vmul.f32 %v1503, %v1506
        %v1513 = vmul.f32 %v1500, %v1505
        %v1514 = vmul.f32 %v1504, %v1506
        %1516 = vset.pattern.permute.xlu0 0
        %1517 = vperm.xlu0 %1516, %v1476
        %v1518 = vpop.permute.xlu0 %1517
        %1521 = vset.pattern.permute.xlu0 0
        %1522 = vperm.xlu0 %1521, %v1477
        %v1523 = vpop.permute.xlu0 %1522
        %1526 = vset.pattern.permute.xlu0 0
        %1527 = vperm.xlu0 %1526, %v1478
        %v1528 = vpop.permute.xlu0 %1527
        %1531 = vset.pattern.permute.xlu0 0
        %1532 = vperm.xlu0 %1531, %v1479
        %v1533 = vpop.permute.xlu0 %1532
        %v1535 = vmul.f32 %v1507, %v1518
        %v1536 = vmul.f32 %v1508, %v1518
        %v1537 = vmul.f32 %v1509, %v1523
        %v1538 = vmul.f32 %v1510, %v1523
        %v1539 = vmul.f32 %v1511, %v1528
        %v1540 = vmul.f32 %v1512, %v1528
        %v1541 = vmul.f32 %v1513, %v1533
        %v1542 = vmul.f32 %v1514, %v1533
        %v1543 = vadd.f32 %v1468, %v1535
        %v1544 = vadd.f32 %v1469, %v1536
        %v1545 = vadd.f32 %v1470, %v1537
        %v1546 = vadd.f32 %v1471, %v1538
        %v1547 = vadd.f32 %v1472, %v1539
        %v1548 = vadd.f32 %v1473, %v1540
        %v1549 = vadd.f32 %v1474, %v1541
        %v1550 = vadd.f32 %v1475, %v1542
        %v1551 = vld [vmem:[%s5 + $0xe0] sm:$0xff]
        %v1552 = vld [vmem:[%s5 + $0xe8] sm:$0xff]
        %v1553 = vld [vmem:[%s5 + $0xf0] sm:$0xff]
        %v1554 = vld [vmem:[%s5 + $0xf8] sm:$0xff]
        %1555 = vrot.lane.b32.xlu0 %v1047, 112
        %v1556 = vpop.permute.xlu0 %1555
        %1557 = vrot.lane.b32.xlu0 %v1049, 112
        %v1558 = vpop.permute.xlu0 %1557
        %1559 = vrot.lane.b32.xlu0 %v1051, 112
        %v1560 = vpop.permute.xlu0 %1559
        %1561 = vrot.lane.b32.xlu0 %v1053, 112
        %v1562 = vpop.permute.xlu0 %1561
        %1563 = vrot.lane.b32.xlu0 %v1048, 112
        %v1564 = vpop.permute.xlu0 %1563
        %1565 = vrot.lane.b32.xlu0 %v1050, 112
        %v1566 = vpop.permute.xlu0 %1565
        %1567 = vrot.lane.b32.xlu0 %v1052, 112
        %v1568 = vpop.permute.xlu0 %1567
        %1569 = vrot.lane.b32.xlu0 %v1054, 112
        %v1570 = vpop.permute.xlu0 %1569
        %vm1571 = vcmp.lt.s32.totalorder %v1080, 112
        %v1572 = vsel %vm1571, %v1556, %v1564
        %v1573 = vsel %vm1571, %v1558, %v1566
        %v1574 = vsel %vm1571, %v1560, %v1568
        %v1575 = vsel %vm1571, %v1562, %v1570
        %v1576 = vsel %vm1571, %v1564, %v1556
        %v1577 = vsel %vm1571, %v1566, %v1558
        %v1578 = vsel %vm1571, %v1568, %v1560
        %v1579 = vsel %vm1571, %v1570, %v1562
        %v1580 = vperm.slane %v1055, 7
        %v1581 = vperm.slane %v1056, 7
        %v1582 = vmul.f32 %v1572, %v1580
        %v1583 = vmul.f32 %v1576, %v1581
        %v1584 = vmul.f32 %v1573, %v1580
        %v1585 = vmul.f32 %v1577, %v1581
        %v1586 = vmul.f32 %v1574, %v1580
        %v1587 = vmul.f32 %v1578, %v1581
        %v1588 = vmul.f32 %v1575, %v1580
        %v1589 = vmul.f32 %v1579, %v1581
        %1591 = vset.pattern.permute.xlu0 0
        %1592 = vperm.xlu0 %1591, %v1551
        %v1593 = vpop.permute.xlu0 %1592
        %1596 = vset.pattern.permute.xlu0 0
        %1597 = vperm.xlu0 %1596, %v1552
        %v1598 = vpop.permute.xlu0 %1597
        %1601 = vset.pattern.permute.xlu0 0
        %1602 = vperm.xlu0 %1601, %v1553
        %v1603 = vpop.permute.xlu0 %1602
        %1606 = vset.pattern.permute.xlu0 0
        %1607 = vperm.xlu0 %1606, %v1554
        %v1608 = vpop.permute.xlu0 %1607
        %v1610 = vmul.f32 %v1582, %v1593
        %v1611 = vmul.f32 %v1583, %v1593
        %v1612 = vmul.f32 %v1584, %v1598
        %v1613 = vmul.f32 %v1585, %v1598
        %v1614 = vmul.f32 %v1586, %v1603
        %v1615 = vmul.f32 %v1587, %v1603
        %v1616 = vmul.f32 %v1588, %v1608
        %v1617 = vmul.f32 %v1589, %v1608
        %v1618 = vadd.f32 %v1543, %v1610
        %v1619 = vadd.f32 %v1544, %v1611
        %v1620 = vadd.f32 %v1545, %v1612
        %v1621 = vadd.f32 %v1546, %v1613
        %v1622 = vadd.f32 %v1547, %v1614
        %v1623 = vadd.f32 %v1548, %v1615
        %v1624 = vadd.f32 %v1549, %v1616
        %v1625 = vadd.f32 %v1550, %v1617
        %v1626 = vld [vmem:[%s5 + $0x100] sm:$0xff]
        %v1627 = vld [vmem:[%s5 + $0x108] sm:$0xff]
        %v1628 = vld [vmem:[%s5 + $0x110] sm:$0xff]
        %v1629 = vld [vmem:[%s5 + $0x118] sm:$0xff]
        %1630 = vrot.lane.b32.xlu0 %v1047, 111
        %v1631 = vpop.permute.xlu0 %1630
        %1632 = vrot.lane.b32.xlu0 %v1049, 111
        %v1633 = vpop.permute.xlu0 %1632
        %1634 = vrot.lane.b32.xlu0 %v1051, 111
        %v1635 = vpop.permute.xlu0 %1634
        %1636 = vrot.lane.b32.xlu0 %v1053, 111
        %v1637 = vpop.permute.xlu0 %1636
        %1638 = vrot.lane.b32.xlu0 %v1048, 111
        %v1639 = vpop.permute.xlu0 %1638
        %1640 = vrot.lane.b32.xlu0 %v1050, 111
        %v1641 = vpop.permute.xlu0 %1640
        %1642 = vrot.lane.b32.xlu0 %v1052, 111
        %v1643 = vpop.permute.xlu0 %1642
        %1644 = vrot.lane.b32.xlu0 %v1054, 111
        %v1645 = vpop.permute.xlu0 %1644
        %vm1646 = vcmp.lt.s32.totalorder %v1080, 111
        %v1647 = vsel %vm1646, %v1631, %v1639
        %v1648 = vsel %vm1646, %v1633, %v1641
        %v1649 = vsel %vm1646, %v1635, %v1643
        %v1650 = vsel %vm1646, %v1637, %v1645
        %v1651 = vsel %vm1646, %v1639, %v1631
        %v1652 = vsel %vm1646, %v1641, %v1633
        %v1653 = vsel %vm1646, %v1643, %v1635
        %v1654 = vsel %vm1646, %v1645, %v1637
        %v1655 = vperm.slane %v1057, 0
        %v1656 = vperm.slane %v1058, 0
        %v1657 = vmul.f32 %v1647, %v1655
        %v1658 = vmul.f32 %v1651, %v1656
        %v1659 = vmul.f32 %v1648, %v1655
        %v1660 = vmul.f32 %v1652, %v1656
        %v1661 = vmul.f32 %v1649, %v1655
        %v1662 = vmul.f32 %v1653, %v1656
        %v1663 = vmul.f32 %v1650, %v1655
        %v1664 = vmul.f32 %v1654, %v1656
        %1666 = vset.pattern.permute.xlu0 0
        %1667 = vperm.xlu0 %1666, %v1626
        %v1668 = vpop.permute.xlu0 %1667
        %1671 = vset.pattern.permute.xlu0 0
        %1672 = vperm.xlu0 %1671, %v1627
        %v1673 = vpop.permute.xlu0 %1672
        %1676 = vset.pattern.permute.xlu0 0
        %1677 = vperm.xlu0 %1676, %v1628
        %v1678 = vpop.permute.xlu0 %1677
        %1681 = vset.pattern.permute.xlu0 0
        %1682 = vperm.xlu0 %1681, %v1629
        %v1683 = vpop.permute.xlu0 %1682
        %v1685 = vmul.f32 %v1657, %v1668
        %v1686 = vmul.f32 %v1658, %v1668
        %v1687 = vmul.f32 %v1659, %v1673
        %v1688 = vmul.f32 %v1660, %v1673
        %v1689 = vmul.f32 %v1661, %v1678
        %v1690 = vmul.f32 %v1662, %v1678
        %v1691 = vmul.f32 %v1663, %v1683
        %v1692 = vmul.f32 %v1664, %v1683
        %v1693 = vadd.f32 %v1618, %v1685
        %v1694 = vadd.f32 %v1619, %v1686
        %v1695 = vadd.f32 %v1620, %v1687
        %v1696 = vadd.f32 %v1621, %v1688
        %v1697 = vadd.f32 %v1622, %v1689
        %v1698 = vadd.f32 %v1623, %v1690
        %v1699 = vadd.f32 %v1624, %v1691
        %v1700 = vadd.f32 %v1625, %v1692
        %v1701 = vld [vmem:[%s6] sm:$0xff]
        %v1702 = vld [vmem:[%s6 + $0x8] sm:$0xff]
        %v1703 = vld [vmem:[%s6 + $0x10] sm:$0xff]
        %v1704 = vld [vmem:[%s6 + $0x18] sm:$0xff]
        %1706 = vset.pattern.permute.xlu0 0
        %1707 = vperm.xlu0 %1706, %v1701
        %v1708 = vpop.permute.xlu0 %1707
        %1711 = vset.pattern.permute.xlu0 0
        %1712 = vperm.xlu0 %1711, %v1702
        %v1713 = vpop.permute.xlu0 %1712
        %1716 = vset.pattern.permute.xlu0 0
        %1717 = vperm.xlu0 %1716, %v1703
        %v1718 = vpop.permute.xlu0 %1717
        %1721 = vset.pattern.permute.xlu0 0
        %1722 = vperm.xlu0 %1721, %v1704
        %v1723 = vpop.permute.xlu0 %1722
        %v1725 = vmul.f32 %v1693, %v1708
        %v1726 = vmul.f32 %v1694, %v1708
        %v1727 = vmul.f32 %v1695, %v1713
        %v1728 = vmul.f32 %v1696, %v1713
        %v1729 = vmul.f32 %v1697, %v1718
        %v1730 = vmul.f32 %v1698, %v1718
        %v1731 = vmul.f32 %v1699, %v1723
        %v1732 = vmul.f32 %v1700, %v1723
        %v1733 = vld [vmem:[%s7] sm:$0xff]
        %v1734 = vld [vmem:[%s7 + $0x8] sm:$0xff]
        %v1735 = vld [vmem:[%s7 + $0x10] sm:$0xff]
        %v1736 = vld [vmem:[%s7 + $0x18] sm:$0xff]
        %1738 = vset.pattern.permute.xlu0 0
        %1739 = vperm.xlu0 %1738, %v1733
        %v1740 = vpop.permute.xlu0 %1739
        %1743 = vset.pattern.permute.xlu0 0
        %1744 = vperm.xlu0 %1743, %v1734
        %v1745 = vpop.permute.xlu0 %1744
        %1748 = vset.pattern.permute.xlu0 0
        %1749 = vperm.xlu0 %1748, %v1735
        %v1750 = vpop.permute.xlu0 %1749
        %1753 = vset.pattern.permute.xlu0 0
        %1754 = vperm.xlu0 %1753, %v1736
        %v1755 = vpop.permute.xlu0 %1754
        %v1757 = vadd.f32 %v1725, %v1740
        %v1758 = vadd.f32 %v1726, %v1740
        %v1759 = vadd.f32 %v1727, %v1745
        %v1760 = vadd.f32 %v1728, %v1745
        %v1761 = vadd.f32 %v1729, %v1750
        %v1762 = vadd.f32 %v1730, %v1750
        %v1763 = vadd.f32 %v1731, %v1755
        %v1764 = vadd.f32 %v1732, %v1755
        %v1765 = vxor.u32 %v1757, 2147483648
        %v1766 = vxor.u32 %v1758, 2147483648
        %v1767 = vxor.u32 %v1759, 2147483648
        %v1768 = vxor.u32 %v1760, 2147483648
        %v1769 = vxor.u32 %v1761, 2147483648
        %v1770 = vxor.u32 %v1762, 2147483648
        %v1771 = vxor.u32 %v1763, 2147483648
        %v1772 = vxor.u32 %v1764, 2147483648
        %v1773 = vmul.f32 %v1765, 1.442695
        %v1774 = vpow.pop %v1773
        %v1775 = vmul.f32 %v1766, 1.442695
        %v1776 = vpow.pop %v1775
        %v1777 = vmul.f32 %v1767, 1.442695
        %v1778 = vpow.pop %v1777
        %v1779 = vmul.f32 %v1768, 1.442695
        %v1780 = vpow.pop %v1779
        %v1781 = vmul.f32 %v1769, 1.442695
        %v1782 = vpow.pop %v1781
        %v1783 = vmul.f32 %v1770, 1.442695
        %v1784 = vpow.pop %v1783
        %v1785 = vmul.f32 %v1771, 1.442695
        %v1786 = vpow.pop %v1785
        %v1787 = vmul.f32 %v1772, 1.442695
        %v1788 = vpow.pop %v1787
        %v1789 = vadd.f32 %v1774, 1.0
        %v1790 = vadd.f32 %v1776, 1.0
        %v1791 = vadd.f32 %v1778, 1.0
        %v1792 = vadd.f32 %v1780, 1.0
        %v1793 = vadd.f32 %v1782, 1.0
        %v1794 = vadd.f32 %v1784, 1.0
        %v1795 = vadd.f32 %v1786, 1.0
        %v1796 = vadd.f32 %v1788, 1.0
        %v1797 = vrcp.pop %v1789
        %v1798 = vmul.f32 %v1789, %v1797
        %v1799 = vsub.f32 1.0, %v1798
        %v1800 = vmul.f32 %v1797, %v1799
        %v1801 = vadd.f32 %v1797, %v1800
        %vm1802 = vweird.f32 %v1789
        %vm1803 = vweird.f32 %v1797
        %vm1804 = vmor %vm1802, %vm1803
        %v1805 = vsel %vm1804, %v1797, %v1801
        %v1806 = vand.u32 2147483647, %v1789
        %vm1807 = vcmp.eq.f32.partialorder %v1806, 8.507059e+37
        %v1808 = vand.u32 %v1789, 2147483648
        %v1809 = vor.u32 1.1754944e-38, %v1808
        %v1810 = vsel %vm1807, %v1809, %v1805
        %v1811 = vmul.f32 1.0, %v1810
        %v1812 = vrcp.pop %v1790
        %v1813 = vmul.f32 %v1790, %v1812
        %v1814 = vsub.f32 1.0, %v1813
        %v1815 = vmul.f32 %v1812, %v1814
        %v1816 = vadd.f32 %v1812, %v1815
        %vm1817 = vweird.f32 %v1790
        %vm1818 = vweird.f32 %v1812
        %vm1819 = vmor %vm1817, %vm1818
        %v1820 = vsel %vm1819, %v1812, %v1816
        %v1821 = vand.u32 2147483647, %v1790
        %vm1822 = vcmp.eq.f32.partialorder %v1821, 8.507059e+37
        %v1823 = vand.u32 %v1790, 2147483648
        %v1824 = vor.u32 1.1754944e-38, %v1823
        %v1825 = vsel %vm1822, %v1824, %v1820
        %v1826 = vmul.f32 1.0, %v1825
        %v1827 = vrcp.pop %v1791
        %v1828 = vmul.f32 %v1791, %v1827
        %v1829 = vsub.f32 1.0, %v1828
        %v1830 = vmul.f32 %v1827, %v1829
        %v1831 = vadd.f32 %v1827, %v1830
        %vm1832 = vweird.f32 %v1791
        %vm1833 = vweird.f32 %v1827
        %vm1834 = vmor %vm1832, %vm1833
        %v1835 = vsel %vm1834, %v1827, %v1831
        %v1836 = vand.u32 2147483647, %v1791
        %vm1837 = vcmp.eq.f32.partialorder %v1836, 8.507059e+37
        %v1838 = vand.u32 %v1791, 2147483648
        %v1839 = vor.u32 1.1754944e-38, %v1838
        %v1840 = vsel %vm1837, %v1839, %v1835
        %v1841 = vmul.f32 1.0, %v1840
        %v1842 = vrcp.pop %v1792
        %v1843 = vmul.f32 %v1792, %v1842
        %v1844 = vsub.f32 1.0, %v1843
        %v1845 = vmul.f32 %v1842, %v1844
        %v1846 = vadd.f32 %v1842, %v1845
        %vm1847 = vweird.f32 %v1792
        %vm1848 = vweird.f32 %v1842
        %vm1849 = vmor %vm1847, %vm1848
        %v1850 = vsel %vm1849, %v1842, %v1846
        %v1851 = vand.u32 2147483647, %v1792
        %vm1852 = vcmp.eq.f32.partialorder %v1851, 8.507059e+37
        %v1853 = vand.u32 %v1792, 2147483648
        %v1854 = vor.u32 1.1754944e-38, %v1853
        %v1855 = vsel %vm1852, %v1854, %v1850
        %v1856 = vmul.f32 1.0, %v1855
        %v1857 = vrcp.pop %v1793
        %v1858 = vmul.f32 %v1793, %v1857
        %v1859 = vsub.f32 1.0, %v1858
        %v1860 = vmul.f32 %v1857, %v1859
        %v1861 = vadd.f32 %v1857, %v1860
        %vm1862 = vweird.f32 %v1793
        %vm1863 = vweird.f32 %v1857
        %vm1864 = vmor %vm1862, %vm1863
        %v1865 = vsel %vm1864, %v1857, %v1861
        %v1866 = vand.u32 2147483647, %v1793
        %vm1867 = vcmp.eq.f32.partialorder %v1866, 8.507059e+37
        %v1868 = vand.u32 %v1793, 2147483648
        %v1869 = vor.u32 1.1754944e-38, %v1868
        %v1870 = vsel %vm1867, %v1869, %v1865
        %v1871 = vmul.f32 1.0, %v1870
        %v1872 = vrcp.pop %v1794
        %v1873 = vmul.f32 %v1794, %v1872
        %v1874 = vsub.f32 1.0, %v1873
        %v1875 = vmul.f32 %v1872, %v1874
        %v1876 = vadd.f32 %v1872, %v1875
        %vm1877 = vweird.f32 %v1794
        %vm1878 = vweird.f32 %v1872
        %vm1879 = vmor %vm1877, %vm1878
        %v1880 = vsel %vm1879, %v1872, %v1876
        %v1881 = vand.u32 2147483647, %v1794
        %vm1882 = vcmp.eq.f32.partialorder %v1881, 8.507059e+37
        %v1883 = vand.u32 %v1794, 2147483648
        %v1884 = vor.u32 1.1754944e-38, %v1883
        %v1885 = vsel %vm1882, %v1884, %v1880
        %v1886 = vmul.f32 1.0, %v1885
        %v1887 = vrcp.pop %v1795
        %v1888 = vmul.f32 %v1795, %v1887
        %v1889 = vsub.f32 1.0, %v1888
        %v1890 = vmul.f32 %v1887, %v1889
        %v1891 = vadd.f32 %v1887, %v1890
        %vm1892 = vweird.f32 %v1795
        %vm1893 = vweird.f32 %v1887
        %vm1894 = vmor %vm1892, %vm1893
        %v1895 = vsel %vm1894, %v1887, %v1891
        %v1896 = vand.u32 2147483647, %v1795
        %vm1897 = vcmp.eq.f32.partialorder %v1896, 8.507059e+37
        %v1898 = vand.u32 %v1795, 2147483648
        %v1899 = vor.u32 1.1754944e-38, %v1898
        %v1900 = vsel %vm1897, %v1899, %v1895
        %v1901 = vmul.f32 1.0, %v1900
        %v1902 = vrcp.pop %v1796
        %v1903 = vmul.f32 %v1796, %v1902
        %v1904 = vsub.f32 1.0, %v1903
        %v1905 = vmul.f32 %v1902, %v1904
        %v1906 = vadd.f32 %v1902, %v1905
        %vm1907 = vweird.f32 %v1796
        %vm1908 = vweird.f32 %v1902
        %vm1909 = vmor %vm1907, %vm1908
        %v1910 = vsel %vm1909, %v1902, %v1906
        %v1911 = vand.u32 2147483647, %v1796
        %vm1912 = vcmp.eq.f32.partialorder %v1911, 8.507059e+37
        %v1913 = vand.u32 %v1796, 2147483648
        %v1914 = vor.u32 1.1754944e-38, %v1913
        %v1915 = vsel %vm1912, %v1914, %v1910
        %v1916 = vmul.f32 1.0, %v1915
        %v1917 = vmul.f32 %v1757, %v1811
        %v1918 = vmul.f32 %v1758, %v1826
        %v1919 = vmul.f32 %v1759, %v1841
        %v1920 = vmul.f32 %v1760, %v1856
        %v1921 = vmul.f32 %v1761, %v1871
        %v1922 = vmul.f32 %v1762, %v1886
        %v1923 = vmul.f32 %v1763, %v1901
        %v1924 = vmul.f32 %v1764, %v1916
        %v1925 = vadd.f32 %v1917, %v1918
        %1926 = vadd.xlane.f32.xlu0 %v1925
        %v1927 = vpop.xlane.xlu0 %1926
        %v1928 = vadd.f32 %v1919, %v1920
        %1929 = vadd.xlane.f32.xlu0 %v1928
        %v1930 = vpop.xlane.xlu0 %1929
        %v1931 = vadd.f32 %v1921, %v1922
        %1932 = vadd.xlane.f32.xlu0 %v1931
        %v1933 = vpop.xlane.xlu0 %1932
        %v1934 = vadd.f32 %v1923, %v1924
        %1935 = vadd.xlane.f32.xlu0 %v1934
        %v1936 = vpop.xlane.xlu0 %1935
        %v1937 = vmul.f32 %v1927, 0.00390625
        %v1938 = vmul.f32 %v1930, 0.00390625
        %v1939 = vmul.f32 %v1933, 0.00390625
        %v1940 = vmul.f32 %v1936, 0.00390625
        %v1941 = vld [vmem:[%s8] sm:$0x3]
        %v1942 = vld [vmem:[%s9] sm:$0x3]
        %vm1943 = vcmask 261120
        %v1945 = vsel %vm1943, %v1941, 0
        %1947 = vmatpush.msra.mxu0 0.0
        %1948 = vmatpush.msra.mxu0 0.0
        %1949 = vmatpush.msra.mxu0 0.0
        %1950 = vmatpush.msra.mxu0 0.0
        %1951 = vmatpush.msra.mxu0 0.0
        %1952 = vmatpush.msra.mxu0 0.0
        %1953 = vmatpush.msra.mxu0 0.0
        %1954 = vmatpush.msra.mxu0 0.0
        %1955 = vmatpush.msra.mxu0 0.0
        %1956 = vmatpush.msra.mxu0 0.0
        %1957 = vmatpush.msra.mxu0 0.0
        %1958 = vmatpush.msra.mxu0 0.0
        %1959 = vmatpush.msra.mxu0 %v1940
        %1960 = vmatpush.msra.mxu0 %v1939
        %1961 = vmatpush.msra.mxu0 %v1938
        %1962 = vmatpush.msra.mxu0 %v1937
        %1963 = vmatmul.f32.gmra.mxu0 %v1945
        %v1964 = vpop.f32.mrf.mxu0
        %v1965 = vadd.f32 %v1942, %v1964
        %1966 = vdwg.mxu0
        %v1967 = vxor.u32 %v1965, 2147483648
        %v1968 = vmul.f32 %v1967, 1.442695
        %v1969 = vpow.pop %v1968
        %v1970 = vadd.f32 %v1969, 1.0
        %v1971 = vrcp.pop %v1970
        %v1972 = vmul.f32 %v1970, %v1971
        %v1973 = vsub.f32 1.0, %v1972
        %v1974 = vmul.f32 %v1971, %v1973
        %v1975 = vadd.f32 %v1971, %v1974
        %vm1976 = vweird.f32 %v1970
        %vm1977 = vweird.f32 %v1971
        %vm1978 = vmor %vm1976, %vm1977
        %v1979 = vsel %vm1978, %v1971, %v1975
        %v1980 = vand.u32 2147483647, %v1970
        %vm1981 = vcmp.eq.f32.partialorder %v1980, 8.507059e+37
        %v1982 = vand.u32 %v1970, 2147483648
        %v1983 = vor.u32 1.1754944e-38, %v1982
        %v1984 = vsel %vm1981, %v1983, %v1979
        %v1985 = vmul.f32 1.0, %v1984
        %v1986 = vmul.f32 %v1965, %v1985
        %v1987 = vld [vmem:[%s10] sm:$0xff]
        %v1988 = vld [vmem:[%s10 + $0x8] sm:$0xff]
        %v1989 = vld [vmem:[%s10 + $0x10] sm:$0xff]
        %v1990 = vld [vmem:[%s10 + $0x18] sm:$0xff]
        %v1991 = vld [vmem:[%s11] sm:$0xff]
        %v1992 = vld [vmem:[%s11 + $0x8] sm:$0xff]
        %v1993 = vld [vmem:[%s11 + $0x10] sm:$0xff]
        %v1994 = vld [vmem:[%s11 + $0x18] sm:$0xff]
        %vm1995 = vcmask 15360
        %v1997 = vsel %vm1995, %v1987, 0
        %v2000 = vsel %vm1995, %v1988, 0
        %v2003 = vsel %vm1995, %v1989, 0
        %v2006 = vsel %vm1995, %v1990, 0
        %vm2008 = vcmask 1041408
        %v2010 = vsel %vm2008, %v1986, 0
        %2012 = vmatpush.msra.mxu0 0.0
        %2013 = vmatpush.msra.mxu0 0.0
        %2014 = vmatpush.msra.mxu0 0.0
        %2015 = vmatpush.msra.mxu0 0.0
        %2016 = vmatpush.msra.mxu0 0.0
        %2017 = vmatpush.msra.mxu0 0.0
        %2018 = vmatpush.msra.mxu0 0.0
        %2019 = vmatpush.msra.mxu0 0.0
        %2020 = vmatpush.msra.mxu0 0.0
        %2021 = vmatpush.msra.mxu0 0.0
        %2022 = vmatpush.msra.mxu0 0.0
        %2023 = vmatpush.msra.mxu0 0.0
        %2024 = vmatpush.msra.mxu0 0.0
        %2025 = vmatpush.msra.mxu0 0.0
        %2026 = vmatpush.msra.mxu0 0.0
        %2027 = vmatpush.msra.mxu0 %v2010
        %2028 = vmatmul.f32.gmra.mxu0 %v1997
        %v2029 = vpop.f32.mrf.mxu0
        %v2030 = vadd.f32 %v1991, %v2029
        %2031 = vmatmul.f32.gmra.mxu0 %v2000
        %v2032 = vpop.f32.mrf.mxu0
        %v2033 = vadd.f32 %v1992, %v2032
        %2034 = vmatmul.f32.gmra.mxu0 %v2003
        %v2035 = vpop.f32.mrf.mxu0
        %v2036 = vadd.f32 %v1993, %v2035
        %2037 = vmatmul.f32.gmra.mxu0 %v2006
        %v2038 = vpop.f32.mrf.mxu0
        %v2039 = vadd.f32 %v1994, %v2038
        %2040 = vdwg.mxu0
        %v2041 = vxor.u32 %v2030, 2147483648
        %v2042 = vxor.u32 %v2033, 2147483648
        %v2043 = vxor.u32 %v2036, 2147483648
        %v2044 = vxor.u32 %v2039, 2147483648
        %v2045 = vmul.f32 %v2041, 1.442695
        %v2046 = vpow.pop %v2045
        %v2047 = vmul.f32 %v2042, 1.442695
        %v2048 = vpow.pop %v2047
        %v2049 = vmul.f32 %v2043, 1.442695
        %v2050 = vpow.pop %v2049
        %v2051 = vmul.f32 %v2044, 1.442695
        %v2052 = vpow.pop %v2051
        %v2053 = vadd.f32 %v2046, 1.0
        %v2054 = vadd.f32 %v2048, 1.0
        %v2055 = vadd.f32 %v2050, 1.0
        %v2056 = vadd.f32 %v2052, 1.0
        %v2057 = vrcp.pop %v2053
        %v2058 = vmul.f32 %v2053, %v2057
        %v2059 = vsub.f32 1.0, %v2058
        %v2060 = vmul.f32 %v2057, %v2059
        %v2061 = vadd.f32 %v2057, %v2060
        %vm2062 = vweird.f32 %v2053
        %vm2063 = vweird.f32 %v2057
        %vm2064 = vmor %vm2062, %vm2063
        %v2065 = vsel %vm2064, %v2057, %v2061
        %v2066 = vand.u32 2147483647, %v2053
        %vm2067 = vcmp.eq.f32.partialorder %v2066, 8.507059e+37
        %v2068 = vand.u32 %v2053, 2147483648
        %v2069 = vor.u32 1.1754944e-38, %v2068
        %v2070 = vsel %vm2067, %v2069, %v2065
        %v2071 = vmul.f32 1.0, %v2070
        %v2072 = vrcp.pop %v2054
        %v2073 = vmul.f32 %v2054, %v2072
        %v2074 = vsub.f32 1.0, %v2073
        %v2075 = vmul.f32 %v2072, %v2074
        %v2076 = vadd.f32 %v2072, %v2075
        %vm2077 = vweird.f32 %v2054
        %vm2078 = vweird.f32 %v2072
        %vm2079 = vmor %vm2077, %vm2078
        %v2080 = vsel %vm2079, %v2072, %v2076
        %v2081 = vand.u32 2147483647, %v2054
        %vm2082 = vcmp.eq.f32.partialorder %v2081, 8.507059e+37
        %v2083 = vand.u32 %v2054, 2147483648
        %v2084 = vor.u32 1.1754944e-38, %v2083
        %v2085 = vsel %vm2082, %v2084, %v2080
        %v2086 = vmul.f32 1.0, %v2085
        %v2087 = vrcp.pop %v2055
        %v2088 = vmul.f32 %v2055, %v2087
        %v2089 = vsub.f32 1.0, %v2088
        %v2090 = vmul.f32 %v2087, %v2089
        %v2091 = vadd.f32 %v2087, %v2090
        %vm2092 = vweird.f32 %v2055
        %vm2093 = vweird.f32 %v2087
        %vm2094 = vmor %vm2092, %vm2093
        %v2095 = vsel %vm2094, %v2087, %v2091
        %v2096 = vand.u32 2147483647, %v2055
        %vm2097 = vcmp.eq.f32.partialorder %v2096, 8.507059e+37
        %v2098 = vand.u32 %v2055, 2147483648
        %v2099 = vor.u32 1.1754944e-38, %v2098
        %v2100 = vsel %vm2097, %v2099, %v2095
        %v2101 = vmul.f32 1.0, %v2100
        %v2102 = vrcp.pop %v2056
        %v2103 = vmul.f32 %v2056, %v2102
        %v2104 = vsub.f32 1.0, %v2103
        %v2105 = vmul.f32 %v2102, %v2104
        %v2106 = vadd.f32 %v2102, %v2105
        %vm2107 = vweird.f32 %v2056
        %vm2108 = vweird.f32 %v2102
        %vm2109 = vmor %vm2107, %vm2108
        %v2110 = vsel %vm2109, %v2102, %v2106
        %v2111 = vand.u32 2147483647, %v2056
        %vm2112 = vcmp.eq.f32.partialorder %v2111, 8.507059e+37
        %v2113 = vand.u32 %v2056, 2147483648
        %v2114 = vor.u32 1.1754944e-38, %v2113
        %v2115 = vsel %vm2112, %v2114, %v2110
        %v2116 = vmul.f32 1.0, %v2115
        %2118 = vset.pattern.permute.xlu0 0
        %2119 = vperm.xlu0 %2118, %v2071
        %v2120 = vpop.permute.xlu0 %2119
        %2123 = vset.pattern.permute.xlu0 0
        %2124 = vperm.xlu0 %2123, %v2086
        %v2125 = vpop.permute.xlu0 %2124
        %2128 = vset.pattern.permute.xlu0 0
        %2129 = vperm.xlu0 %2128, %v2101
        %v2130 = vpop.permute.xlu0 %2129
        %2133 = vset.pattern.permute.xlu0 0
        %2134 = vperm.xlu0 %2133, %v2116
        %v2135 = vpop.permute.xlu0 %2134
        %v2137 = vmul.f32 %v1917, %v2120
        %v2138 = vmul.f32 %v1918, %v2120
        %v2139 = vmul.f32 %v1919, %v2125
        %v2140 = vmul.f32 %v1920, %v2125
        %v2141 = vmul.f32 %v1921, %v2130
        %v2142 = vmul.f32 %v1922, %v2130
        %v2143 = vmul.f32 %v1923, %v2135
        %v2144 = vmul.f32 %v1924, %v2135
        %v2145 = vld [vmem:[%s12] sm:$0xff]
        %2147 = vset.pattern.permute.xlu0 0
        %2148 = vperm.xlu0 %2147, %v2145
        %v2149 = vpop.permute.xlu0 %2148
        %v2151 = vperm.slane %v2137, 0
        %v2152 = vperm.slane %v2138, 0
        %v2153 = vmul.f32 %v2149, %v2151
        %v2154 = vmul.f32 %v2149, %v2152
        %v2155 = vadd.f32 %v2153, 0.0
        %v2156 = vadd.f32 %v2154, 0.0
        %v2157 = vld [vmem:[%s12 + $0x8] sm:$0xff]
        %2159 = vset.pattern.permute.xlu0 0
        %2160 = vperm.xlu0 %2159, %v2157
        %v2161 = vpop.permute.xlu0 %2160
        %v2163 = vperm.slane %v2137, 1
        %v2164 = vperm.slane %v2138, 1
        %v2165 = vmul.f32 %v2161, %v2163
        %v2166 = vmul.f32 %v2161, %v2164
        %v2167 = vadd.f32 %v2155, %v2165
        %v2168 = vadd.f32 %v2156, %v2166
        %v2169 = vld [vmem:[%s12 + $0x10] sm:$0xff]
        %2171 = vset.pattern.permute.xlu0 0
        %2172 = vperm.xlu0 %2171, %v2169
        %v2173 = vpop.permute.xlu0 %2172
        %v2175 = vperm.slane %v2137, 2
        %v2176 = vperm.slane %v2138, 2
        %v2177 = vmul.f32 %v2173, %v2175
        %v2178 = vmul.f32 %v2173, %v2176
        %v2179 = vadd.f32 %v2167, %v2177
        %v2180 = vadd.f32 %v2168, %v2178
        %v2181 = vld [vmem:[%s12 + $0x18] sm:$0xff]
        %2183 = vset.pattern.permute.xlu0 0
        %2184 = vperm.xlu0 %2183, %v2181
        %v2185 = vpop.permute.xlu0 %2184
        %v2187 = vperm.slane %v2137, 3
        %v2188 = vperm.slane %v2138, 3
        %v2189 = vmul.f32 %v2185, %v2187
        %v2190 = vmul.f32 %v2185, %v2188
        %v2191 = vadd.f32 %v2179, %v2189
        %v2192 = vadd.f32 %v2180, %v2190
        %v2193 = vld [vmem:[%s12 + $0x20] sm:$0xff]
        %2195 = vset.pattern.permute.xlu0 0
        %2196 = vperm.xlu0 %2195, %v2193
        %v2197 = vpop.permute.xlu0 %2196
        %v2199 = vperm.slane %v2137, 4
        %v2200 = vperm.slane %v2138, 4
        %v2201 = vmul.f32 %v2197, %v2199
        %v2202 = vmul.f32 %v2197, %v2200
        %v2203 = vadd.f32 %v2191, %v2201
        %v2204 = vadd.f32 %v2192, %v2202
        %v2205 = vld [vmem:[%s12 + $0x28] sm:$0xff]
        %2207 = vset.pattern.permute.xlu0 0
        %2208 = vperm.xlu0 %2207, %v2205
        %v2209 = vpop.permute.xlu0 %2208
        %v2211 = vperm.slane %v2137, 5
        %v2212 = vperm.slane %v2138, 5
        %v2213 = vmul.f32 %v2209, %v2211
        %v2214 = vmul.f32 %v2209, %v2212
        %v2215 = vadd.f32 %v2203, %v2213
        %v2216 = vadd.f32 %v2204, %v2214
        %v2217 = vld [vmem:[%s12 + $0x30] sm:$0xff]
        %2219 = vset.pattern.permute.xlu0 0
        %2220 = vperm.xlu0 %2219, %v2217
        %v2221 = vpop.permute.xlu0 %2220
        %v2223 = vperm.slane %v2137, 6
        %v2224 = vperm.slane %v2138, 6
        %v2225 = vmul.f32 %v2221, %v2223
        %v2226 = vmul.f32 %v2221, %v2224
        %v2227 = vadd.f32 %v2215, %v2225
        %v2228 = vadd.f32 %v2216, %v2226
        %v2229 = vld [vmem:[%s12 + $0x38] sm:$0xff]
        %2231 = vset.pattern.permute.xlu0 0
        %2232 = vperm.xlu0 %2231, %v2229
        %v2233 = vpop.permute.xlu0 %2232
        %v2235 = vperm.slane %v2137, 7
        %v2236 = vperm.slane %v2138, 7
        %v2237 = vmul.f32 %v2233, %v2235
        %v2238 = vmul.f32 %v2233, %v2236
        %v2239 = vadd.f32 %v2227, %v2237
        %v2240 = vadd.f32 %v2228, %v2238
        %v2241 = vld [vmem:[%s12 + $0x40] sm:$0xff]
        %2243 = vset.pattern.permute.xlu0 0
        %2244 = vperm.xlu0 %2243, %v2241
        %v2245 = vpop.permute.xlu0 %2244
        %v2247 = vperm.slane %v2139, 0
        %v2248 = vperm.slane %v2140, 0
        %v2249 = vmul.f32 %v2245, %v2247
        %v2250 = vmul.f32 %v2245, %v2248
        %v2251 = vadd.f32 %v2239, %v2249
        %v2252 = vadd.f32 %v2240, %v2250
        %v2253 = vld [vmem:[%s12 + $0x48] sm:$0xff]
        %2255 = vset.pattern.permute.xlu0 0
        %2256 = vperm.xlu0 %2255, %v2253
        %v2257 = vpop.permute.xlu0 %2256
        %v2259 = vperm.slane %v2139, 1
        %v2260 = vperm.slane %v2140, 1
        %v2261 = vmul.f32 %v2257, %v2259
        %v2262 = vmul.f32 %v2257, %v2260
        %v2263 = vadd.f32 %v2251, %v2261
        %v2264 = vadd.f32 %v2252, %v2262
        %v2265 = vld [vmem:[%s12 + $0x50] sm:$0xff]
        %2267 = vset.pattern.permute.xlu0 0
        %2268 = vperm.xlu0 %2267, %v2265
        %v2269 = vpop.permute.xlu0 %2268
        %v2271 = vperm.slane %v2139, 2
        %v2272 = vperm.slane %v2140, 2
        %v2273 = vmul.f32 %v2269, %v2271
        %v2274 = vmul.f32 %v2269, %v2272
        %v2275 = vadd.f32 %v2263, %v2273
        %v2276 = vadd.f32 %v2264, %v2274
        %v2277 = vld [vmem:[%s12 + $0x58] sm:$0xff]
        %2279 = vset.pattern.permute.xlu0 0
        %2280 = vperm.xlu0 %2279, %v2277
        %v2281 = vpop.permute.xlu0 %2280
        %v2283 = vperm.slane %v2139, 3
        %v2284 = vperm.slane %v2140, 3
        %v2285 = vmul.f32 %v2281, %v2283
        %v2286 = vmul.f32 %v2281, %v2284
        %v2287 = vadd.f32 %v2275, %v2285
        %v2288 = vadd.f32 %v2276, %v2286
        %v2289 = vld [vmem:[%s12 + $0x60] sm:$0xff]
        %2291 = vset.pattern.permute.xlu0 0
        %2292 = vperm.xlu0 %2291, %v2289
        %v2293 = vpop.permute.xlu0 %2292
        %v2295 = vperm.slane %v2139, 4
        %v2296 = vperm.slane %v2140, 4
        %v2297 = vmul.f32 %v2293, %v2295
        %v2298 = vmul.f32 %v2293, %v2296
        %v2299 = vadd.f32 %v2287, %v2297
        %v2300 = vadd.f32 %v2288, %v2298
        %v2301 = vld [vmem:[%s12 + $0x68] sm:$0xff]
        %2303 = vset.pattern.permute.xlu0 0
        %2304 = vperm.xlu0 %2303, %v2301
        %v2305 = vpop.permute.xlu0 %2304
        %v2307 = vperm.slane %v2139, 5
        %v2308 = vperm.slane %v2140, 5
        %v2309 = vmul.f32 %v2305, %v2307
        %v2310 = vmul.f32 %v2305, %v2308
        %v2311 = vadd.f32 %v2299, %v2309
        %v2312 = vadd.f32 %v2300, %v2310
        %v2313 = vld [vmem:[%s12 + $0x70] sm:$0xff]
        %2315 = vset.pattern.permute.xlu0 0
        %2316 = vperm.xlu0 %2315, %v2313
        %v2317 = vpop.permute.xlu0 %2316
        %v2319 = vperm.slane %v2139, 6
        %v2320 = vperm.slane %v2140, 6
        %v2321 = vmul.f32 %v2317, %v2319
        %v2322 = vmul.f32 %v2317, %v2320
        %v2323 = vadd.f32 %v2311, %v2321
        %v2324 = vadd.f32 %v2312, %v2322
        %v2325 = vld [vmem:[%s12 + $0x78] sm:$0xff]
        %2327 = vset.pattern.permute.xlu0 0
        %2328 = vperm.xlu0 %2327, %v2325
        %v2329 = vpop.permute.xlu0 %2328
        %v2331 = vperm.slane %v2139, 7
        %v2332 = vperm.slane %v2140, 7
        %v2333 = vmul.f32 %v2329, %v2331
        %v2334 = vmul.f32 %v2329, %v2332
        %v2335 = vadd.f32 %v2323, %v2333
        %v2336 = vadd.f32 %v2324, %v2334
        %v2337 = vld [vmem:[%s12 + $0x80] sm:$0xff]
        %2339 = vset.pattern.permute.xlu0 0
        %2340 = vperm.xlu0 %2339, %v2337
        %v2341 = vpop.permute.xlu0 %2340
        %v2343 = vperm.slane %v2141, 0
        %v2344 = vperm.slane %v2142, 0
        %v2345 = vmul.f32 %v2341, %v2343
        %v2346 = vmul.f32 %v2341, %v2344
        %v2347 = vadd.f32 %v2335, %v2345
        %v2348 = vadd.f32 %v2336, %v2346
        %v2349 = vld [vmem:[%s12 + $0x88] sm:$0xff]
        %2351 = vset.pattern.permute.xlu0 0
        %2352 = vperm.xlu0 %2351, %v2349
        %v2353 = vpop.permute.xlu0 %2352
        %v2355 = vperm.slane %v2141, 1
        %v2356 = vperm.slane %v2142, 1
        %v2357 = vmul.f32 %v2353, %v2355
        %v2358 = vmul.f32 %v2353, %v2356
        %v2359 = vadd.f32 %v2347, %v2357
        %v2360 = vadd.f32 %v2348, %v2358
        %v2361 = vld [vmem:[%s12 + $0x90] sm:$0xff]
        %2363 = vset.pattern.permute.xlu0 0
        %2364 = vperm.xlu0 %2363, %v2361
        %v2365 = vpop.permute.xlu0 %2364
        %v2367 = vperm.slane %v2141, 2
        %v2368 = vperm.slane %v2142, 2
        %v2369 = vmul.f32 %v2365, %v2367
        %v2370 = vmul.f32 %v2365, %v2368
        %v2371 = vadd.f32 %v2359, %v2369
        %v2372 = vadd.f32 %v2360, %v2370
        %v2373 = vld [vmem:[%s12 + $0x98] sm:$0xff]
        %2375 = vset.pattern.permute.xlu0 0
        %2376 = vperm.xlu0 %2375, %v2373
        %v2377 = vpop.permute.xlu0 %2376
        %v2379 = vperm.slane %v2141, 3
        %v2380 = vperm.slane %v2142, 3
        %v2381 = vmul.f32 %v2377, %v2379
        %v2382 = vmul.f32 %v2377, %v2380
        %v2383 = vadd.f32 %v2371, %v2381
        %v2384 = vadd.f32 %v2372, %v2382
        %v2385 = vld [vmem:[%s12 + $0xa0] sm:$0xff]
        %2387 = vset.pattern.permute.xlu0 0
        %2388 = vperm.xlu0 %2387, %v2385
        %v2389 = vpop.permute.xlu0 %2388
        %v2391 = vperm.slane %v2141, 4
        %v2392 = vperm.slane %v2142, 4
        %v2393 = vmul.f32 %v2389, %v2391
        %v2394 = vmul.f32 %v2389, %v2392
        %v2395 = vadd.f32 %v2383, %v2393
        %v2396 = vadd.f32 %v2384, %v2394
        %v2397 = vld [vmem:[%s12 + $0xa8] sm:$0xff]
        %2399 = vset.pattern.permute.xlu0 0
        %2400 = vperm.xlu0 %2399, %v2397
        %v2401 = vpop.permute.xlu0 %2400
        %v2403 = vperm.slane %v2141, 5
        %v2404 = vperm.slane %v2142, 5
        %v2405 = vmul.f32 %v2401, %v2403
        %v2406 = vmul.f32 %v2401, %v2404
        %v2407 = vadd.f32 %v2395, %v2405
        %v2408 = vadd.f32 %v2396, %v2406
        %v2409 = vld [vmem:[%s12 + $0xb0] sm:$0xff]
        %2411 = vset.pattern.permute.xlu0 0
        %2412 = vperm.xlu0 %2411, %v2409
        %v2413 = vpop.permute.xlu0 %2412
        %v2415 = vperm.slane %v2141, 6
        %v2416 = vperm.slane %v2142, 6
        %v2417 = vmul.f32 %v2413, %v2415
        %v2418 = vmul.f32 %v2413, %v2416
        %v2419 = vadd.f32 %v2407, %v2417
        %v2420 = vadd.f32 %v2408, %v2418
        %v2421 = vld [vmem:[%s12 + $0xb8] sm:$0xff]
        %2423 = vset.pattern.permute.xlu0 0
        %2424 = vperm.xlu0 %2423, %v2421
        %v2425 = vpop.permute.xlu0 %2424
        %v2427 = vperm.slane %v2141, 7
        %v2428 = vperm.slane %v2142, 7
        %v2429 = vmul.f32 %v2425, %v2427
        %v2430 = vmul.f32 %v2425, %v2428
        %v2431 = vadd.f32 %v2419, %v2429
        %v2432 = vadd.f32 %v2420, %v2430
        %v2433 = vld [vmem:[%s12 + $0xc0] sm:$0xff]
        %2435 = vset.pattern.permute.xlu0 0
        %2436 = vperm.xlu0 %2435, %v2433
        %v2437 = vpop.permute.xlu0 %2436
        %v2439 = vperm.slane %v2143, 0
        %v2440 = vperm.slane %v2144, 0
        %v2441 = vmul.f32 %v2437, %v2439
        %v2442 = vmul.f32 %v2437, %v2440
        %v2443 = vadd.f32 %v2431, %v2441
        %v2444 = vadd.f32 %v2432, %v2442
        %v2445 = vld [vmem:[%s12 + $0xc8] sm:$0xff]
        %2447 = vset.pattern.permute.xlu0 0
        %2448 = vperm.xlu0 %2447, %v2445
        %v2449 = vpop.permute.xlu0 %2448
        %v2451 = vperm.slane %v2143, 1
        %v2452 = vperm.slane %v2144, 1
        %v2453 = vmul.f32 %v2449, %v2451
        %v2454 = vmul.f32 %v2449, %v2452
        %v2455 = vadd.f32 %v2443, %v2453
        %v2456 = vadd.f32 %v2444, %v2454
        %v2457 = vld [vmem:[%s12 + $0xd0] sm:$0xff]
        %2459 = vset.pattern.permute.xlu0 0
        %2460 = vperm.xlu0 %2459, %v2457
        %v2461 = vpop.permute.xlu0 %2460
        %v2463 = vperm.slane %v2143, 2
        %v2464 = vperm.slane %v2144, 2
        %v2465 = vmul.f32 %v2461, %v2463
        %v2466 = vmul.f32 %v2461, %v2464
        %v2467 = vadd.f32 %v2455, %v2465
        %v2468 = vadd.f32 %v2456, %v2466
        %v2469 = vld [vmem:[%s12 + $0xd8] sm:$0xff]
        %2471 = vset.pattern.permute.xlu0 0
        %2472 = vperm.xlu0 %2471, %v2469
        %v2473 = vpop.permute.xlu0 %2472
        %v2475 = vperm.slane %v2143, 3
        %v2476 = vperm.slane %v2144, 3
        %v2477 = vmul.f32 %v2473, %v2475
        %v2478 = vmul.f32 %v2473, %v2476
        %v2479 = vadd.f32 %v2467, %v2477
        %v2480 = vadd.f32 %v2468, %v2478
        %v2481 = vld [vmem:[%s12 + $0xe0] sm:$0xff]
        %2483 = vset.pattern.permute.xlu0 0
        %2484 = vperm.xlu0 %2483, %v2481
        %v2485 = vpop.permute.xlu0 %2484
        %v2487 = vperm.slane %v2143, 4
        %v2488 = vperm.slane %v2144, 4
        %v2489 = vmul.f32 %v2485, %v2487
        %v2490 = vmul.f32 %v2485, %v2488
        %v2491 = vadd.f32 %v2479, %v2489
        %v2492 = vadd.f32 %v2480, %v2490
        %v2493 = vld [vmem:[%s12 + $0xe8] sm:$0xff]
        %2495 = vset.pattern.permute.xlu0 0
        %2496 = vperm.xlu0 %2495, %v2493
        %v2497 = vpop.permute.xlu0 %2496
        %v2499 = vperm.slane %v2143, 5
        %v2500 = vperm.slane %v2144, 5
        %v2501 = vmul.f32 %v2497, %v2499
        %v2502 = vmul.f32 %v2497, %v2500
        %v2503 = vadd.f32 %v2491, %v2501
        %v2504 = vadd.f32 %v2492, %v2502
        %v2505 = vld [vmem:[%s12 + $0xf0] sm:$0xff]
        %2507 = vset.pattern.permute.xlu0 0
        %2508 = vperm.xlu0 %2507, %v2505
        %v2509 = vpop.permute.xlu0 %2508
        %v2511 = vperm.slane %v2143, 6
        %v2512 = vperm.slane %v2144, 6
        %v2513 = vmul.f32 %v2509, %v2511
        %v2514 = vmul.f32 %v2509, %v2512
        %v2515 = vadd.f32 %v2503, %v2513
        %v2516 = vadd.f32 %v2504, %v2514
        %v2517 = vld [vmem:[%s12 + $0xf8] sm:$0xff]
        %2519 = vset.pattern.permute.xlu0 0
        %2520 = vperm.xlu0 %2519, %v2517
        %v2521 = vpop.permute.xlu0 %2520
        %v2523 = vperm.slane %v2143, 7
        %v2524 = vperm.slane %v2144, 7
        %v2525 = vmul.f32 %v2521, %v2523
        %v2526 = vmul.f32 %v2521, %v2524
        %v2527 = vadd.f32 %v2515, %v2525
        %v2528 = vadd.f32 %v2516, %v2526
        %v2529 = vld [vmem:[%s13] sm:$0xff]
        %2531 = vset.pattern.permute.xlu0 0
        %2532 = vperm.xlu0 %2531, %v2529
        %v2533 = vpop.permute.xlu0 %2532
        %v2535 = vmul.f32 %v2527, %v2533
        %v2536 = vmul.f32 %v2528, %v2533
        %v2537 = vld [vmem:[%s14] sm:$0xff]
        %2539 = vset.pattern.permute.xlu0 0
        %2540 = vperm.xlu0 %2539, %v2537
        %v2541 = vpop.permute.xlu0 %2540
        %v2543 = vadd.f32 %v2535, %v2541
        %v2544 = vadd.f32 %v2536, %v2541
        %v2545 = vadd.f32 %v2543, %v493
        %v2546 = vadd.f32 %v2544, %v494
        %2547 = vst [vmem:[%s487] sm:$0xff] %v2545
        %2548 = vst [vmem:[%s487 + $0x8] sm:$0xff] %v2546
        %s2549 = sand.u32 %s357, 1
        %s2550 = scalar_lea.sflag [#allocation3], %s2549
        %s2551 = sand.u32 %s357, 1
        %s2552 = smul.addr %s2551, 16
        %s2553 = scalar_lea.vmem [#allocation2], %s2552
        // Predicated region
        $region81: #{tpu_custom_call.1} parent=79 // pred_check
          %p2554 = pneg %p367
        $region82: #{tpu_custom_call.1} parent=79 // pred_check_branch
          %2556 = sbr.rel (%p2554) target = $region84
        $region83: #{tpu_custom_call.1} parent=79 // pred_region
          %2558 = vsyncadd %s2550, 0
          %s2559 = smul.addr %s29, 2
          %s2560 = smul.addr %s2559, 8
          %s2561 = scalar_lea.hbm %s15, %s2560
          %s2563 = sshll.u32 %s2553, 4
          %s2564 = int_to_ptr.vmem [resolvable:$true] %s2563
          %s2565 = sshll.u32 %s2561, 4
          %s2566 = int_to_ptr.hbm [resolvable:$true] %s2565
          %2568 = dma.vmem_to_hbm [thread:$0]  %s2564, 256, %s2566, %s2550
        $region84: #{tpu_custom_call.1} parent=79 // pred_fallthru
          _
      $region80: #{tpu_custom_call.1} parent=5 // pred_fallthru
        _
      %p2569 = scmp.le.s32.totalorder 2, %s24
      // Predicated region
      $region85: #{tpu_custom_call.1} parent=5 // pred_check
        %p2570 = pneg %p2569
      $region86: #{tpu_custom_call.1} parent=5 // pred_check_branch
        %2572 = sbr.rel (%p2570) target = $region88
      $region87: #{tpu_custom_call.1} parent=5 // pred_region
        %s2573 = ssub.s32 %s24, 2
        // Predicated region
        $region89: #{tpu_custom_call.1} parent=87 // pred_check
          %p2574 = pneg %p373
        $region90: #{tpu_custom_call.1} parent=87 // pred_check_branch
          %2576 = sbr.rel (%p2574) target = $region92
        $region91: #{tpu_custom_call.1} parent=87 // pred_region
          %s2577 = sand.u32 %s358, 1
          %s2578 = scalar_lea.sflag [#allocation3], %s2577
          %s2579 = sand.u32 %s358, 1
          %s2580 = smul.addr %s2579, 16
          %s2581 = scalar_lea.vmem [#allocation2], %s2580
          %2583 = dma.done %s2578, 256
        $region92: #{tpu_custom_call.1} parent=87 // pred_fallthru
          _
      $region88: #{tpu_custom_call.1} parent=5 // pred_fallthru
        _
    $region6: #{tpu_custom_call.1} parent=1 // loop_footer
      %s28 = sadd.s32 1, %s24
    $region7: #{tpu_custom_call.1} parent=1 // loop_footer_branch
      %23 = sbr.rel target = $region3
    $region8: #{tpu_custom_call.1} parent=1 // loop_exit
      _
    %2584 = vsyncpa [#allocation3], 1
    %s2585 = scalar_lea.sflag [#allocation3], 1
    %2586 = vsyncpa %s2585, 1

</llo_original>
